<compile_context>
chip_gen: v5e
topology: v5e:2x2
jax: 0.10.0
libtpu: 0.0.40
codegen_flags: <defaults>
</compile_context>

<pallas_src>
import functools

import jax
import jax.numpy as jnp
from jax import lax
from jax.experimental import pallas as pl
from jax.experimental.pallas import tpu as pltpu

BN_EPS = 1e-5


# --------------------------------------------------------------------------
# Pallas kernel: one grid step == one batch element, fully fused forward.
# --------------------------------------------------------------------------
def elk_cnn_kernel(x1_ref, w1_ref, b1_ref, wp1_ref, bp1_ref, wd_ref, bd_ref,
                   wp2_ref, bp2_ref, wsh_ref, bsh_ref, g2_ref, be2_ref,
                   w2_ref, b2_ref, pool_ref, wfc_ref, bfc_ref,
                   o_ref, dwpad_ref, ypad_ref):
    S = x1_ref.shape[1]          # sensor columns
    T1 = x1_ref.shape[2]         # time length after the first stride-2 conv
    KD = wd_ref.shape[0]         # 31 depthwise taps
    K2 = w2_ref.shape[0]         # 6 taps of the second strided conv
    P = pool_ref.shape[0]        # stride-1 length of the second conv output

    # Hoist the (BN-folded) weights once; reused for every sensor column.
    w1 = w1_ref[...]
    b1 = b1_ref[...]
    wp1 = wp1_ref[...]
    bp1 = bp1_ref[...]
    bd = bd_ref[...]
    wp2 = wp2_ref[...]
    bp2 = bp2_ref[...]
    wsh = wsh_ref[...]
    bsh = bsh_ref[...]
    g2 = g2_ref[...]
    be2 = be2_ref[...]
    b2 = b2_ref[...]
    pool_w = pool_ref[...]
    bfc = bfc_ref[...]

    # Zero the padded scratch once per grid step; the pad rows below/above the
    # written window stay zero for every sensor column.
    dwpad_ref[...] = jnp.zeros_like(dwpad_ref)
    ypad_ref[...] = jnp.zeros_like(ypad_ref)

    logits = jnp.zeros((1, o_ref.shape[-1]), jnp.float32)

    for s in range(S):  # static unroll over the (tiny) sensor axis
        # -- stage 1: Conv2d(1,64,(6,1),s=(2,1),p=(1,0)) + BN + ReLU (im2col matmul)
        x1 = x1_ref[0, s, :, :]                                    # (T1, 8)
        h1 = jnp.dot(x1, w1, preferred_element_type=jnp.float32) + b1
        h1 = jnp.maximum(h1, 0.0)                                  # (T1, 64)

        # -- ELK.pw1: 1x1 conv 64->128 + BN + ReLU
        a = jnp.dot(h1, wp1, preferred_element_type=jnp.float32) + bp1
        a = jnp.maximum(a, 0.0)                                    # (T1, 128)

        # -- ELK.large_kernel: depthwise (31,1) conv, pad 15, +bias ; ReLU
        dwpad_ref[pl.ds(KD // 2, T1), :] = a
        d = jnp.zeros((T1, a.shape[-1]), jnp.float32)
        for k in range(KD):
            d = d + dwpad_ref[pl.ds(k, T1), :] * wd_ref[pl.ds(k, 1), :]
        d = jnp.maximum(d + bd, 0.0)                               # (T1, 128)

        # -- ELK.pw2: 1x1 conv 128->128 + BN (no ReLU)
        c = jnp.dot(d, wp2, preferred_element_type=jnp.float32) + bp2

        # -- ELK.short: 1x1 conv 64->128 (+bias) + ReLU on the ELK input
        sc = jnp.dot(h1, wsh, preferred_element_type=jnp.float32) + bsh
        sc = jnp.maximum(sc, 0.0)

        # -- residual add + outer BN(128) + ReLU
        y = jnp.maximum((sc + c) * g2 + be2, 0.0)                  # (T1, 128)

        # -- stage 3: Conv2d(128,256,(6,1),s=(2,1),p=(1,0)) + BN + ReLU,
        #    computed at stride 1; stride-2 subsampling + AdaptiveAvgPool over
        #    time are fused via the 1/T2-weighted even-row mask `pool_w`.
        ypad_ref[pl.ds(1, T1), :] = y
        z = jnp.zeros((P, b2.shape[-1]), jnp.float32)
        for k in range(K2):
            z = z + jnp.dot(ypad_ref[pl.ds(k, P), :], w2_ref[k],
                            preferred_element_type=jnp.float32)
        z = jnp.maximum(z + b2, 0.0)                               # (P, 256)

        pooled = jnp.sum(z * pool_w, axis=0, keepdims=True)        # (1, 256)

        # -- slice of the final Linear belonging to sensor column s
        logits = logits + jnp.dot(pooled, wfc_ref[s],
                                  preferred_element_type=jnp.float32)

    o_ref[0] = (logits + bfc).astype(o_ref.dtype)


# --------------------------------------------------------------------------
# Host wrapper: fold eval-mode BN into the convs, build im2col, call Pallas.
# --------------------------------------------------------------------------
@functools.partial(jax.jit, static_argnums=2)
def elk_cnn_forward(x, params, category):
    """x: (B, T, S) raw signal (PyTorch forward unsqueezes the channel dim)."""
    B, T, S = x.shape
    f32 = jnp.float32

    def fold(bn):
        g, beta, mean, var = bn
        sc = g / jnp.sqrt(var + BN_EPS)
        return sc, beta - mean * sc

    # ---- BN folding + kernel-layout weights --------------------------------
    s1, t1 = fold(params['bn1'])
    W1 = params['conv1_w'][:, 0, :, 0].T * s1[None, :]              # (6, 64)
    W1 = jnp.pad(W1, ((0, 2), (0, 0)))                              # taps 6 -> 8
    b1 = params['conv1_b'] * s1 + t1

    sp1, tp1 = fold(params['pw1_bn'])
    Wp1 = params['pw1_w'][:, :, 0, 0].T * sp1[None, :]              # (64, 128)
    bp1 = tp1

    Wd = params['dw_w'][:, 0, :, 0].T                               # (31, 128)
    bd = params['dw_b']

    sp2, tp2 = fold(params['pw2_bn'])
    Wp2 = params['pw2_w'][:, :, 0, 0].T * sp2[None, :]              # (128, 128)
    bp2 = tp2

    Wsh = params['short_w'][:, :, 0, 0].T                           # (64, 128)
    bsh = params['short_b']

    g2, be2 = fold(params['bn2'])

    s3, t3 = fold(params['bn3'])
    W2 = jnp.transpose(params['conv2_w'][:, :, :, 0], (2, 1, 0))    # (6,128,256)
    W2 = W2 * s3[None, None, :]
    b2 = params['conv2_b'] * s3 + t3

    C3 = W2.shape[-1]
    # torch flattens (B,256,1,S) as c*S + s; reorder the fc weight to s-major.
    Wfc = params['fc_w'].reshape(category, C3, S).transpose(2, 1, 0)  # (S,256,cat)
    bfc = params['fc_b']

    # ---- im2col for the first strided conv (raw-input indexing only) -------
    T1 = (T + 2 - 6) // 2 + 1
    xpad = jnp.pad(x.astype(f32), ((0, 0), (1, 1), (0, 0)))
    tap = 2 * jnp.arange(T1)[:, None] + jnp.arange(6)[None, :]      # (T1, 6)
    X1 = jnp.transpose(xpad[:, tap, :], (0, 3, 1, 2))               # (B,S,T1,6)
    X1 = jnp.pad(X1, ((0, 0), (0, 0), (0, 0), (0, 2)))              # taps 6 -> 8

    # ---- fused "stride-2 subsample + mean over time" weights ---------------
    P = T1 + 2 - 6 + 1                     # stride-1 output length of conv2
    T2 = (T1 + 2 - 6) // 2 + 1             # true stride-2 output length
    pool_w = jnp.where(jnp.arange(P) % 2 == 0, 1.0 / T2, 0.0)
    pool_w = pool_w.astype(f32).reshape(P, 1)

    KD = Wd.shape[0]
    to2d = lambda v: v.reshape(1, -1).astype(f32)

    b1_2, bp1_2, bd_2, bp2_2 = to2d(b1), to2d(bp1), to2d(bd), to2d(bp2)
    bsh_2, g2_2, be2_2 = to2d(bsh), to2d(g2), to2d(be2)
    b2_2, bfc_2 = to2d(b2), to2d(bfc)
    W1, Wp1, Wd, Wp2 = W1.astype(f32), Wp1.astype(f32), Wd.astype(f32), Wp2.astype(f32)
    Wsh, W2, Wfc = Wsh.astype(f32), W2.astype(f32), Wfc.astype(f32)

    def _full2d(a):
        return pl.BlockSpec(a.shape, lambda b: (0, 0))

    def _full3d(a):
        return pl.BlockSpec(a.shape, lambda b: (0, 0, 0))

    flops = int(2 * B * S * (T1 * 8 * 64 + 2 * T1 * 64 * 128 + KD * T1 * 128
                             + T1 * 128 * 128 + 6 * P * 128 * 256 + 256 * category))
    bytes_accessed = int(4 * (X1.size + W1.size + Wp1.size + Wd.size + Wp2.size
                              + Wsh.size + W2.size + Wfc.size + B * category))

    out = pl.pallas_call(
        elk_cnn_kernel,
        out_shape=jax.ShapeDtypeStruct((B, 1, category), f32),
        grid_spec=pltpu.PrefetchScalarGridSpec(
            num_scalar_prefetch=0,
            grid=(B,),
            in_specs=[
                pl.BlockSpec((1,) + X1.shape[1:], lambda b: (b, 0, 0, 0)),
                _full2d(W1), _full2d(b1_2),
                _full2d(Wp1), _full2d(bp1_2),
                _full2d(Wd), _full2d(bd_2),
                _full2d(Wp2), _full2d(bp2_2),
                _full2d(Wsh), _full2d(bsh_2),
                _full2d(g2_2), _full2d(be2_2),
                _full3d(W2), _full2d(b2_2),
                _full2d(pool_w),
                _full3d(Wfc), _full2d(bfc_2),
            ],
            out_specs=pl.BlockSpec((1, 1, category), lambda b: (b, 0, 0)),
            scratch_shapes=[
                pltpu.VMEM((T1 + KD - 1, 128), f32),   # zero-padded depthwise input
                pltpu.VMEM((T1 + 2, 128), f32),        # zero-padded conv2 input
            ],
        ),
        compiler_params=pltpu.CompilerParams(
            dimension_semantics=("parallel",)),
        cost_estimate=pl.CostEstimate(flops=flops, transcendentals=0,
                                      bytes_accessed=bytes_accessed),
    )(X1, W1, b1_2, Wp1, bp1_2, Wd, bd_2, Wp2, bp2_2, Wsh, bsh_2,
      g2_2, be2_2, W2, b2_2, pool_w, Wfc, bfc_2)

    return out.reshape(B, category)


# --------------------------------------------------------------------------
# Pure-JAX reference that mirrors the PyTorch module layer-by-layer.
# --------------------------------------------------------------------------
def elk_cnn_reference(x, p):
    prec = lax.Precision.HIGHEST

    def conv(h, w, b, stride, padding, groups=1):
        out = lax.conv_general_dilated(
            h, w, window_strides=stride,
            padding=[(padding[0], padding[0]), (padding[1], padding[1])],
            dimension_numbers=("NCHW", "OIHW", "NCHW"),
            feature_group_count=groups, precision=prec)
        if b is not None:
            out = out + b.reshape(1, -1, 1, 1)
        return out

    def bn(h, g, beta, mean, var):
        sc = g / jnp.sqrt(var + BN_EPS)
        return h * sc.reshape(1, -1, 1, 1) + (beta - mean * sc).reshape(1, -1, 1, 1)

    relu = lambda t: jnp.maximum(t, 0.0)

    h = x[:, None, :, :]
    h = relu(bn(conv(h, p['conv1_w'], p['conv1_b'], (2, 1), (1, 0)), *p['bn1']))
    # ELK block
    a = relu(bn(conv(h, p['pw1_w'], None, (1, 1), (0, 0)), *p['pw1_bn']))
    d = relu(conv(a, p['dw_w'], p['dw_b'], (1, 1), (15, 0), groups=128))
    c = bn(conv(d, p['pw2_w'], None, (1, 1), (0, 0)), *p['pw2_bn'])
    sc = relu(conv(h, p['short_w'], p['short_b'], (1, 1), (0, 0)))
    h = sc + c
    h = relu(bn(h, *p['bn2']))
    h = relu(bn(conv(h, p['conv2_w'], p['conv2_b'], (2, 1), (1, 0)), *p['bn3']))
    h = jnp.mean(h, axis=2, keepdims=True)         # AdaptiveAvgPool2d((1, S))
    feat = h.reshape(h.shape[0], -1)               # (B, 256*S), c-major then s
    return jnp.dot(feat, p['fc_w'].T, precision=prec) + p['fc_b']


# --------------------------------------------------------------------------
# Deterministic parameter construction (eval-mode BN running stats included).
# --------------------------------------------------------------------------
def init_params(key, S, category):
    C1, C2, C3 = 64, 128, 256
    keys = iter(jax.random.split(key, 40))
    nxt = lambda: next(keys)

    def w(shape, fan_in):
        return jax.random.normal(nxt(), shape, jnp.float32) / jnp.sqrt(fan_in)

    def bias(shape):
        return 0.05 * jax.random.normal(nxt(), shape, jnp.float32)

    def bn(c):
        return (1.0 + 0.1 * jax.random.normal(nxt(), (c,), jnp.float32),   # gamma
                0.1 * jax.random.normal(nxt(), (c,), jnp.float32),         # beta
                0.1 * jax.random.normal(nxt(), (c,), jnp.float32),         # running mean
                jax.random.uniform(nxt(), (c,), jnp.float32, 0.5, 1.5))    # running var

    p = {}
    p['conv1_w'] = w((C1, 1, 6, 1), 6.0)
    p['conv1_b'] = bias((C1,))
    p['bn1'] = bn(C1)
    p['pw1_w'] = w((C2, C1, 1, 1), C1)
    p['pw1_bn'] = bn(C2)
    p['dw_w'] = w((C2, 1, 31, 1), 31.0)
    p['dw_b'] = bias((C2,))
    p['pw2_w'] = w((C2, C2, 1, 1), C2)
    p['pw2_bn'] = bn(C2)
    p['short_w'] = w((C2, C1, 1, 1), C1)
    p['short_b'] = bias((C2,))
    p['bn2'] = bn(C2)
    p['conv2_w'] = w((C3, C2, 6, 1), 6.0 * C2)
    p['conv2_b'] = bias((C3,))
    p['bn3'] = bn(C3)
    p['fc_w'] = w((category, C3 * S), C3 * S)
    p['fc_b'] = bias((category,))
    return p


if __name__ == "__main__":
    # Small shapes consistent with the module: train_shape=(T=32, S=3), 6 classes.
    B, T, S, category = 2, 32, 3, 6

    key = jax.random.PRNGKey(0)
    kx, kp = jax.random.split(key)
    x = jax.random.normal(kx, (B, T, S), dtype=jnp.float32)
    params = init_params(kp, S, category)

    out = elk_cnn_forward(x, params, category)
    out = jax.block_until_ready(out)

    ref = elk_cnn_reference(x, params)
    assert out.shape == (B, category)
    assert jnp.allclose(out, ref, atol=2e-2, rtol=2e-2), (
        f"mismatch vs reference, max abs err = {jnp.max(jnp.abs(out - ref))}")

    print("KERNEL_OK")
</pallas_src>

<mosaic_0001>
module attributes {stable_mosaic.version = 11 : i64} {
  func.func @elk_cnn_kernel(%arg0: i32, %arg1: memref<1x3x15x8xf32, #tpu.memory_space<vmem>>, %arg2: memref<8x64xf32, #tpu.memory_space<vmem>>, %arg3: memref<1x64xf32, #tpu.memory_space<vmem>>, %arg4: memref<64x128xf32, #tpu.memory_space<vmem>>, %arg5: memref<1x128xf32, #tpu.memory_space<vmem>>, %arg6: memref<31x128xf32, #tpu.memory_space<vmem>>, %arg7: memref<1x128xf32, #tpu.memory_space<vmem>>, %arg8: memref<128x128xf32, #tpu.memory_space<vmem>>, %arg9: memref<1x128xf32, #tpu.memory_space<vmem>>, %arg10: memref<64x128xf32, #tpu.memory_space<vmem>>, %arg11: memref<1x128xf32, #tpu.memory_space<vmem>>, %arg12: memref<1x128xf32, #tpu.memory_space<vmem>>, %arg13: memref<1x128xf32, #tpu.memory_space<vmem>>, %arg14: memref<6x128x256xf32, #tpu.memory_space<vmem>>, %arg15: memref<1x256xf32, #tpu.memory_space<vmem>>, %arg16: memref<12x1xf32, #tpu.memory_space<vmem>>, %arg17: memref<3x256x6xf32, #tpu.memory_space<vmem>>, %arg18: memref<1x6xf32, #tpu.memory_space<vmem>>, %arg19: memref<1x1x6xf32, #tpu.memory_space<vmem>>, %arg20: memref<45x128xf32, #tpu.memory_space<vmem>>, %arg21: memref<17x128xf32, #tpu.memory_space<vmem>>) attributes {dimension_semantics = [#tpu.dimension_semantics<parallel>], iteration_bounds = array<i64: 2>, scalar_prefetch = 0 : i64, scratch_operands = 2 : i64, tpu.core_type = #tpu.core_type<tc>, window_params = [{transform_indices = @transform_0, window_bounds = array<i64: 1, 3, 15, 8>}, {pipeline_mode = #tpu.pipeline_mode<synchronous>, transform_indices = @transform_1, window_bounds = array<i64: 8, 64>}, {pipeline_mode = #tpu.pipeline_mode<synchronous>, transform_indices = @transform_2, window_bounds = array<i64: 1, 64>}, {pipeline_mode = #tpu.pipeline_mode<synchronous>, transform_indices = @transform_3, window_bounds = array<i64: 64, 128>}, {pipeline_mode = #tpu.pipeline_mode<synchronous>, transform_indices = @transform_4, window_bounds = array<i64: 1, 128>}, {pipeline_mode = #tpu.pipeline_mode<synchronous>, transform_indices = @transform_5, window_bounds = array<i64: 31, 128>}, {pipeline_mode = #tpu.pipeline_mode<synchronous>, transform_indices = @transform_6, window_bounds = array<i64: 1, 128>}, {pipeline_mode = #tpu.pipeline_mode<synchronous>, transform_indices = @transform_7, window_bounds = array<i64: 128, 128>}, {pipeline_mode = #tpu.pipeline_mode<synchronous>, transform_indices = @transform_8, window_bounds = array<i64: 1, 128>}, {pipeline_mode = #tpu.pipeline_mode<synchronous>, transform_indices = @transform_9, window_bounds = array<i64: 64, 128>}, {pipeline_mode = #tpu.pipeline_mode<synchronous>, transform_indices = @transform_10, window_bounds = array<i64: 1, 128>}, {pipeline_mode = #tpu.pipeline_mode<synchronous>, transform_indices = @transform_11, window_bounds = array<i64: 1, 128>}, {pipeline_mode = #tpu.pipeline_mode<synchronous>, transform_indices = @transform_12, window_bounds = array<i64: 1, 128>}, {pipeline_mode = #tpu.pipeline_mode<synchronous>, transform_indices = @transform_13, window_bounds = array<i64: 6, 128, 256>}, {pipeline_mode = #tpu.pipeline_mode<synchronous>, transform_indices = @transform_14, window_bounds = array<i64: 1, 256>}, {pipeline_mode = #tpu.pipeline_mode<synchronous>, transform_indices = @transform_15, window_bounds = array<i64: 12, 1>}, {pipeline_mode = #tpu.pipeline_mode<synchronous>, transform_indices = @transform_16, window_bounds = array<i64: 3, 256, 6>}, {pipeline_mode = #tpu.pipeline_mode<synchronous>, transform_indices = @transform_17, window_bounds = array<i64: 1, 6>}, {transform_indices = @transform_18, window_bounds = array<i64: 1, 1, 6>}]} {
    %c0 = arith.constant 0 : index
    %c0_0 = arith.constant 0 : index
    %0 = vector.load %arg2[%c0, %c0_0] : memref<8x64xf32, #tpu.memory_space<vmem>>, vector<8x64xf32>
    %c0_1 = arith.constant 0 : index
    %c0_2 = arith.constant 0 : index
    %1 = vector.load %arg3[%c0_1, %c0_2] : memref<1x64xf32, #tpu.memory_space<vmem>>, vector<1x64xf32>
    %c0_3 = arith.constant 0 : index
    %c0_4 = arith.constant 0 : index
    %2 = vector.load %arg4[%c0_3, %c0_4] : memref<64x128xf32, #tpu.memory_space<vmem>>, vector<64x128xf32>
    %c0_5 = arith.constant 0 : index
    %c0_6 = arith.constant 0 : index
    %3 = vector.load %arg5[%c0_5, %c0_6] : memref<1x128xf32, #tpu.memory_space<vmem>>, vector<1x128xf32>
    %c0_7 = arith.constant 0 : index
    %c0_8 = arith.constant 0 : index
    %4 = vector.load %arg7[%c0_7, %c0_8] : memref<1x128xf32, #tpu.memory_space<vmem>>, vector<1x128xf32>
    %c0_9 = arith.constant 0 : index
    %c0_10 = arith.constant 0 : index
    %5 = vector.load %arg8[%c0_9, %c0_10] : memref<128x128xf32, #tpu.memory_space<vmem>>, vector<128x128xf32>
    %c0_11 = arith.constant 0 : index
    %c0_12 = arith.constant 0 : index
    %6 = vector.load %arg9[%c0_11, %c0_12] : memref<1x128xf32, #tpu.memory_space<vmem>>, vector<1x128xf32>
    %c0_13 = arith.constant 0 : index
    %c0_14 = arith.constant 0 : index
    %7 = vector.load %arg10[%c0_13, %c0_14] : memref<64x128xf32, #tpu.memory_space<vmem>>, vector<64x128xf32>
    %c0_15 = arith.constant 0 : index
    %c0_16 = arith.constant 0 : index
    %8 = vector.load %arg11[%c0_15, %c0_16] : memref<1x128xf32, #tpu.memory_space<vmem>>, vector<1x128xf32>
    %c0_17 = arith.constant 0 : index
    %c0_18 = arith.constant 0 : index
    %9 = vector.load %arg12[%c0_17, %c0_18] : memref<1x128xf32, #tpu.memory_space<vmem>>, vector<1x128xf32>
    %c0_19 = arith.constant 0 : index
    %c0_20 = arith.constant 0 : index
    %10 = vector.load %arg13[%c0_19, %c0_20] : memref<1x128xf32, #tpu.memory_space<vmem>>, vector<1x128xf32>
    %c0_21 = arith.constant 0 : index
    %c0_22 = arith.constant 0 : index
    %11 = vector.load %arg15[%c0_21, %c0_22] : memref<1x256xf32, #tpu.memory_space<vmem>>, vector<1x256xf32>
    %c0_23 = arith.constant 0 : index
    %c0_24 = arith.constant 0 : index
    %12 = vector.load %arg16[%c0_23, %c0_24] : memref<12x1xf32, #tpu.memory_space<vmem>>, vector<12x1xf32>
    %c0_25 = arith.constant 0 : index
    %c0_26 = arith.constant 0 : index
    %13 = vector.load %arg18[%c0_25, %c0_26] : memref<1x6xf32, #tpu.memory_space<vmem>>, vector<1x6xf32>
    %cst = arith.constant 0.000000e+00 : f32
    %14 = vector.broadcast %cst : f32 to vector<45x128xf32>
    %c0_27 = arith.constant 0 : index
    %c0_28 = arith.constant 0 : index
    %15 = vector.load %arg20[%c0_27, %c0_28] : memref<45x128xf32, #tpu.memory_space<vmem>>, vector<45x128xf32>
    tpu.vector_store %arg20[%c0_27, %c0_28], %14 {strides = array<i32>} : memref<45x128xf32, #tpu.memory_space<vmem>>, vector<45x128xf32>,
    %cst_29 = arith.constant 0.000000e+00 : f32
    %16 = vector.broadcast %cst_29 : f32 to vector<17x128xf32>
    %c0_30 = arith.constant 0 : index
    %c0_31 = arith.constant 0 : index
    %17 = vector.load %arg21[%c0_30, %c0_31] : memref<17x128xf32, #tpu.memory_space<vmem>>, vector<17x128xf32>
    tpu.vector_store %arg21[%c0_30, %c0_31], %16 {strides = array<i32>} : memref<17x128xf32, #tpu.memory_space<vmem>>, vector<17x128xf32>,
    %cst_32 = arith.constant 0.000000e+00 : f32
    %18 = vector.broadcast %cst_32 : f32 to vector<1x6xf32>
    %c0_33 = arith.constant 0 : index
    %c0_34 = arith.constant 0 : index
    %c0_35 = arith.constant 0 : index
    %c0_36 = arith.constant 0 : index
    %19 = vector.load %arg1[%c0_33, %c0_34, %c0_35, %c0_36] : memref<1x3x15x8xf32, #tpu.memory_space<vmem>>, vector<1x1x15x8xf32>
    %20 = vector.shape_cast %19 : vector<1x1x15x8xf32> to vector<15x8xf32>
    %cst_37 = arith.constant dense<0.000000e+00> : vector<15x64xf32>
    %21 = tpu.matmul %20, %0, %cst_37 {dimension_numbers = #tpu.dot_dimension_numbers<[1], [0], [0], [1], [0, 0, 1, 1], [], []>} : vector<15x8xf32>, vector<8x64xf32>, vector<15x64xf32> -> vector<15x64xf32>
    %22 = vector.broadcast %1 : vector<1x64xf32> to vector<15x64xf32>
    %23 = arith.addf %21, %22 : vector<15x64xf32>
    %cst_38 = arith.constant 0.000000e+00 : f32
    %24 = vector.broadcast %cst_38 : f32 to vector<15x64xf32>
    %25 = arith.maximumf %23, %24 : vector<15x64xf32>
    %cst_39 = arith.constant dense<0.000000e+00> : vector<15x128xf32>
    %26 = tpu.matmul %25, %2, %cst_39 {dimension_numbers = #tpu.dot_dimension_numbers<[1], [0], [0], [1], [0, 0, 1, 1], [], []>} : vector<15x64xf32>, vector<64x128xf32>, vector<15x128xf32> -> vector<15x128xf32>
    %27 = vector.broadcast %3 : vector<1x128xf32> to vector<15x128xf32>
    %28 = arith.addf %26, %27 : vector<15x128xf32>
    %cst_40 = arith.constant 0.000000e+00 : f32
    %29 = vector.broadcast %cst_40 : f32 to vector<15x128xf32>
    %30 = arith.maximumf %28, %29 : vector<15x128xf32>
    %c15 = arith.constant 15 : index
    %c0_41 = arith.constant 0 : index
    %31 = vector.load %arg20[%c15, %c0_41] : memref<45x128xf32, #tpu.memory_space<vmem>>, vector<15x128xf32>
    tpu.vector_store %arg20[%c15, %c0_41], %30 {strides = array<i32>} : memref<45x128xf32, #tpu.memory_space<vmem>>, vector<15x128xf32>,
    %cst_42 = arith.constant 0.000000e+00 : f32
    %32 = vector.broadcast %cst_42 : f32 to vector<15x128xf32>
    %c0_43 = arith.constant 0 : index
    %c0_44 = arith.constant 0 : index
    %33 = vector.load %arg20[%c0_43, %c0_44] : memref<45x128xf32, #tpu.memory_space<vmem>>, vector<15x128xf32>
    %c0_45 = arith.constant 0 : index
    %c0_46 = arith.constant 0 : index
    %34 = vector.load %arg6[%c0_45, %c0_46] : memref<31x128xf32, #tpu.memory_space<vmem>>, vector<1x128xf32>
    %35 = vector.broadcast %34 : vector<1x128xf32> to vector<15x128xf32>
    %36 = arith.mulf %33, %35 : vector<15x128xf32>
    %37 = arith.addf %32, %36 : vector<15x128xf32>
    %c1 = arith.constant 1 : index
    %c0_47 = arith.constant 0 : index
    %38 = vector.load %arg20[%c1, %c0_47] : memref<45x128xf32, #tpu.memory_space<vmem>>, vector<15x128xf32>
    %c1_48 = arith.constant 1 : index
    %c0_49 = arith.constant 0 : index
    %39 = vector.load %arg6[%c1_48, %c0_49] : memref<31x128xf32, #tpu.memory_space<vmem>>, vector<1x128xf32>
    %40 = vector.broadcast %39 : vector<1x128xf32> to vector<15x128xf32>
    %41 = arith.mulf %38, %40 : vector<15x128xf32>
    %42 = arith.addf %37, %41 : vector<15x128xf32>
    %c2 = arith.constant 2 : index
    %c0_50 = arith.constant 0 : index
    %43 = vector.load %arg20[%c2, %c0_50] : memref<45x128xf32, #tpu.memory_space<vmem>>, vector<15x128xf32>
    %c2_51 = arith.constant 2 : index
    %c0_52 = arith.constant 0 : index
    %44 = vector.load %arg6[%c2_51, %c0_52] : memref<31x128xf32, #tpu.memory_space<vmem>>, vector<1x128xf32>
    %45 = vector.broadcast %44 : vector<1x128xf32> to vector<15x128xf32>
    %46 = arith.mulf %43, %45 : vector<15x128xf32>
    %47 = arith.addf %42, %46 : vector<15x128xf32>
    %c3 = arith.constant 3 : index
    %c0_53 = arith.constant 0 : index
    %48 = vector.load %arg20[%c3, %c0_53] : memref<45x128xf32, #tpu.memory_space<vmem>>, vector<15x128xf32>
    %c3_54 = arith.constant 3 : index
    %c0_55 = arith.constant 0 : index
    %49 = vector.load %arg6[%c3_54, %c0_55] : memref<31x128xf32, #tpu.memory_space<vmem>>, vector<1x128xf32>
    %50 = vector.broadcast %49 : vector<1x128xf32> to vector<15x128xf32>
    %51 = arith.mulf %48, %50 : vector<15x128xf32>
    %52 = arith.addf %47, %51 : vector<15x128xf32>
    %c4 = arith.constant 4 : index
    %c0_56 = arith.constant 0 : index
    %53 = vector.load %arg20[%c4, %c0_56] : memref<45x128xf32, #tpu.memory_space<vmem>>, vector<15x128xf32>
    %c4_57 = arith.constant 4 : index
    %c0_58 = arith.constant 0 : index
    %54 = vector.load %arg6[%c4_57, %c0_58] : memref<31x128xf32, #tpu.memory_space<vmem>>, vector<1x128xf32>
    %55 = vector.broadcast %54 : vector<1x128xf32> to vector<15x128xf32>
    %56 = arith.mulf %53, %55 : vector<15x128xf32>
    %57 = arith.addf %52, %56 : vector<15x128xf32>
    %c5 = arith.constant 5 : index
    %c0_59 = arith.constant 0 : index
    %58 = vector.load %arg20[%c5, %c0_59] : memref<45x128xf32, #tpu.memory_space<vmem>>, vector<15x128xf32>
    %c5_60 = arith.constant 5 : index
    %c0_61 = arith.constant 0 : index
    %59 = vector.load %arg6[%c5_60, %c0_61] : memref<31x128xf32, #tpu.memory_space<vmem>>, vector<1x128xf32>
    %60 = vector.broadcast %59 : vector<1x128xf32> to vector<15x128xf32>
    %61 = arith.mulf %58, %60 : vector<15x128xf32>
    %62 = arith.addf %57, %61 : vector<15x128xf32>
    %c6 = arith.constant 6 : index
    %c0_62 = arith.constant 0 : index
    %63 = vector.load %arg20[%c6, %c0_62] : memref<45x128xf32, #tpu.memory_space<vmem>>, vector<15x128xf32>
    %c6_63 = arith.constant 6 : index
    %c0_64 = arith.constant 0 : index
    %64 = vector.load %arg6[%c6_63, %c0_64] : memref<31x128xf32, #tpu.memory_space<vmem>>, vector<1x128xf32>
    %65 = vector.broadcast %64 : vector<1x128xf32> to vector<15x128xf32>
    %66 = arith.mulf %63, %65 : vector<15x128xf32>
    %67 = arith.addf %62, %66 : vector<15x128xf32>
    %c7 = arith.constant 7 : index
    %c0_65 = arith.constant 0 : index
    %68 = vector.load %arg20[%c7, %c0_65] : memref<45x128xf32, #tpu.memory_space<vmem>>, vector<15x128xf32>
    %c7_66 = arith.constant 7 : index
    %c0_67 = arith.constant 0 : index
    %69 = vector.load %arg6[%c7_66, %c0_67] : memref<31x128xf32, #tpu.memory_space<vmem>>, vector<1x128xf32>
    %70 = vector.broadcast %69 : vector<1x128xf32> to vector<15x128xf32>
    %71 = arith.mulf %68, %70 : vector<15x128xf32>
    %72 = arith.addf %67, %71 : vector<15x128xf32>
    %c8 = arith.constant 8 : index
    %c0_68 = arith.constant 0 : index
    %73 = vector.load %arg20[%c8, %c0_68] : memref<45x128xf32, #tpu.memory_space<vmem>>, vector<15x128xf32>
    %c8_69 = arith.constant 8 : index
    %c0_70 = arith.constant 0 : index
    %74 = vector.load %arg6[%c8_69, %c0_70] : memref<31x128xf32, #tpu.memory_space<vmem>>, vector<1x128xf32>
    %75 = vector.broadcast %74 : vector<1x128xf32> to vector<15x128xf32>
    %76 = arith.mulf %73, %75 : vector<15x128xf32>
    %77 = arith.addf %72, %76 : vector<15x128xf32>
    %c9 = arith.constant 9 : index
    %c0_71 = arith.constant 0 : index
    %78 = vector.load %arg20[%c9, %c0_71] : memref<45x128xf32, #tpu.memory_space<vmem>>, vector<15x128xf32>
    %c9_72 = arith.constant 9 : index
    %c0_73 = arith.constant 0 : index
    %79 = vector.load %arg6[%c9_72, %c0_73] : memref<31x128xf32, #tpu.memory_space<vmem>>, vector<1x128xf32>
    %80 = vector.broadcast %79 : vector<1x128xf32> to vector<15x128xf32>
    %81 = arith.mulf %78, %80 : vector<15x128xf32>
    %82 = arith.addf %77, %81 : vector<15x128xf32>
    %c10 = arith.constant 10 : index
    %c0_74 = arith.constant 0 : index
    %83 = vector.load %arg20[%c10, %c0_74] : memref<45x128xf32, #tpu.memory_space<vmem>>, vector<15x128xf32>
    %c10_75 = arith.constant 10 : index
    %c0_76 = arith.constant 0 : index
    %84 = vector.load %arg6[%c10_75, %c0_76] : memref<31x128xf32, #tpu.memory_space<vmem>>, vector<1x128xf32>
    %85 = vector.broadcast %84 : vector<1x128xf32> to vector<15x128xf32>
    %86 = arith.mulf %83, %85 : vector<15x128xf32>
    %87 = arith.addf %82, %86 : vector<15x128xf32>
    %c11 = arith.constant 11 : index
    %c0_77 = arith.constant 0 : index
    %88 = vector.load %arg20[%c11, %c0_77] : memref<45x128xf32, #tpu.memory_space<vmem>>, vector<15x128xf32>
    %c11_78 = arith.constant 11 : index
    %c0_79 = arith.constant 0 : index
    %89 = vector.load %arg6[%c11_78, %c0_79] : memref<31x128xf32, #tpu.memory_space<vmem>>, vector<1x128xf32>
    %90 = vector.broadcast %89 : vector<1x128xf32> to vector<15x128xf32>
    %91 = arith.mulf %88, %90 : vector<15x128xf32>
    %92 = arith.addf %87, %91 : vector<15x128xf32>
    %c12 = arith.constant 12 : index
    %c0_80 = arith.constant 0 : index
    %93 = vector.load %arg20[%c12, %c0_80] : memref<45x128xf32, #tpu.memory_space<vmem>>, vector<15x128xf32>
    %c12_81 = arith.constant 12 : index
    %c0_82 = arith.constant 0 : index
    %94 = vector.load %arg6[%c12_81, %c0_82] : memref<31x128xf32, #tpu.memory_space<vmem>>, vector<1x128xf32>
    %95 = vector.broadcast %94 : vector<1x128xf32> to vector<15x128xf32>
    %96 = arith.mulf %93, %95 : vector<15x128xf32>
    %97 = arith.addf %92, %96 : vector<15x128xf32>
    %c13 = arith.constant 13 : index
    %c0_83 = arith.constant 0 : index
    %98 = vector.load %arg20[%c13, %c0_83] : memref<45x128xf32, #tpu.memory_space<vmem>>, vector<15x128xf32>
    %c13_84 = arith.constant 13 : index
    %c0_85 = arith.constant 0 : index
    %99 = vector.load %arg6[%c13_84, %c0_85] : memref<31x128xf32, #tpu.memory_space<vmem>>, vector<1x128xf32>
    %100 = vector.broadcast %99 : vector<1x128xf32> to vector<15x128xf32>
    %101 = arith.mulf %98, %100 : vector<15x128xf32>
    %102 = arith.addf %97, %101 : vector<15x128xf32>
    %c14 = arith.constant 14 : index
    %c0_86 = arith.constant 0 : index
    %103 = vector.load %arg20[%c14, %c0_86] : memref<45x128xf32, #tpu.memory_space<vmem>>, vector<15x128xf32>
    %c14_87 = arith.constant 14 : index
    %c0_88 = arith.constant 0 : index
    %104 = vector.load %arg6[%c14_87, %c0_88] : memref<31x128xf32, #tpu.memory_space<vmem>>, vector<1x128xf32>
    %105 = vector.broadcast %104 : vector<1x128xf32> to vector<15x128xf32>
    %106 = arith.mulf %103, %105 : vector<15x128xf32>
    %107 = arith.addf %102, %106 : vector<15x128xf32>
    %c15_89 = arith.constant 15 : index
    %c0_90 = arith.constant 0 : index
    %108 = vector.load %arg20[%c15_89, %c0_90] : memref<45x128xf32, #tpu.memory_space<vmem>>, vector<15x128xf32>
    %c15_91 = arith.constant 15 : index
    %c0_92 = arith.constant 0 : index
    %109 = vector.load %arg6[%c15_91, %c0_92] : memref<31x128xf32, #tpu.memory_space<vmem>>, vector<1x128xf32>
    %110 = vector.broadcast %109 : vector<1x128xf32> to vector<15x128xf32>
    %111 = arith.mulf %108, %110 : vector<15x128xf32>
    %112 = arith.addf %107, %111 : vector<15x128xf32>
    %c16 = arith.constant 16 : index
    %c0_93 = arith.constant 0 : index
    %113 = vector.load %arg20[%c16, %c0_93] : memref<45x128xf32, #tpu.memory_space<vmem>>, vector<15x128xf32>
    %c16_94 = arith.constant 16 : index
    %c0_95 = arith.constant 0 : index
    %114 = vector.load %arg6[%c16_94, %c0_95] : memref<31x128xf32, #tpu.memory_space<vmem>>, vector<1x128xf32>
    %115 = vector.broadcast %114 : vector<1x128xf32> to vector<15x128xf32>
    %116 = arith.mulf %113, %115 : vector<15x128xf32>
    %117 = arith.addf %112, %116 : vector<15x128xf32>
    %c17 = arith.constant 17 : index
    %c0_96 = arith.constant 0 : index
    %118 = vector.load %arg20[%c17, %c0_96] : memref<45x128xf32, #tpu.memory_space<vmem>>, vector<15x128xf32>
    %c17_97 = arith.constant 17 : index
    %c0_98 = arith.constant 0 : index
    %119 = vector.load %arg6[%c17_97, %c0_98] : memref<31x128xf32, #tpu.memory_space<vmem>>, vector<1x128xf32>
    %120 = vector.broadcast %119 : vector<1x128xf32> to vector<15x128xf32>
    %121 = arith.mulf %118, %120 : vector<15x128xf32>
    %122 = arith.addf %117, %121 : vector<15x128xf32>
    %c18 = arith.constant 18 : index
    %c0_99 = arith.constant 0 : index
    %123 = vector.load %arg20[%c18, %c0_99] : memref<45x128xf32, #tpu.memory_space<vmem>>, vector<15x128xf32>
    %c18_100 = arith.constant 18 : index
    %c0_101 = arith.constant 0 : index
    %124 = vector.load %arg6[%c18_100, %c0_101] : memref<31x128xf32, #tpu.memory_space<vmem>>, vector<1x128xf32>
    %125 = vector.broadcast %124 : vector<1x128xf32> to vector<15x128xf32>
    %126 = arith.mulf %123, %125 : vector<15x128xf32>
    %127 = arith.addf %122, %126 : vector<15x128xf32>
    %c19 = arith.constant 19 : index
    %c0_102 = arith.constant 0 : index
    %128 = vector.load %arg20[%c19, %c0_102] : memref<45x128xf32, #tpu.memory_space<vmem>>, vector<15x128xf32>
    %c19_103 = arith.constant 19 : index
    %c0_104 = arith.constant 0 : index
    %129 = vector.load %arg6[%c19_103, %c0_104] : memref<31x128xf32, #tpu.memory_space<vmem>>, vector<1x128xf32>
    %130 = vector.broadcast %129 : vector<1x128xf32> to vector<15x128xf32>
    %131 = arith.mulf %128, %130 : vector<15x128xf32>
    %132 = arith.addf %127, %131 : vector<15x128xf32>
    %c20 = arith.constant 20 : index
    %c0_105 = arith.constant 0 : index
    %133 = vector.load %arg20[%c20, %c0_105] : memref<45x128xf32, #tpu.memory_space<vmem>>, vector<15x128xf32>
    %c20_106 = arith.constant 20 : index
    %c0_107 = arith.constant 0 : index
    %134 = vector.load %arg6[%c20_106, %c0_107] : memref<31x128xf32, #tpu.memory_space<vmem>>, vector<1x128xf32>
    %135 = vector.broadcast %134 : vector<1x128xf32> to vector<15x128xf32>
    %136 = arith.mulf %133, %135 : vector<15x128xf32>
    %137 = arith.addf %132, %136 : vector<15x128xf32>
    %c21 = arith.constant 21 : index
    %c0_108 = arith.constant 0 : index
    %138 = vector.load %arg20[%c21, %c0_108] : memref<45x128xf32, #tpu.memory_space<vmem>>, vector<15x128xf32>
    %c21_109 = arith.constant 21 : index
    %c0_110 = arith.constant 0 : index
    %139 = vector.load %arg6[%c21_109, %c0_110] : memref<31x128xf32, #tpu.memory_space<vmem>>, vector<1x128xf32>
    %140 = vector.broadcast %139 : vector<1x128xf32> to vector<15x128xf32>
    %141 = arith.mulf %138, %140 : vector<15x128xf32>
    %142 = arith.addf %137, %141 : vector<15x128xf32>
    %c22 = arith.constant 22 : index
    %c0_111 = arith.constant 0 : index
    %143 = vector.load %arg20[%c22, %c0_111] : memref<45x128xf32, #tpu.memory_space<vmem>>, vector<15x128xf32>
    %c22_112 = arith.constant 22 : index
    %c0_113 = arith.constant 0 : index
    %144 = vector.load %arg6[%c22_112, %c0_113] : memref<31x128xf32, #tpu.memory_space<vmem>>, vector<1x128xf32>
    %145 = vector.broadcast %144 : vector<1x128xf32> to vector<15x128xf32>
    %146 = arith.mulf %143, %145 : vector<15x128xf32>
    %147 = arith.addf %142, %146 : vector<15x128xf32>
    %c23 = arith.constant 23 : index
    %c0_114 = arith.constant 0 : index
    %148 = vector.load %arg20[%c23, %c0_114] : memref<45x128xf32, #tpu.memory_space<vmem>>, vector<15x128xf32>
    %c23_115 = arith.constant 23 : index
    %c0_116 = arith.constant 0 : index
    %149 = vector.load %arg6[%c23_115, %c0_116] : memref<31x128xf32, #tpu.memory_space<vmem>>, vector<1x128xf32>
    %150 = vector.broadcast %149 : vector<1x128xf32> to vector<15x128xf32>
    %151 = arith.mulf %148, %150 : vector<15x128xf32>
    %152 = arith.addf %147, %151 : vector<15x128xf32>
    %c24 = arith.constant 24 : index
    %c0_117 = arith.constant 0 : index
    %153 = vector.load %arg20[%c24, %c0_117] : memref<45x128xf32, #tpu.memory_space<vmem>>, vector<15x128xf32>
    %c24_118 = arith.constant 24 : index
    %c0_119 = arith.constant 0 : index
    %154 = vector.load %arg6[%c24_118, %c0_119] : memref<31x128xf32, #tpu.memory_space<vmem>>, vector<1x128xf32>
    %155 = vector.broadcast %154 : vector<1x128xf32> to vector<15x128xf32>
    %156 = arith.mulf %153, %155 : vector<15x128xf32>
    %157 = arith.addf %152, %156 : vector<15x128xf32>
    %c25 = arith.constant 25 : index
    %c0_120 = arith.constant 0 : index
    %158 = vector.load %arg20[%c25, %c0_120] : memref<45x128xf32, #tpu.memory_space<vmem>>, vector<15x128xf32>
    %c25_121 = arith.constant 25 : index
    %c0_122 = arith.constant 0 : index
    %159 = vector.load %arg6[%c25_121, %c0_122] : memref<31x128xf32, #tpu.memory_space<vmem>>, vector<1x128xf32>
    %160 = vector.broadcast %159 : vector<1x128xf32> to vector<15x128xf32>
    %161 = arith.mulf %158, %160 : vector<15x128xf32>
    %162 = arith.addf %157, %161 : vector<15x128xf32>
    %c26 = arith.constant 26 : index
    %c0_123 = arith.constant 0 : index
    %163 = vector.load %arg20[%c26, %c0_123] : memref<45x128xf32, #tpu.memory_space<vmem>>, vector<15x128xf32>
    %c26_124 = arith.constant 26 : index
    %c0_125 = arith.constant 0 : index
    %164 = vector.load %arg6[%c26_124, %c0_125] : memref<31x128xf32, #tpu.memory_space<vmem>>, vector<1x128xf32>
    %165 = vector.broadcast %164 : vector<1x128xf32> to vector<15x128xf32>
    %166 = arith.mulf %163, %165 : vector<15x128xf32>
    %167 = arith.addf %162, %166 : vector<15x128xf32>
    %c27 = arith.constant 27 : index
    %c0_126 = arith.constant 0 : index
    %168 = vector.load %arg20[%c27, %c0_126] : memref<45x128xf32, #tpu.memory_space<vmem>>, vector<15x128xf32>
    %c27_127 = arith.constant 27 : index
    %c0_128 = arith.constant 0 : index
    %169 = vector.load %arg6[%c27_127, %c0_128] : memref<31x128xf32, #tpu.memory_space<vmem>>, vector<1x128xf32>
    %170 = vector.broadcast %169 : vector<1x128xf32> to vector<15x128xf32>
    %171 = arith.mulf %168, %170 : vector<15x128xf32>
    %172 = arith.addf %167, %171 : vector<15x128xf32>
    %c28 = arith.constant 28 : index
    %c0_129 = arith.constant 0 : index
    %173 = vector.load %arg20[%c28, %c0_129] : memref<45x128xf32, #tpu.memory_space<vmem>>, vector<15x128xf32>
    %c28_130 = arith.constant 28 : index
    %c0_131 = arith.constant 0 : index
    %174 = vector.load %arg6[%c28_130, %c0_131] : memref<31x128xf32, #tpu.memory_space<vmem>>, vector<1x128xf32>
    %175 = vector.broadcast %174 : vector<1x128xf32> to vector<15x128xf32>
    %176 = arith.mulf %173, %175 : vector<15x128xf32>
    %177 = arith.addf %172, %176 : vector<15x128xf32>
    %c29 = arith.constant 29 : index
    %c0_132 = arith.constant 0 : index
    %178 = vector.load %arg20[%c29, %c0_132] : memref<45x128xf32, #tpu.memory_space<vmem>>, vector<15x128xf32>
    %c29_133 = arith.constant 29 : index
    %c0_134 = arith.constant 0 : index
    %179 = vector.load %arg6[%c29_133, %c0_134] : memref<31x128xf32, #tpu.memory_space<vmem>>, vector<1x128xf32>
    %180 = vector.broadcast %179 : vector<1x128xf32> to vector<15x128xf32>
    %181 = arith.mulf %178, %180 : vector<15x128xf32>
    %182 = arith.addf %177, %181 : vector<15x128xf32>
    %c30 = arith.constant 30 : index
    %c0_135 = arith.constant 0 : index
    %183 = vector.load %arg20[%c30, %c0_135] : memref<45x128xf32, #tpu.memory_space<vmem>>, vector<15x128xf32>
    %c30_136 = arith.constant 30 : index
    %c0_137 = arith.constant 0 : index
    %184 = vector.load %arg6[%c30_136, %c0_137] : memref<31x128xf32, #tpu.memory_space<vmem>>, vector<1x128xf32>
    %185 = vector.broadcast %184 : vector<1x128xf32> to vector<15x128xf32>
    %186 = arith.mulf %183, %185 : vector<15x128xf32>
    %187 = arith.addf %182, %186 : vector<15x128xf32>
    %188 = vector.broadcast %4 : vector<1x128xf32> to vector<15x128xf32>
    %189 = arith.addf %187, %188 : vector<15x128xf32>
    %cst_138 = arith.constant 0.000000e+00 : f32
    %190 = vector.broadcast %cst_138 : f32 to vector<15x128xf32>
    %191 = arith.maximumf %189, %190 : vector<15x128xf32>
    %cst_139 = arith.constant dense<0.000000e+00> : vector<15x128xf32>
    %192 = tpu.matmul %191, %5, %cst_139 {dimension_numbers = #tpu.dot_dimension_numbers<[1], [0], [0], [1], [0, 0, 1, 1], [], []>} : vector<15x128xf32>, vector<128x128xf32>, vector<15x128xf32> -> vector<15x128xf32>
    %193 = vector.broadcast %6 : vector<1x128xf32> to vector<15x128xf32>
    %194 = arith.addf %192, %193 : vector<15x128xf32>
    %cst_140 = arith.constant dense<0.000000e+00> : vector<15x128xf32>
    %195 = tpu.matmul %25, %7, %cst_140 {dimension_numbers = #tpu.dot_dimension_numbers<[1], [0], [0], [1], [0, 0, 1, 1], [], []>} : vector<15x64xf32>, vector<64x128xf32>, vector<15x128xf32> -> vector<15x128xf32>
    %196 = vector.broadcast %8 : vector<1x128xf32> to vector<15x128xf32>
    %197 = arith.addf %195, %196 : vector<15x128xf32>
    %cst_141 = arith.constant 0.000000e+00 : f32
    %198 = vector.broadcast %cst_141 : f32 to vector<15x128xf32>
    %199 = arith.maximumf %197, %198 : vector<15x128xf32>
    %200 = arith.addf %199, %194 : vector<15x128xf32>
    %201 = vector.broadcast %9 : vector<1x128xf32> to vector<15x128xf32>
    %202 = arith.mulf %200, %201 : vector<15x128xf32>
    %203 = vector.broadcast %10 : vector<1x128xf32> to vector<15x128xf32>
    %204 = arith.addf %202, %203 : vector<15x128xf32>
    %cst_142 = arith.constant 0.000000e+00 : f32
    %205 = vector.broadcast %cst_142 : f32 to vector<15x128xf32>
    %206 = arith.maximumf %204, %205 : vector<15x128xf32>
    %c1_143 = arith.constant 1 : index
    %c0_144 = arith.constant 0 : index
    %207 = vector.load %arg21[%c1_143, %c0_144] : memref<17x128xf32, #tpu.memory_space<vmem>>, vector<15x128xf32>
    tpu.vector_store %arg21[%c1_143, %c0_144], %206 {strides = array<i32>} : memref<17x128xf32, #tpu.memory_space<vmem>>, vector<15x128xf32>,
    %cst_145 = arith.constant 0.000000e+00 : f32
    %208 = vector.broadcast %cst_145 : f32 to vector<12x256xf32>
    %c0_146 = arith.constant 0 : index
    %c0_147 = arith.constant 0 : index
    %209 = vector.load %arg21[%c0_146, %c0_147] : memref<17x128xf32, #tpu.memory_space<vmem>>, vector<12x128xf32>
    %c0_148 = arith.constant 0 : index
    %c0_149 = arith.constant 0 : index
    %c0_150 = arith.constant 0 : index
    %210 = vector.load %arg14[%c0_148, %c0_149, %c0_150] : memref<6x128x256xf32, #tpu.memory_space<vmem>>, vector<1x128x256xf32>
    %211 = vector.shape_cast %210 : vector<1x128x256xf32> to vector<128x256xf32>
    %cst_151 = arith.constant dense<0.000000e+00> : vector<12x256xf32>
    %212 = tpu.matmul %209, %211, %cst_151 {dimension_numbers = #tpu.dot_dimension_numbers<[1], [0], [0], [1], [0, 0, 1, 1], [], []>} : vector<12x128xf32>, vector<128x256xf32>, vector<12x256xf32> -> vector<12x256xf32>
    %213 = arith.addf %208, %212 : vector<12x256xf32>
    %c1_152 = arith.constant 1 : index
    %c0_153 = arith.constant 0 : index
    %214 = vector.load %arg21[%c1_152, %c0_153] : memref<17x128xf32, #tpu.memory_space<vmem>>, vector<12x128xf32>
    %c1_154 = arith.constant 1 : index
    %c0_155 = arith.constant 0 : index
    %c0_156 = arith.constant 0 : index
    %215 = vector.load %arg14[%c1_154, %c0_155, %c0_156] : memref<6x128x256xf32, #tpu.memory_space<vmem>>, vector<1x128x256xf32>
    %216 = vector.shape_cast %215 : vector<1x128x256xf32> to vector<128x256xf32>
    %cst_157 = arith.constant dense<0.000000e+00> : vector<12x256xf32>
    %217 = tpu.matmul %214, %216, %cst_157 {dimension_numbers = #tpu.dot_dimension_numbers<[1], [0], [0], [1], [0, 0, 1, 1], [], []>} : vector<12x128xf32>, vector<128x256xf32>, vector<12x256xf32> -> vector<12x256xf32>
    %218 = arith.addf %213, %217 : vector<12x256xf32>
    %c2_158 = arith.constant 2 : index
    %c0_159 = arith.constant 0 : index
    %219 = vector.load %arg21[%c2_158, %c0_159] : memref<17x128xf32, #tpu.memory_space<vmem>>, vector<12x128xf32>
    %c2_160 = arith.constant 2 : index
    %c0_161 = arith.constant 0 : index
    %c0_162 = arith.constant 0 : index
    %220 = vector.load %arg14[%c2_160, %c0_161, %c0_162] : memref<6x128x256xf32, #tpu.memory_space<vmem>>, vector<1x128x256xf32>
    %221 = vector.shape_cast %220 : vector<1x128x256xf32> to vector<128x256xf32>
    %cst_163 = arith.constant dense<0.000000e+00> : vector<12x256xf32>
    %222 = tpu.matmul %219, %221, %cst_163 {dimension_numbers = #tpu.dot_dimension_numbers<[1], [0], [0], [1], [0, 0, 1, 1], [], []>} : vector<12x128xf32>, vector<128x256xf32>, vector<12x256xf32> -> vector<12x256xf32>
    %223 = arith.addf %218, %222 : vector<12x256xf32>
    %c3_164 = arith.constant 3 : index
    %c0_165 = arith.constant 0 : index
    %224 = vector.load %arg21[%c3_164, %c0_165] : memref<17x128xf32, #tpu.memory_space<vmem>>, vector<12x128xf32>
    %c3_166 = arith.constant 3 : index
    %c0_167 = arith.constant 0 : index
    %c0_168 = arith.constant 0 : index
    %225 = vector.load %arg14[%c3_166, %c0_167, %c0_168] : memref<6x128x256xf32, #tpu.memory_space<vmem>>, vector<1x128x256xf32>
    %226 = vector.shape_cast %225 : vector<1x128x256xf32> to vector<128x256xf32>
    %cst_169 = arith.constant dense<0.000000e+00> : vector<12x256xf32>
    %227 = tpu.matmul %224, %226, %cst_169 {dimension_numbers = #tpu.dot_dimension_numbers<[1], [0], [0], [1], [0, 0, 1, 1], [], []>} : vector<12x128xf32>, vector<128x256xf32>, vector<12x256xf32> -> vector<12x256xf32>
    %228 = arith.addf %223, %227 : vector<12x256xf32>
    %c4_170 = arith.constant 4 : index
    %c0_171 = arith.constant 0 : index
    %229 = vector.load %arg21[%c4_170, %c0_171] : memref<17x128xf32, #tpu.memory_space<vmem>>, vector<12x128xf32>
    %c4_172 = arith.constant 4 : index
    %c0_173 = arith.constant 0 : index
    %c0_174 = arith.constant 0 : index
    %230 = vector.load %arg14[%c4_172, %c0_173, %c0_174] : memref<6x128x256xf32, #tpu.memory_space<vmem>>, vector<1x128x256xf32>
    %231 = vector.shape_cast %230 : vector<1x128x256xf32> to vector<128x256xf32>
    %cst_175 = arith.constant dense<0.000000e+00> : vector<12x256xf32>
    %232 = tpu.matmul %229, %231, %cst_175 {dimension_numbers = #tpu.dot_dimension_numbers<[1], [0], [0], [1], [0, 0, 1, 1], [], []>} : vector<12x128xf32>, vector<128x256xf32>, vector<12x256xf32> -> vector<12x256xf32>
    %233 = arith.addf %228, %232 : vector<12x256xf32>
    %c5_176 = arith.constant 5 : index
    %c0_177 = arith.constant 0 : index
    %234 = vector.load %arg21[%c5_176, %c0_177] : memref<17x128xf32, #tpu.memory_space<vmem>>, vector<12x128xf32>
    %c5_178 = arith.constant 5 : index
    %c0_179 = arith.constant 0 : index
    %c0_180 = arith.constant 0 : index
    %235 = vector.load %arg14[%c5_178, %c0_179, %c0_180] : memref<6x128x256xf32, #tpu.memory_space<vmem>>, vector<1x128x256xf32>
    %236 = vector.shape_cast %235 : vector<1x128x256xf32> to vector<128x256xf32>
    %cst_181 = arith.constant dense<0.000000e+00> : vector<12x256xf32>
    %237 = tpu.matmul %234, %236, %cst_181 {dimension_numbers = #tpu.dot_dimension_numbers<[1], [0], [0], [1], [0, 0, 1, 1], [], []>} : vector<12x128xf32>, vector<128x256xf32>, vector<12x256xf32> -> vector<12x256xf32>
    %238 = arith.addf %233, %237 : vector<12x256xf32>
    %239 = vector.broadcast %11 : vector<1x256xf32> to vector<12x256xf32>
    %240 = arith.addf %238, %239 : vector<12x256xf32>
    %cst_182 = arith.constant 0.000000e+00 : f32
    %241 = vector.broadcast %cst_182 : f32 to vector<12x256xf32>
    %242 = arith.maximumf %240, %241 : vector<12x256xf32>
    %243 = vector.broadcast %12 : vector<12x1xf32> to vector<12x256xf32>
    %244 = arith.mulf %242, %243 : vector<12x256xf32>
    %cst_183 = arith.constant dense<0.000000e+00> : vector<256xf32>
    %245 = vector.multi_reduction <add>, %244, %cst_183 [0] : vector<12x256xf32> to vector<256xf32>
    %246 = vector.shape_cast %245 : vector<256xf32> to vector<1x256xf32>
    %c0_184 = arith.constant 0 : index
    %c0_185 = arith.constant 0 : index
    %c0_186 = arith.constant 0 : index
    %247 = vector.load %arg17[%c0_184, %c0_185, %c0_186] : memref<3x256x6xf32, #tpu.memory_space<vmem>>, vector<1x256x6xf32>
    %248 = vector.shape_cast %247 : vector<1x256x6xf32> to vector<256x6xf32>
    %cst_187 = arith.constant dense<0.000000e+00> : vector<1x6xf32>
    %249 = tpu.matmul %246, %248, %cst_187 {dimension_numbers = #tpu.dot_dimension_numbers<[1], [0], [0], [1], [0, 0, 1, 1], [], []>} : vector<1x256xf32>, vector<256x6xf32>, vector<1x6xf32> -> vector<1x6xf32>
    %250 = arith.addf %18, %249 : vector<1x6xf32>
    %c0_188 = arith.constant 0 : index
    %c1_189 = arith.constant 1 : index
    %c0_190 = arith.constant 0 : index
    %c0_191 = arith.constant 0 : index
    %251 = vector.load %arg1[%c0_188, %c1_189, %c0_190, %c0_191] : memref<1x3x15x8xf32, #tpu.memory_space<vmem>>, vector<1x1x15x8xf32>
    %252 = vector.shape_cast %251 : vector<1x1x15x8xf32> to vector<15x8xf32>
    %cst_192 = arith.constant dense<0.000000e+00> : vector<15x64xf32>
    %253 = tpu.matmul %252, %0, %cst_192 {dimension_numbers = #tpu.dot_dimension_numbers<[1], [0], [0], [1], [0, 0, 1, 1], [], []>} : vector<15x8xf32>, vector<8x64xf32>, vector<15x64xf32> -> vector<15x64xf32>
    %254 = vector.broadcast %1 : vector<1x64xf32> to vector<15x64xf32>
    %255 = arith.addf %253, %254 : vector<15x64xf32>
    %cst_193 = arith.constant 0.000000e+00 : f32
    %256 = vector.broadcast %cst_193 : f32 to vector<15x64xf32>
    %257 = arith.maximumf %255, %256 : vector<15x64xf32>
    %cst_194 = arith.constant dense<0.000000e+00> : vector<15x128xf32>
    %258 = tpu.matmul %257, %2, %cst_194 {dimension_numbers = #tpu.dot_dimension_numbers<[1], [0], [0], [1], [0, 0, 1, 1], [], []>} : vector<15x64xf32>, vector<64x128xf32>, vector<15x128xf32> -> vector<15x128xf32>
    %259 = vector.broadcast %3 : vector<1x128xf32> to vector<15x128xf32>
    %260 = arith.addf %258, %259 : vector<15x128xf32>
    %cst_195 = arith.constant 0.000000e+00 : f32
    %261 = vector.broadcast %cst_195 : f32 to vector<15x128xf32>
    %262 = arith.maximumf %260, %261 : vector<15x128xf32>
    %c15_196 = arith.constant 15 : index
    %c0_197 = arith.constant 0 : index
    %263 = vector.load %arg20[%c15_196, %c0_197] : memref<45x128xf32, #tpu.memory_space<vmem>>, vector<15x128xf32>
    tpu.vector_store %arg20[%c15_196, %c0_197], %262 {strides = array<i32>} : memref<45x128xf32, #tpu.memory_space<vmem>>, vector<15x128xf32>,
    %cst_198 = arith.constant 0.000000e+00 : f32
    %264 = vector.broadcast %cst_198 : f32 to vector<15x128xf32>
    %c0_199 = arith.constant 0 : index
    %c0_200 = arith.constant 0 : index
    %265 = vector.load %arg20[%c0_199, %c0_200] : memref<45x128xf32, #tpu.memory_space<vmem>>, vector<15x128xf32>
    %c0_201 = arith.constant 0 : index
    %c0_202 = arith.constant 0 : index
    %266 = vector.load %arg6[%c0_201, %c0_202] : memref<31x128xf32, #tpu.memory_space<vmem>>, vector<1x128xf32>
    %267 = vector.broadcast %266 : vector<1x128xf32> to vector<15x128xf32>
    %268 = arith.mulf %265, %267 : vector<15x128xf32>
    %269 = arith.addf %264, %268 : vector<15x128xf32>
    %c1_203 = arith.constant 1 : index
    %c0_204 = arith.constant 0 : index
    %270 = vector.load %arg20[%c1_203, %c0_204] : memref<45x128xf32, #tpu.memory_space<vmem>>, vector<15x128xf32>
    %c1_205 = arith.constant 1 : index
    %c0_206 = arith.constant 0 : index
    %271 = vector.load %arg6[%c1_205, %c0_206] : memref<31x128xf32, #tpu.memory_space<vmem>>, vector<1x128xf32>
    %272 = vector.broadcast %271 : vector<1x128xf32> to vector<15x128xf32>
    %273 = arith.mulf %270, %272 : vector<15x128xf32>
    %274 = arith.addf %269, %273 : vector<15x128xf32>
    %c2_207 = arith.constant 2 : index
    %c0_208 = arith.constant 0 : index
    %275 = vector.load %arg20[%c2_207, %c0_208] : memref<45x128xf32, #tpu.memory_space<vmem>>, vector<15x128xf32>
    %c2_209 = arith.constant 2 : index
    %c0_210 = arith.constant 0 : index
    %276 = vector.load %arg6[%c2_209, %c0_210] : memref<31x128xf32, #tpu.memory_space<vmem>>, vector<1x128xf32>
    %277 = vector.broadcast %276 : vector<1x128xf32> to vector<15x128xf32>
    %278 = arith.mulf %275, %277 : vector<15x128xf32>
    %279 = arith.addf %274, %278 : vector<15x128xf32>
    %c3_211 = arith.constant 3 : index
    %c0_212 = arith.constant 0 : index
    %280 = vector.load %arg20[%c3_211, %c0_212] : memref<45x128xf32, #tpu.memory_space<vmem>>, vector<15x128xf32>
    %c3_213 = arith.constant 3 : index
    %c0_214 = arith.constant 0 : index
    %281 = vector.load %arg6[%c3_213, %c0_214] : memref<31x128xf32, #tpu.memory_space<vmem>>, vector<1x128xf32>
    %282 = vector.broadcast %281 : vector<1x128xf32> to vector<15x128xf32>
    %283 = arith.mulf %280, %282 : vector<15x128xf32>
    %284 = arith.addf %279, %283 : vector<15x128xf32>
    %c4_215 = arith.constant 4 : index
    %c0_216 = arith.constant 0 : index
    %285 = vector.load %arg20[%c4_215, %c0_216] : memref<45x128xf32, #tpu.memory_space<vmem>>, vector<15x128xf32>
    %c4_217 = arith.constant 4 : index
    %c0_218 = arith.constant 0 : index
    %286 = vector.load %arg6[%c4_217, %c0_218] : memref<31x128xf32, #tpu.memory_space<vmem>>, vector<1x128xf32>
    %287 = vector.broadcast %286 : vector<1x128xf32> to vector<15x128xf32>
    %288 = arith.mulf %285, %287 : vector<15x128xf32>
    %289 = arith.addf %284, %288 : vector<15x128xf32>
    %c5_219 = arith.constant 5 : index
    %c0_220 = arith.constant 0 : index
    %290 = vector.load %arg20[%c5_219, %c0_220] : memref<45x128xf32, #tpu.memory_space<vmem>>, vector<15x128xf32>
    %c5_221 = arith.constant 5 : index
    %c0_222 = arith.constant 0 : index
    %291 = vector.load %arg6[%c5_221, %c0_222] : memref<31x128xf32, #tpu.memory_space<vmem>>, vector<1x128xf32>
    %292 = vector.broadcast %291 : vector<1x128xf32> to vector<15x128xf32>
    %293 = arith.mulf %290, %292 : vector<15x128xf32>
    %294 = arith.addf %289, %293 : vector<15x128xf32>
    %c6_223 = arith.constant 6 : index
    %c0_224 = arith.constant 0 : index
    %295 = vector.load %arg20[%c6_223, %c0_224] : memref<45x128xf32, #tpu.memory_space<vmem>>, vector<15x128xf32>
    %c6_225 = arith.constant 6 : index
    %c0_226 = arith.constant 0 : index
    %296 = vector.load %arg6[%c6_225, %c0_226] : memref<31x128xf32, #tpu.memory_space<vmem>>, vector<1x128xf32>
    %297 = vector.broadcast %296 : vector<1x128xf32> to vector<15x128xf32>
    %298 = arith.mulf %295, %297 : vector<15x128xf32>
    %299 = arith.addf %294, %298 : vector<15x128xf32>
    %c7_227 = arith.constant 7 : index
    %c0_228 = arith.constant 0 : index
    %300 = vector.load %arg20[%c7_227, %c0_228] : memref<45x128xf32, #tpu.memory_space<vmem>>, vector<15x128xf32>
    %c7_229 = arith.constant 7 : index
    %c0_230 = arith.constant 0 : index
    %301 = vector.load %arg6[%c7_229, %c0_230] : memref<31x128xf32, #tpu.memory_space<vmem>>, vector<1x128xf32>
    %302 = vector.broadcast %301 : vector<1x128xf32> to vector<15x128xf32>
    %303 = arith.mulf %300, %302 : vector<15x128xf32>
    %304 = arith.addf %299, %303 : vector<15x128xf32>
    %c8_231 = arith.constant 8 : index
    %c0_232 = arith.constant 0 : index
    %305 = vector.load %arg20[%c8_231, %c0_232] : memref<45x128xf32, #tpu.memory_space<vmem>>, vector<15x128xf32>
    %c8_233 = arith.constant 8 : index
    %c0_234 = arith.constant 0 : index
    %306 = vector.load %arg6[%c8_233, %c0_234] : memref<31x128xf32, #tpu.memory_space<vmem>>, vector<1x128xf32>
    %307 = vector.broadcast %306 : vector<1x128xf32> to vector<15x128xf32>
    %308 = arith.mulf %305, %307 : vector<15x128xf32>
    %309 = arith.addf %304, %308 : vector<15x128xf32>
    %c9_235 = arith.constant 9 : index
    %c0_236 = arith.constant 0 : index
    %310 = vector.load %arg20[%c9_235, %c0_236] : memref<45x128xf32, #tpu.memory_space<vmem>>, vector<15x128xf32>
    %c9_237 = arith.constant 9 : index
    %c0_238 = arith.constant 0 : index
    %311 = vector.load %arg6[%c9_237, %c0_238] : memref<31x128xf32, #tpu.memory_space<vmem>>, vector<1x128xf32>
    %312 = vector.broadcast %311 : vector<1x128xf32> to vector<15x128xf32>
    %313 = arith.mulf %310, %312 : vector<15x128xf32>
    %314 = arith.addf %309, %313 : vector<15x128xf32>
    %c10_239 = arith.constant 10 : index
    %c0_240 = arith.constant 0 : index
    %315 = vector.load %arg20[%c10_239, %c0_240] : memref<45x128xf32, #tpu.memory_space<vmem>>, vector<15x128xf32>
    %c10_241 = arith.constant 10 : index
    %c0_242 = arith.constant 0 : index
    %316 = vector.load %arg6[%c10_241, %c0_242] : memref<31x128xf32, #tpu.memory_space<vmem>>, vector<1x128xf32>
    %317 = vector.broadcast %316 : vector<1x128xf32> to vector<15x128xf32>
    %318 = arith.mulf %315, %317 : vector<15x128xf32>
    %319 = arith.addf %314, %318 : vector<15x128xf32>
    %c11_243 = arith.constant 11 : index
    %c0_244 = arith.constant 0 : index
    %320 = vector.load %arg20[%c11_243, %c0_244] : memref<45x128xf32, #tpu.memory_space<vmem>>, vector<15x128xf32>
    %c11_245 = arith.constant 11 : index
    %c0_246 = arith.constant 0 : index
    %321 = vector.load %arg6[%c11_245, %c0_246] : memref<31x128xf32, #tpu.memory_space<vmem>>, vector<1x128xf32>
    %322 = vector.broadcast %321 : vector<1x128xf32> to vector<15x128xf32>
    %323 = arith.mulf %320, %322 : vector<15x128xf32>
    %324 = arith.addf %319, %323 : vector<15x128xf32>
    %c12_247 = arith.constant 12 : index
    %c0_248 = arith.constant 0 : index
    %325 = vector.load %arg20[%c12_247, %c0_248] : memref<45x128xf32, #tpu.memory_space<vmem>>, vector<15x128xf32>
    %c12_249 = arith.constant 12 : index
    %c0_250 = arith.constant 0 : index
    %326 = vector.load %arg6[%c12_249, %c0_250] : memref<31x128xf32, #tpu.memory_space<vmem>>, vector<1x128xf32>
    %327 = vector.broadcast %326 : vector<1x128xf32> to vector<15x128xf32>
    %328 = arith.mulf %325, %327 : vector<15x128xf32>
    %329 = arith.addf %324, %328 : vector<15x128xf32>
    %c13_251 = arith.constant 13 : index
    %c0_252 = arith.constant 0 : index
    %330 = vector.load %arg20[%c13_251, %c0_252] : memref<45x128xf32, #tpu.memory_space<vmem>>, vector<15x128xf32>
    %c13_253 = arith.constant 13 : index
    %c0_254 = arith.constant 0 : index
    %331 = vector.load %arg6[%c13_253, %c0_254] : memref<31x128xf32, #tpu.memory_space<vmem>>, vector<1x128xf32>
    %332 = vector.broadcast %331 : vector<1x128xf32> to vector<15x128xf32>
    %333 = arith.mulf %330, %332 : vector<15x128xf32>
    %334 = arith.addf %329, %333 : vector<15x128xf32>
    %c14_255 = arith.constant 14 : index
    %c0_256 = arith.constant 0 : index
    %335 = vector.load %arg20[%c14_255, %c0_256] : memref<45x128xf32, #tpu.memory_space<vmem>>, vector<15x128xf32>
    %c14_257 = arith.constant 14 : index
    %c0_258 = arith.constant 0 : index
    %336 = vector.load %arg6[%c14_257, %c0_258] : memref<31x128xf32, #tpu.memory_space<vmem>>, vector<1x128xf32>
    %337 = vector.broadcast %336 : vector<1x128xf32> to vector<15x128xf32>
    %338 = arith.mulf %335, %337 : vector<15x128xf32>
    %339 = arith.addf %334, %338 : vector<15x128xf32>
    %c15_259 = arith.constant 15 : index
    %c0_260 = arith.constant 0 : index
    %340 = vector.load %arg20[%c15_259, %c0_260] : memref<45x128xf32, #tpu.memory_space<vmem>>, vector<15x128xf32>
    %c15_261 = arith.constant 15 : index
    %c0_262 = arith.constant 0 : index
    %341 = vector.load %arg6[%c15_261, %c0_262] : memref<31x128xf32, #tpu.memory_space<vmem>>, vector<1x128xf32>
    %342 = vector.broadcast %341 : vector<1x128xf32> to vector<15x128xf32>
    %343 = arith.mulf %340, %342 : vector<15x128xf32>
    %344 = arith.addf %339, %343 : vector<15x128xf32>
    %c16_263 = arith.constant 16 : index
    %c0_264 = arith.constant 0 : index
    %345 = vector.load %arg20[%c16_263, %c0_264] : memref<45x128xf32, #tpu.memory_space<vmem>>, vector<15x128xf32>
    %c16_265 = arith.constant 16 : index
    %c0_266 = arith.constant 0 : index
    %346 = vector.load %arg6[%c16_265, %c0_266] : memref<31x128xf32, #tpu.memory_space<vmem>>, vector<1x128xf32>
    %347 = vector.broadcast %346 : vector<1x128xf32> to vector<15x128xf32>
    %348 = arith.mulf %345, %347 : vector<15x128xf32>
    %349 = arith.addf %344, %348 : vector<15x128xf32>
    %c17_267 = arith.constant 17 : index
    %c0_268 = arith.constant 0 : index
    %350 = vector.load %arg20[%c17_267, %c0_268] : memref<45x128xf32, #tpu.memory_space<vmem>>, vector<15x128xf32>
    %c17_269 = arith.constant 17 : index
    %c0_270 = arith.constant 0 : index
    %351 = vector.load %arg6[%c17_269, %c0_270] : memref<31x128xf32, #tpu.memory_space<vmem>>, vector<1x128xf32>
    %352 = vector.broadcast %351 : vector<1x128xf32> to vector<15x128xf32>
    %353 = arith.mulf %350, %352 : vector<15x128xf32>
    %354 = arith.addf %349, %353 : vector<15x128xf32>
    %c18_271 = arith.constant 18 : index
    %c0_272 = arith.constant 0 : index
    %355 = vector.load %arg20[%c18_271, %c0_272] : memref<45x128xf32, #tpu.memory_space<vmem>>, vector<15x128xf32>
    %c18_273 = arith.constant 18 : index
    %c0_274 = arith.constant 0 : index
    %356 = vector.load %arg6[%c18_273, %c0_274] : memref<31x128xf32, #tpu.memory_space<vmem>>, vector<1x128xf32>
    %357 = vector.broadcast %356 : vector<1x128xf32> to vector<15x128xf32>
    %358 = arith.mulf %355, %357 : vector<15x128xf32>
    %359 = arith.addf %354, %358 : vector<15x128xf32>
    %c19_275 = arith.constant 19 : index
    %c0_276 = arith.constant 0 : index
    %360 = vector.load %arg20[%c19_275, %c0_276] : memref<45x128xf32, #tpu.memory_space<vmem>>, vector<15x128xf32>
    %c19_277 = arith.constant 19 : index
    %c0_278 = arith.constant 0 : index
    %361 = vector.load %arg6[%c19_277, %c0_278] : memref<31x128xf32, #tpu.memory_space<vmem>>, vector<1x128xf32>
    %362 = vector.broadcast %361 : vector<1x128xf32> to vector<15x128xf32>
    %363 = arith.mulf %360, %362 : vector<15x128xf32>
    %364 = arith.addf %359, %363 : vector<15x128xf32>
    %c20_279 = arith.constant 20 : index
    %c0_280 = arith.constant 0 : index
    %365 = vector.load %arg20[%c20_279, %c0_280] : memref<45x128xf32, #tpu.memory_space<vmem>>, vector<15x128xf32>
    %c20_281 = arith.constant 20 : index
    %c0_282 = arith.constant 0 : index
    %366 = vector.load %arg6[%c20_281, %c0_282] : memref<31x128xf32, #tpu.memory_space<vmem>>, vector<1x128xf32>
    %367 = vector.broadcast %366 : vector<1x128xf32> to vector<15x128xf32>
    %368 = arith.mulf %365, %367 : vector<15x128xf32>
    %369 = arith.addf %364, %368 : vector<15x128xf32>
    %c21_283 = arith.constant 21 : index
    %c0_284 = arith.constant 0 : index
    %370 = vector.load %arg20[%c21_283, %c0_284] : memref<45x128xf32, #tpu.memory_space<vmem>>, vector<15x128xf32>
    %c21_285 = arith.constant 21 : index
    %c0_286 = arith.constant 0 : index
    %371 = vector.load %arg6[%c21_285, %c0_286] : memref<31x128xf32, #tpu.memory_space<vmem>>, vector<1x128xf32>
    %372 = vector.broadcast %371 : vector<1x128xf32> to vector<15x128xf32>
    %373 = arith.mulf %370, %372 : vector<15x128xf32>
    %374 = arith.addf %369, %373 : vector<15x128xf32>
    %c22_287 = arith.constant 22 : index
    %c0_288 = arith.constant 0 : index
    %375 = vector.load %arg20[%c22_287, %c0_288] : memref<45x128xf32, #tpu.memory_space<vmem>>, vector<15x128xf32>
    %c22_289 = arith.constant 22 : index
    %c0_290 = arith.constant 0 : index
    %376 = vector.load %arg6[%c22_289, %c0_290] : memref<31x128xf32, #tpu.memory_space<vmem>>, vector<1x128xf32>
    %377 = vector.broadcast %376 : vector<1x128xf32> to vector<15x128xf32>
    %378 = arith.mulf %375, %377 : vector<15x128xf32>
    %379 = arith.addf %374, %378 : vector<15x128xf32>
    %c23_291 = arith.constant 23 : index
    %c0_292 = arith.constant 0 : index
    %380 = vector.load %arg20[%c23_291, %c0_292] : memref<45x128xf32, #tpu.memory_space<vmem>>, vector<15x128xf32>
    %c23_293 = arith.constant 23 : index
    %c0_294 = arith.constant 0 : index
    %381 = vector.load %arg6[%c23_293, %c0_294] : memref<31x128xf32, #tpu.memory_space<vmem>>, vector<1x128xf32>
    %382 = vector.broadcast %381 : vector<1x128xf32> to vector<15x128xf32>
    %383 = arith.mulf %380, %382 : vector<15x128xf32>
    %384 = arith.addf %379, %383 : vector<15x128xf32>
    %c24_295 = arith.constant 24 : index
    %c0_296 = arith.constant 0 : index
    %385 = vector.load %arg20[%c24_295, %c0_296] : memref<45x128xf32, #tpu.memory_space<vmem>>, vector<15x128xf32>
    %c24_297 = arith.constant 24 : index
    %c0_298 = arith.constant 0 : index
    %386 = vector.load %arg6[%c24_297, %c0_298] : memref<31x128xf32, #tpu.memory_space<vmem>>, vector<1x128xf32>
    %387 = vector.broadcast %386 : vector<1x128xf32> to vector<15x128xf32>
    %388 = arith.mulf %385, %387 : vector<15x128xf32>
    %389 = arith.addf %384, %388 : vector<15x128xf32>
    %c25_299 = arith.constant 25 : index
    %c0_300 = arith.constant 0 : index
    %390 = vector.load %arg20[%c25_299, %c0_300] : memref<45x128xf32, #tpu.memory_space<vmem>>, vector<15x128xf32>
    %c25_301 = arith.constant 25 : index
    %c0_302 = arith.constant 0 : index
    %391 = vector.load %arg6[%c25_301, %c0_302] : memref<31x128xf32, #tpu.memory_space<vmem>>, vector<1x128xf32>
    %392 = vector.broadcast %391 : vector<1x128xf32> to vector<15x128xf32>
    %393 = arith.mulf %390, %392 : vector<15x128xf32>
    %394 = arith.addf %389, %393 : vector<15x128xf32>
    %c26_303 = arith.constant 26 : index
    %c0_304 = arith.constant 0 : index
    %395 = vector.load %arg20[%c26_303, %c0_304] : memref<45x128xf32, #tpu.memory_space<vmem>>, vector<15x128xf32>
    %c26_305 = arith.constant 26 : index
    %c0_306 = arith.constant 0 : index
    %396 = vector.load %arg6[%c26_305, %c0_306] : memref<31x128xf32, #tpu.memory_space<vmem>>, vector<1x128xf32>
    %397 = vector.broadcast %396 : vector<1x128xf32> to vector<15x128xf32>
    %398 = arith.mulf %395, %397 : vector<15x128xf32>
    %399 = arith.addf %394, %398 : vector<15x128xf32>
    %c27_307 = arith.constant 27 : index
    %c0_308 = arith.constant 0 : index
    %400 = vector.load %arg20[%c27_307, %c0_308] : memref<45x128xf32, #tpu.memory_space<vmem>>, vector<15x128xf32>
    %c27_309 = arith.constant 27 : index
    %c0_310 = arith.constant 0 : index
    %401 = vector.load %arg6[%c27_309, %c0_310] : memref<31x128xf32, #tpu.memory_space<vmem>>, vector<1x128xf32>
    %402 = vector.broadcast %401 : vector<1x128xf32> to vector<15x128xf32>
    %403 = arith.mulf %400, %402 : vector<15x128xf32>
    %404 = arith.addf %399, %403 : vector<15x128xf32>
    %c28_311 = arith.constant 28 : index
    %c0_312 = arith.constant 0 : index
    %405 = vector.load %arg20[%c28_311, %c0_312] : memref<45x128xf32, #tpu.memory_space<vmem>>, vector<15x128xf32>
    %c28_313 = arith.constant 28 : index
    %c0_314 = arith.constant 0 : index
    %406 = vector.load %arg6[%c28_313, %c0_314] : memref<31x128xf32, #tpu.memory_space<vmem>>, vector<1x128xf32>
    %407 = vector.broadcast %406 : vector<1x128xf32> to vector<15x128xf32>
    %408 = arith.mulf %405, %407 : vector<15x128xf32>
    %409 = arith.addf %404, %408 : vector<15x128xf32>
    %c29_315 = arith.constant 29 : index
    %c0_316 = arith.constant 0 : index
    %410 = vector.load %arg20[%c29_315, %c0_316] : memref<45x128xf32, #tpu.memory_space<vmem>>, vector<15x128xf32>
    %c29_317 = arith.constant 29 : index
    %c0_318 = arith.constant 0 : index
    %411 = vector.load %arg6[%c29_317, %c0_318] : memref<31x128xf32, #tpu.memory_space<vmem>>, vector<1x128xf32>
    %412 = vector.broadcast %411 : vector<1x128xf32> to vector<15x128xf32>
    %413 = arith.mulf %410, %412 : vector<15x128xf32>
    %414 = arith.addf %409, %413 : vector<15x128xf32>
    %c30_319 = arith.constant 30 : index
    %c0_320 = arith.constant 0 : index
    %415 = vector.load %arg20[%c30_319, %c0_320] : memref<45x128xf32, #tpu.memory_space<vmem>>, vector<15x128xf32>
    %c30_321 = arith.constant 30 : index
    %c0_322 = arith.constant 0 : index
    %416 = vector.load %arg6[%c30_321, %c0_322] : memref<31x128xf32, #tpu.memory_space<vmem>>, vector<1x128xf32>
    %417 = vector.broadcast %416 : vector<1x128xf32> to vector<15x128xf32>
    %418 = arith.mulf %415, %417 : vector<15x128xf32>
    %419 = arith.addf %414, %418 : vector<15x128xf32>
    %420 = vector.broadcast %4 : vector<1x128xf32> to vector<15x128xf32>
    %421 = arith.addf %419, %420 : vector<15x128xf32>
    %cst_323 = arith.constant 0.000000e+00 : f32
    %422 = vector.broadcast %cst_323 : f32 to vector<15x128xf32>
    %423 = arith.maximumf %421, %422 : vector<15x128xf32>
    %cst_324 = arith.constant dense<0.000000e+00> : vector<15x128xf32>
    %424 = tpu.matmul %423, %5, %cst_324 {dimension_numbers = #tpu.dot_dimension_numbers<[1], [0], [0], [1], [0, 0, 1, 1], [], []>} : vector<15x128xf32>, vector<128x128xf32>, vector<15x128xf32> -> vector<15x128xf32>
    %425 = vector.broadcast %6 : vector<1x128xf32> to vector<15x128xf32>
    %426 = arith.addf %424, %425 : vector<15x128xf32>
    %cst_325 = arith.constant dense<0.000000e+00> : vector<15x128xf32>
    %427 = tpu.matmul %257, %7, %cst_325 {dimension_numbers = #tpu.dot_dimension_numbers<[1], [0], [0], [1], [0, 0, 1, 1], [], []>} : vector<15x64xf32>, vector<64x128xf32>, vector<15x128xf32> -> vector<15x128xf32>
    %428 = vector.broadcast %8 : vector<1x128xf32> to vector<15x128xf32>
    %429 = arith.addf %427, %428 : vector<15x128xf32>
    %cst_326 = arith.constant 0.000000e+00 : f32
    %430 = vector.broadcast %cst_326 : f32 to vector<15x128xf32>
    %431 = arith.maximumf %429, %430 : vector<15x128xf32>
    %432 = arith.addf %431, %426 : vector<15x128xf32>
    %433 = vector.broadcast %9 : vector<1x128xf32> to vector<15x128xf32>
    %434 = arith.mulf %432, %433 : vector<15x128xf32>
    %435 = vector.broadcast %10 : vector<1x128xf32> to vector<15x128xf32>
    %436 = arith.addf %434, %435 : vector<15x128xf32>
    %cst_327 = arith.constant 0.000000e+00 : f32
    %437 = vector.broadcast %cst_327 : f32 to vector<15x128xf32>
    %438 = arith.maximumf %436, %437 : vector<15x128xf32>
    %c1_328 = arith.constant 1 : index
    %c0_329 = arith.constant 0 : index
    %439 = vector.load %arg21[%c1_328, %c0_329] : memref<17x128xf32, #tpu.memory_space<vmem>>, vector<15x128xf32>
    tpu.vector_store %arg21[%c1_328, %c0_329], %438 {strides = array<i32>} : memref<17x128xf32, #tpu.memory_space<vmem>>, vector<15x128xf32>,
    %cst_330 = arith.constant 0.000000e+00 : f32
    %440 = vector.broadcast %cst_330 : f32 to vector<12x256xf32>
    %c0_331 = arith.constant 0 : index
    %c0_332 = arith.constant 0 : index
    %441 = vector.load %arg21[%c0_331, %c0_332] : memref<17x128xf32, #tpu.memory_space<vmem>>, vector<12x128xf32>
    %c0_333 = arith.constant 0 : index
    %c0_334 = arith.constant 0 : index
    %c0_335 = arith.constant 0 : index
    %442 = vector.load %arg14[%c0_333, %c0_334, %c0_335] : memref<6x128x256xf32, #tpu.memory_space<vmem>>, vector<1x128x256xf32>
    %443 = vector.shape_cast %442 : vector<1x128x256xf32> to vector<128x256xf32>
    %cst_336 = arith.constant dense<0.000000e+00> : vector<12x256xf32>
    %444 = tpu.matmul %441, %443, %cst_336 {dimension_numbers = #tpu.dot_dimension_numbers<[1], [0], [0], [1], [0, 0, 1, 1], [], []>} : vector<12x128xf32>, vector<128x256xf32>, vector<12x256xf32> -> vector<12x256xf32>
    %445 = arith.addf %440, %444 : vector<12x256xf32>
    %c1_337 = arith.constant 1 : index
    %c0_338 = arith.constant 0 : index
    %446 = vector.load %arg21[%c1_337, %c0_338] : memref<17x128xf32, #tpu.memory_space<vmem>>, vector<12x128xf32>
    %c1_339 = arith.constant 1 : index
    %c0_340 = arith.constant 0 : index
    %c0_341 = arith.constant 0 : index
    %447 = vector.load %arg14[%c1_339, %c0_340, %c0_341] : memref<6x128x256xf32, #tpu.memory_space<vmem>>, vector<1x128x256xf32>
    %448 = vector.shape_cast %447 : vector<1x128x256xf32> to vector<128x256xf32>
    %cst_342 = arith.constant dense<0.000000e+00> : vector<12x256xf32>
    %449 = tpu.matmul %446, %448, %cst_342 {dimension_numbers = #tpu.dot_dimension_numbers<[1], [0], [0], [1], [0, 0, 1, 1], [], []>} : vector<12x128xf32>, vector<128x256xf32>, vector<12x256xf32> -> vector<12x256xf32>
    %450 = arith.addf %445, %449 : vector<12x256xf32>
    %c2_343 = arith.constant 2 : index
    %c0_344 = arith.constant 0 : index
    %451 = vector.load %arg21[%c2_343, %c0_344] : memref<17x128xf32, #tpu.memory_space<vmem>>, vector<12x128xf32>
    %c2_345 = arith.constant 2 : index
    %c0_346 = arith.constant 0 : index
    %c0_347 = arith.constant 0 : index
    %452 = vector.load %arg14[%c2_345, %c0_346, %c0_347] : memref<6x128x256xf32, #tpu.memory_space<vmem>>, vector<1x128x256xf32>
    %453 = vector.shape_cast %452 : vector<1x128x256xf32> to vector<128x256xf32>
    %cst_348 = arith.constant dense<0.000000e+00> : vector<12x256xf32>
    %454 = tpu.matmul %451, %453, %cst_348 {dimension_numbers = #tpu.dot_dimension_numbers<[1], [0], [0], [1], [0, 0, 1, 1], [], []>} : vector<12x128xf32>, vector<128x256xf32>, vector<12x256xf32> -> vector<12x256xf32>
    %455 = arith.addf %450, %454 : vector<12x256xf32>
    %c3_349 = arith.constant 3 : index
    %c0_350 = arith.constant 0 : index
    %456 = vector.load %arg21[%c3_349, %c0_350] : memref<17x128xf32, #tpu.memory_space<vmem>>, vector<12x128xf32>
    %c3_351 = arith.constant 3 : index
    %c0_352 = arith.constant 0 : index
    %c0_353 = arith.constant 0 : index
    %457 = vector.load %arg14[%c3_351, %c0_352, %c0_353] : memref<6x128x256xf32, #tpu.memory_space<vmem>>, vector<1x128x256xf32>
    %458 = vector.shape_cast %457 : vector<1x128x256xf32> to vector<128x256xf32>
    %cst_354 = arith.constant dense<0.000000e+00> : vector<12x256xf32>
    %459 = tpu.matmul %456, %458, %cst_354 {dimension_numbers = #tpu.dot_dimension_numbers<[1], [0], [0], [1], [0, 0, 1, 1], [], []>} : vector<12x128xf32>, vector<128x256xf32>, vector<12x256xf32> -> vector<12x256xf32>
    %460 = arith.addf %455, %459 : vector<12x256xf32>
    %c4_355 = arith.constant 4 : index
    %c0_356 = arith.constant 0 : index
    %461 = vector.load %arg21[%c4_355, %c0_356] : memref<17x128xf32, #tpu.memory_space<vmem>>, vector<12x128xf32>
    %c4_357 = arith.constant 4 : index
    %c0_358 = arith.constant 0 : index
    %c0_359 = arith.constant 0 : index
    %462 = vector.load %arg14[%c4_357, %c0_358, %c0_359] : memref<6x128x256xf32, #tpu.memory_space<vmem>>, vector<1x128x256xf32>
    %463 = vector.shape_cast %462 : vector<1x128x256xf32> to vector<128x256xf32>
    %cst_360 = arith.constant dense<0.000000e+00> : vector<12x256xf32>
    %464 = tpu.matmul %461, %463, %cst_360 {dimension_numbers = #tpu.dot_dimension_numbers<[1], [0], [0], [1], [0, 0, 1, 1], [], []>} : vector<12x128xf32>, vector<128x256xf32>, vector<12x256xf32> -> vector<12x256xf32>
    %465 = arith.addf %460, %464 : vector<12x256xf32>
    %c5_361 = arith.constant 5 : index
    %c0_362 = arith.constant 0 : index
    %466 = vector.load %arg21[%c5_361, %c0_362] : memref<17x128xf32, #tpu.memory_space<vmem>>, vector<12x128xf32>
    %c5_363 = arith.constant 5 : index
    %c0_364 = arith.constant 0 : index
    %c0_365 = arith.constant 0 : index
    %467 = vector.load %arg14[%c5_363, %c0_364, %c0_365] : memref<6x128x256xf32, #tpu.memory_space<vmem>>, vector<1x128x256xf32>
    %468 = vector.shape_cast %467 : vector<1x128x256xf32> to vector<128x256xf32>
    %cst_366 = arith.constant dense<0.000000e+00> : vector<12x256xf32>
    %469 = tpu.matmul %466, %468, %cst_366 {dimension_numbers = #tpu.dot_dimension_numbers<[1], [0], [0], [1], [0, 0, 1, 1], [], []>} : vector<12x128xf32>, vector<128x256xf32>, vector<12x256xf32> -> vector<12x256xf32>
    %470 = arith.addf %465, %469 : vector<12x256xf32>
    %471 = vector.broadcast %11 : vector<1x256xf32> to vector<12x256xf32>
    %472 = arith.addf %470, %471 : vector<12x256xf32>
    %cst_367 = arith.constant 0.000000e+00 : f32
    %473 = vector.broadcast %cst_367 : f32 to vector<12x256xf32>
    %474 = arith.maximumf %472, %473 : vector<12x256xf32>
    %475 = vector.broadcast %12 : vector<12x1xf32> to vector<12x256xf32>
    %476 = arith.mulf %474, %475 : vector<12x256xf32>
    %cst_368 = arith.constant dense<0.000000e+00> : vector<256xf32>
    %477 = vector.multi_reduction <add>, %476, %cst_368 [0] : vector<12x256xf32> to vector<256xf32>
    %478 = vector.shape_cast %477 : vector<256xf32> to vector<1x256xf32>
    %c1_369 = arith.constant 1 : index
    %c0_370 = arith.constant 0 : index
    %c0_371 = arith.constant 0 : index
    %479 = vector.load %arg17[%c1_369, %c0_370, %c0_371] : memref<3x256x6xf32, #tpu.memory_space<vmem>>, vector<1x256x6xf32>
    %480 = vector.shape_cast %479 : vector<1x256x6xf32> to vector<256x6xf32>
    %cst_372 = arith.constant dense<0.000000e+00> : vector<1x6xf32>
    %481 = tpu.matmul %478, %480, %cst_372 {dimension_numbers = #tpu.dot_dimension_numbers<[1], [0], [0], [1], [0, 0, 1, 1], [], []>} : vector<1x256xf32>, vector<256x6xf32>, vector<1x6xf32> -> vector<1x6xf32>
    %482 = arith.addf %250, %481 : vector<1x6xf32>
    %c0_373 = arith.constant 0 : index
    %c2_374 = arith.constant 2 : index
    %c0_375 = arith.constant 0 : index
    %c0_376 = arith.constant 0 : index
    %483 = vector.load %arg1[%c0_373, %c2_374, %c0_375, %c0_376] : memref<1x3x15x8xf32, #tpu.memory_space<vmem>>, vector<1x1x15x8xf32>
    %484 = vector.shape_cast %483 : vector<1x1x15x8xf32> to vector<15x8xf32>
    %cst_377 = arith.constant dense<0.000000e+00> : vector<15x64xf32>
    %485 = tpu.matmul %484, %0, %cst_377 {dimension_numbers = #tpu.dot_dimension_numbers<[1], [0], [0], [1], [0, 0, 1, 1], [], []>} : vector<15x8xf32>, vector<8x64xf32>, vector<15x64xf32> -> vector<15x64xf32>
    %486 = vector.broadcast %1 : vector<1x64xf32> to vector<15x64xf32>
    %487 = arith.addf %485, %486 : vector<15x64xf32>
    %cst_378 = arith.constant 0.000000e+00 : f32
    %488 = vector.broadcast %cst_378 : f32 to vector<15x64xf32>
    %489 = arith.maximumf %487, %488 : vector<15x64xf32>
    %cst_379 = arith.constant dense<0.000000e+00> : vector<15x128xf32>
    %490 = tpu.matmul %489, %2, %cst_379 {dimension_numbers = #tpu.dot_dimension_numbers<[1], [0], [0], [1], [0, 0, 1, 1], [], []>} : vector<15x64xf32>, vector<64x128xf32>, vector<15x128xf32> -> vector<15x128xf32>
    %491 = vector.broadcast %3 : vector<1x128xf32> to vector<15x128xf32>
    %492 = arith.addf %490, %491 : vector<15x128xf32>
    %cst_380 = arith.constant 0.000000e+00 : f32
    %493 = vector.broadcast %cst_380 : f32 to vector<15x128xf32>
    %494 = arith.maximumf %492, %493 : vector<15x128xf32>
    %c15_381 = arith.constant 15 : index
    %c0_382 = arith.constant 0 : index
    %495 = vector.load %arg20[%c15_381, %c0_382] : memref<45x128xf32, #tpu.memory_space<vmem>>, vector<15x128xf32>
    tpu.vector_store %arg20[%c15_381, %c0_382], %494 {strides = array<i32>} : memref<45x128xf32, #tpu.memory_space<vmem>>, vector<15x128xf32>,
    %cst_383 = arith.constant 0.000000e+00 : f32
    %496 = vector.broadcast %cst_383 : f32 to vector<15x128xf32>
    %c0_384 = arith.constant 0 : index
    %c0_385 = arith.constant 0 : index
    %497 = vector.load %arg20[%c0_384, %c0_385] : memref<45x128xf32, #tpu.memory_space<vmem>>, vector<15x128xf32>
    %c0_386 = arith.constant 0 : index
    %c0_387 = arith.constant 0 : index
    %498 = vector.load %arg6[%c0_386, %c0_387] : memref<31x128xf32, #tpu.memory_space<vmem>>, vector<1x128xf32>
    %499 = vector.broadcast %498 : vector<1x128xf32> to vector<15x128xf32>
    %500 = arith.mulf %497, %499 : vector<15x128xf32>
    %501 = arith.addf %496, %500 : vector<15x128xf32>
    %c1_388 = arith.constant 1 : index
    %c0_389 = arith.constant 0 : index
    %502 = vector.load %arg20[%c1_388, %c0_389] : memref<45x128xf32, #tpu.memory_space<vmem>>, vector<15x128xf32>
    %c1_390 = arith.constant 1 : index
    %c0_391 = arith.constant 0 : index
    %503 = vector.load %arg6[%c1_390, %c0_391] : memref<31x128xf32, #tpu.memory_space<vmem>>, vector<1x128xf32>
    %504 = vector.broadcast %503 : vector<1x128xf32> to vector<15x128xf32>
    %505 = arith.mulf %502, %504 : vector<15x128xf32>
    %506 = arith.addf %501, %505 : vector<15x128xf32>
    %c2_392 = arith.constant 2 : index
    %c0_393 = arith.constant 0 : index
    %507 = vector.load %arg20[%c2_392, %c0_393] : memref<45x128xf32, #tpu.memory_space<vmem>>, vector<15x128xf32>
    %c2_394 = arith.constant 2 : index
    %c0_395 = arith.constant 0 : index
    %508 = vector.load %arg6[%c2_394, %c0_395] : memref<31x128xf32, #tpu.memory_space<vmem>>, vector<1x128xf32>
    %509 = vector.broadcast %508 : vector<1x128xf32> to vector<15x128xf32>
    %510 = arith.mulf %507, %509 : vector<15x128xf32>
    %511 = arith.addf %506, %510 : vector<15x128xf32>
    %c3_396 = arith.constant 3 : index
    %c0_397 = arith.constant 0 : index
    %512 = vector.load %arg20[%c3_396, %c0_397] : memref<45x128xf32, #tpu.memory_space<vmem>>, vector<15x128xf32>
    %c3_398 = arith.constant 3 : index
    %c0_399 = arith.constant 0 : index
    %513 = vector.load %arg6[%c3_398, %c0_399] : memref<31x128xf32, #tpu.memory_space<vmem>>, vector<1x128xf32>
    %514 = vector.broadcast %513 : vector<1x128xf32> to vector<15x128xf32>
    %515 = arith.mulf %512, %514 : vector<15x128xf32>
    %516 = arith.addf %511, %515 : vector<15x128xf32>
    %c4_400 = arith.constant 4 : index
    %c0_401 = arith.constant 0 : index
    %517 = vector.load %arg20[%c4_400, %c0_401] : memref<45x128xf32, #tpu.memory_space<vmem>>, vector<15x128xf32>
    %c4_402 = arith.constant 4 : index
    %c0_403 = arith.constant 0 : index
    %518 = vector.load %arg6[%c4_402, %c0_403] : memref<31x128xf32, #tpu.memory_space<vmem>>, vector<1x128xf32>
    %519 = vector.broadcast %518 : vector<1x128xf32> to vector<15x128xf32>
    %520 = arith.mulf %517, %519 : vector<15x128xf32>
    %521 = arith.addf %516, %520 : vector<15x128xf32>
    %c5_404 = arith.constant 5 : index
    %c0_405 = arith.constant 0 : index
    %522 = vector.load %arg20[%c5_404, %c0_405] : memref<45x128xf32, #tpu.memory_space<vmem>>, vector<15x128xf32>
    %c5_406 = arith.constant 5 : index
    %c0_407 = arith.constant 0 : index
    %523 = vector.load %arg6[%c5_406, %c0_407] : memref<31x128xf32, #tpu.memory_space<vmem>>, vector<1x128xf32>
    %524 = vector.broadcast %523 : vector<1x128xf32> to vector<15x128xf32>
    %525 = arith.mulf %522, %524 : vector<15x128xf32>
    %526 = arith.addf %521, %525 : vector<15x128xf32>
    %c6_408 = arith.constant 6 : index
    %c0_409 = arith.constant 0 : index
    %527 = vector.load %arg20[%c6_408, %c0_409] : memref<45x128xf32, #tpu.memory_space<vmem>>, vector<15x128xf32>
    %c6_410 = arith.constant 6 : index
    %c0_411 = arith.constant 0 : index
    %528 = vector.load %arg6[%c6_410, %c0_411] : memref<31x128xf32, #tpu.memory_space<vmem>>, vector<1x128xf32>
    %529 = vector.broadcast %528 : vector<1x128xf32> to vector<15x128xf32>
    %530 = arith.mulf %527, %529 : vector<15x128xf32>
    %531 = arith.addf %526, %530 : vector<15x128xf32>
    %c7_412 = arith.constant 7 : index
    %c0_413 = arith.constant 0 : index
    %532 = vector.load %arg20[%c7_412, %c0_413] : memref<45x128xf32, #tpu.memory_space<vmem>>, vector<15x128xf32>
    %c7_414 = arith.constant 7 : index
    %c0_415 = arith.constant 0 : index
    %533 = vector.load %arg6[%c7_414, %c0_415] : memref<31x128xf32, #tpu.memory_space<vmem>>, vector<1x128xf32>
    %534 = vector.broadcast %533 : vector<1x128xf32> to vector<15x128xf32>
    %535 = arith.mulf %532, %534 : vector<15x128xf32>
    %536 = arith.addf %531, %535 : vector<15x128xf32>
    %c8_416 = arith.constant 8 : index
    %c0_417 = arith.constant 0 : index
    %537 = vector.load %arg20[%c8_416, %c0_417] : memref<45x128xf32, #tpu.memory_space<vmem>>, vector<15x128xf32>
    %c8_418 = arith.constant 8 : index
    %c0_419 = arith.constant 0 : index
    %538 = vector.load %arg6[%c8_418, %c0_419] : memref<31x128xf32, #tpu.memory_space<vmem>>, vector<1x128xf32>
    %539 = vector.broadcast %538 : vector<1x128xf32> to vector<15x128xf32>
    %540 = arith.mulf %537, %539 : vector<15x128xf32>
    %541 = arith.addf %536, %540 : vector<15x128xf32>
    %c9_420 = arith.constant 9 : index
    %c0_421 = arith.constant 0 : index
    %542 = vector.load %arg20[%c9_420, %c0_421] : memref<45x128xf32, #tpu.memory_space<vmem>>, vector<15x128xf32>
    %c9_422 = arith.constant 9 : index
    %c0_423 = arith.constant 0 : index
    %543 = vector.load %arg6[%c9_422, %c0_423] : memref<31x128xf32, #tpu.memory_space<vmem>>, vector<1x128xf32>
    %544 = vector.broadcast %543 : vector<1x128xf32> to vector<15x128xf32>
    %545 = arith.mulf %542, %544 : vector<15x128xf32>
    %546 = arith.addf %541, %545 : vector<15x128xf32>
    %c10_424 = arith.constant 10 : index
    %c0_425 = arith.constant 0 : index
    %547 = vector.load %arg20[%c10_424, %c0_425] : memref<45x128xf32, #tpu.memory_space<vmem>>, vector<15x128xf32>
    %c10_426 = arith.constant 10 : index
    %c0_427 = arith.constant 0 : index
    %548 = vector.load %arg6[%c10_426, %c0_427] : memref<31x128xf32, #tpu.memory_space<vmem>>, vector<1x128xf32>
    %549 = vector.broadcast %548 : vector<1x128xf32> to vector<15x128xf32>
    %550 = arith.mulf %547, %549 : vector<15x128xf32>
    %551 = arith.addf %546, %550 : vector<15x128xf32>
    %c11_428 = arith.constant 11 : index
    %c0_429 = arith.constant 0 : index
    %552 = vector.load %arg20[%c11_428, %c0_429] : memref<45x128xf32, #tpu.memory_space<vmem>>, vector<15x128xf32>
    %c11_430 = arith.constant 11 : index
    %c0_431 = arith.constant 0 : index
    %553 = vector.load %arg6[%c11_430, %c0_431] : memref<31x128xf32, #tpu.memory_space<vmem>>, vector<1x128xf32>
    %554 = vector.broadcast %553 : vector<1x128xf32> to vector<15x128xf32>
    %555 = arith.mulf %552, %554 : vector<15x128xf32>
    %556 = arith.addf %551, %555 : vector<15x128xf32>
    %c12_432 = arith.constant 12 : index
    %c0_433 = arith.constant 0 : index
    %557 = vector.load %arg20[%c12_432, %c0_433] : memref<45x128xf32, #tpu.memory_space<vmem>>, vector<15x128xf32>
    %c12_434 = arith.constant 12 : index
    %c0_435 = arith.constant 0 : index
    %558 = vector.load %arg6[%c12_434, %c0_435] : memref<31x128xf32, #tpu.memory_space<vmem>>, vector<1x128xf32>
    %559 = vector.broadcast %558 : vector<1x128xf32> to vector<15x128xf32>
    %560 = arith.mulf %557, %559 : vector<15x128xf32>
    %561 = arith.addf %556, %560 : vector<15x128xf32>
    %c13_436 = arith.constant 13 : index
    %c0_437 = arith.constant 0 : index
    %562 = vector.load %arg20[%c13_436, %c0_437] : memref<45x128xf32, #tpu.memory_space<vmem>>, vector<15x128xf32>
    %c13_438 = arith.constant 13 : index
    %c0_439 = arith.constant 0 : index
    %563 = vector.load %arg6[%c13_438, %c0_439] : memref<31x128xf32, #tpu.memory_space<vmem>>, vector<1x128xf32>
    %564 = vector.broadcast %563 : vector<1x128xf32> to vector<15x128xf32>
    %565 = arith.mulf %562, %564 : vector<15x128xf32>
    %566 = arith.addf %561, %565 : vector<15x128xf32>
    %c14_440 = arith.constant 14 : index
    %c0_441 = arith.constant 0 : index
    %567 = vector.load %arg20[%c14_440, %c0_441] : memref<45x128xf32, #tpu.memory_space<vmem>>, vector<15x128xf32>
    %c14_442 = arith.constant 14 : index
    %c0_443 = arith.constant 0 : index
    %568 = vector.load %arg6[%c14_442, %c0_443] : memref<31x128xf32, #tpu.memory_space<vmem>>, vector<1x128xf32>
    %569 = vector.broadcast %568 : vector<1x128xf32> to vector<15x128xf32>
    %570 = arith.mulf %567, %569 : vector<15x128xf32>
    %571 = arith.addf %566, %570 : vector<15x128xf32>
    %c15_444 = arith.constant 15 : index
    %c0_445 = arith.constant 0 : index
    %572 = vector.load %arg20[%c15_444, %c0_445] : memref<45x128xf32, #tpu.memory_space<vmem>>, vector<15x128xf32>
    %c15_446 = arith.constant 15 : index
    %c0_447 = arith.constant 0 : index
    %573 = vector.load %arg6[%c15_446, %c0_447] : memref<31x128xf32, #tpu.memory_space<vmem>>, vector<1x128xf32>
    %574 = vector.broadcast %573 : vector<1x128xf32> to vector<15x128xf32>
    %575 = arith.mulf %572, %574 : vector<15x128xf32>
    %576 = arith.addf %571, %575 : vector<15x128xf32>
    %c16_448 = arith.constant 16 : index
    %c0_449 = arith.constant 0 : index
    %577 = vector.load %arg20[%c16_448, %c0_449] : memref<45x128xf32, #tpu.memory_space<vmem>>, vector<15x128xf32>
    %c16_450 = arith.constant 16 : index
    %c0_451 = arith.constant 0 : index
    %578 = vector.load %arg6[%c16_450, %c0_451] : memref<31x128xf32, #tpu.memory_space<vmem>>, vector<1x128xf32>
    %579 = vector.broadcast %578 : vector<1x128xf32> to vector<15x128xf32>
    %580 = arith.mulf %577, %579 : vector<15x128xf32>
    %581 = arith.addf %576, %580 : vector<15x128xf32>
    %c17_452 = arith.constant 17 : index
    %c0_453 = arith.constant 0 : index
    %582 = vector.load %arg20[%c17_452, %c0_453] : memref<45x128xf32, #tpu.memory_space<vmem>>, vector<15x128xf32>
    %c17_454 = arith.constant 17 : index
    %c0_455 = arith.constant 0 : index
    %583 = vector.load %arg6[%c17_454, %c0_455] : memref<31x128xf32, #tpu.memory_space<vmem>>, vector<1x128xf32>
    %584 = vector.broadcast %583 : vector<1x128xf32> to vector<15x128xf32>
    %585 = arith.mulf %582, %584 : vector<15x128xf32>
    %586 = arith.addf %581, %585 : vector<15x128xf32>
    %c18_456 = arith.constant 18 : index
    %c0_457 = arith.constant 0 : index
    %587 = vector.load %arg20[%c18_456, %c0_457] : memref<45x128xf32, #tpu.memory_space<vmem>>, vector<15x128xf32>
    %c18_458 = arith.constant 18 : index
    %c0_459 = arith.constant 0 : index
    %588 = vector.load %arg6[%c18_458, %c0_459] : memref<31x128xf32, #tpu.memory_space<vmem>>, vector<1x128xf32>
    %589 = vector.broadcast %588 : vector<1x128xf32> to vector<15x128xf32>
    %590 = arith.mulf %587, %589 : vector<15x128xf32>
    %591 = arith.addf %586, %590 : vector<15x128xf32>
    %c19_460 = arith.constant 19 : index
    %c0_461 = arith.constant 0 : index
    %592 = vector.load %arg20[%c19_460, %c0_461] : memref<45x128xf32, #tpu.memory_space<vmem>>, vector<15x128xf32>
    %c19_462 = arith.constant 19 : index
    %c0_463 = arith.constant 0 : index
    %593 = vector.load %arg6[%c19_462, %c0_463] : memref<31x128xf32, #tpu.memory_space<vmem>>, vector<1x128xf32>
    %594 = vector.broadcast %593 : vector<1x128xf32> to vector<15x128xf32>
    %595 = arith.mulf %592, %594 : vector<15x128xf32>
    %596 = arith.addf %591, %595 : vector<15x128xf32>
    %c20_464 = arith.constant 20 : index
    %c0_465 = arith.constant 0 : index
    %597 = vector.load %arg20[%c20_464, %c0_465] : memref<45x128xf32, #tpu.memory_space<vmem>>, vector<15x128xf32>
    %c20_466 = arith.constant 20 : index
    %c0_467 = arith.constant 0 : index
    %598 = vector.load %arg6[%c20_466, %c0_467] : memref<31x128xf32, #tpu.memory_space<vmem>>, vector<1x128xf32>
    %599 = vector.broadcast %598 : vector<1x128xf32> to vector<15x128xf32>
    %600 = arith.mulf %597, %599 : vector<15x128xf32>
    %601 = arith.addf %596, %600 : vector<15x128xf32>
    %c21_468 = arith.constant 21 : index
    %c0_469 = arith.constant 0 : index
    %602 = vector.load %arg20[%c21_468, %c0_469] : memref<45x128xf32, #tpu.memory_space<vmem>>, vector<15x128xf32>
    %c21_470 = arith.constant 21 : index
    %c0_471 = arith.constant 0 : index
    %603 = vector.load %arg6[%c21_470, %c0_471] : memref<31x128xf32, #tpu.memory_space<vmem>>, vector<1x128xf32>
    %604 = vector.broadcast %603 : vector<1x128xf32> to vector<15x128xf32>
    %605 = arith.mulf %602, %604 : vector<15x128xf32>
    %606 = arith.addf %601, %605 : vector<15x128xf32>
    %c22_472 = arith.constant 22 : index
    %c0_473 = arith.constant 0 : index
    %607 = vector.load %arg20[%c22_472, %c0_473] : memref<45x128xf32, #tpu.memory_space<vmem>>, vector<15x128xf32>
    %c22_474 = arith.constant 22 : index
    %c0_475 = arith.constant 0 : index
    %608 = vector.load %arg6[%c22_474, %c0_475] : memref<31x128xf32, #tpu.memory_space<vmem>>, vector<1x128xf32>
    %609 = vector.broadcast %608 : vector<1x128xf32> to vector<15x128xf32>
    %610 = arith.mulf %607, %609 : vector<15x128xf32>
    %611 = arith.addf %606, %610 : vector<15x128xf32>
    %c23_476 = arith.constant 23 : index
    %c0_477 = arith.constant 0 : index
    %612 = vector.load %arg20[%c23_476, %c0_477] : memref<45x128xf32, #tpu.memory_space<vmem>>, vector<15x128xf32>
    %c23_478 = arith.constant 23 : index
    %c0_479 = arith.constant 0 : index
    %613 = vector.load %arg6[%c23_478, %c0_479] : memref<31x128xf32, #tpu.memory_space<vmem>>, vector<1x128xf32>
    %614 = vector.broadcast %613 : vector<1x128xf32> to vector<15x128xf32>
    %615 = arith.mulf %612, %614 : vector<15x128xf32>
    %616 = arith.addf %611, %615 : vector<15x128xf32>
    %c24_480 = arith.constant 24 : index
    %c0_481 = arith.constant 0 : index
    %617 = vector.load %arg20[%c24_480, %c0_481] : memref<45x128xf32, #tpu.memory_space<vmem>>, vector<15x128xf32>
    %c24_482 = arith.constant 24 : index
    %c0_483 = arith.constant 0 : index
    %618 = vector.load %arg6[%c24_482, %c0_483] : memref<31x128xf32, #tpu.memory_space<vmem>>, vector<1x128xf32>
    %619 = vector.broadcast %618 : vector<1x128xf32> to vector<15x128xf32>
    %620 = arith.mulf %617, %619 : vector<15x128xf32>
    %621 = arith.addf %616, %620 : vector<15x128xf32>
    %c25_484 = arith.constant 25 : index
    %c0_485 = arith.constant 0 : index
    %622 = vector.load %arg20[%c25_484, %c0_485] : memref<45x128xf32, #tpu.memory_space<vmem>>, vector<15x128xf32>
    %c25_486 = arith.constant 25 : index
    %c0_487 = arith.constant 0 : index
    %623 = vector.load %arg6[%c25_486, %c0_487] : memref<31x128xf32, #tpu.memory_space<vmem>>, vector<1x128xf32>
    %624 = vector.broadcast %623 : vector<1x128xf32> to vector<15x128xf32>
    %625 = arith.mulf %622, %624 : vector<15x128xf32>
    %626 = arith.addf %621, %625 : vector<15x128xf32>
    %c26_488 = arith.constant 26 : index
    %c0_489 = arith.constant 0 : index
    %627 = vector.load %arg20[%c26_488, %c0_489] : memref<45x128xf32, #tpu.memory_space<vmem>>, vector<15x128xf32>
    %c26_490 = arith.constant 26 : index
    %c0_491 = arith.constant 0 : index
    %628 = vector.load %arg6[%c26_490, %c0_491] : memref<31x128xf32, #tpu.memory_space<vmem>>, vector<1x128xf32>
    %629 = vector.broadcast %628 : vector<1x128xf32> to vector<15x128xf32>
    %630 = arith.mulf %627, %629 : vector<15x128xf32>
    %631 = arith.addf %626, %630 : vector<15x128xf32>
    %c27_492 = arith.constant 27 : index
    %c0_493 = arith.constant 0 : index
    %632 = vector.load %arg20[%c27_492, %c0_493] : memref<45x128xf32, #tpu.memory_space<vmem>>, vector<15x128xf32>
    %c27_494 = arith.constant 27 : index
    %c0_495 = arith.constant 0 : index
    %633 = vector.load %arg6[%c27_494, %c0_495] : memref<31x128xf32, #tpu.memory_space<vmem>>, vector<1x128xf32>
    %634 = vector.broadcast %633 : vector<1x128xf32> to vector<15x128xf32>
    %635 = arith.mulf %632, %634 : vector<15x128xf32>
    %636 = arith.addf %631, %635 : vector<15x128xf32>
    %c28_496 = arith.constant 28 : index
    %c0_497 = arith.constant 0 : index
    %637 = vector.load %arg20[%c28_496, %c0_497] : memref<45x128xf32, #tpu.memory_space<vmem>>, vector<15x128xf32>
    %c28_498 = arith.constant 28 : index
    %c0_499 = arith.constant 0 : index
    %638 = vector.load %arg6[%c28_498, %c0_499] : memref<31x128xf32, #tpu.memory_space<vmem>>, vector<1x128xf32>
    %639 = vector.broadcast %638 : vector<1x128xf32> to vector<15x128xf32>
    %640 = arith.mulf %637, %639 : vector<15x128xf32>
    %641 = arith.addf %636, %640 : vector<15x128xf32>
    %c29_500 = arith.constant 29 : index
    %c0_501 = arith.constant 0 : index
    %642 = vector.load %arg20[%c29_500, %c0_501] : memref<45x128xf32, #tpu.memory_space<vmem>>, vector<15x128xf32>
    %c29_502 = arith.constant 29 : index
    %c0_503 = arith.constant 0 : index
    %643 = vector.load %arg6[%c29_502, %c0_503] : memref<31x128xf32, #tpu.memory_space<vmem>>, vector<1x128xf32>
    %644 = vector.broadcast %643 : vector<1x128xf32> to vector<15x128xf32>
    %645 = arith.mulf %642, %644 : vector<15x128xf32>
    %646 = arith.addf %641, %645 : vector<15x128xf32>
    %c30_504 = arith.constant 30 : index
    %c0_505 = arith.constant 0 : index
    %647 = vector.load %arg20[%c30_504, %c0_505] : memref<45x128xf32, #tpu.memory_space<vmem>>, vector<15x128xf32>
    %c30_506 = arith.constant 30 : index
    %c0_507 = arith.constant 0 : index
    %648 = vector.load %arg6[%c30_506, %c0_507] : memref<31x128xf32, #tpu.memory_space<vmem>>, vector<1x128xf32>
    %649 = vector.broadcast %648 : vector<1x128xf32> to vector<15x128xf32>
    %650 = arith.mulf %647, %649 : vector<15x128xf32>
    %651 = arith.addf %646, %650 : vector<15x128xf32>
    %652 = vector.broadcast %4 : vector<1x128xf32> to vector<15x128xf32>
    %653 = arith.addf %651, %652 : vector<15x128xf32>
    %cst_508 = arith.constant 0.000000e+00 : f32
    %654 = vector.broadcast %cst_508 : f32 to vector<15x128xf32>
    %655 = arith.maximumf %653, %654 : vector<15x128xf32>
    %cst_509 = arith.constant dense<0.000000e+00> : vector<15x128xf32>
    %656 = tpu.matmul %655, %5, %cst_509 {dimension_numbers = #tpu.dot_dimension_numbers<[1], [0], [0], [1], [0, 0, 1, 1], [], []>} : vector<15x128xf32>, vector<128x128xf32>, vector<15x128xf32> -> vector<15x128xf32>
    %657 = vector.broadcast %6 : vector<1x128xf32> to vector<15x128xf32>
    %658 = arith.addf %656, %657 : vector<15x128xf32>
    %cst_510 = arith.constant dense<0.000000e+00> : vector<15x128xf32>
    %659 = tpu.matmul %489, %7, %cst_510 {dimension_numbers = #tpu.dot_dimension_numbers<[1], [0], [0], [1], [0, 0, 1, 1], [], []>} : vector<15x64xf32>, vector<64x128xf32>, vector<15x128xf32> -> vector<15x128xf32>
    %660 = vector.broadcast %8 : vector<1x128xf32> to vector<15x128xf32>
    %661 = arith.addf %659, %660 : vector<15x128xf32>
    %cst_511 = arith.constant 0.000000e+00 : f32
    %662 = vector.broadcast %cst_511 : f32 to vector<15x128xf32>
    %663 = arith.maximumf %661, %662 : vector<15x128xf32>
    %664 = arith.addf %663, %658 : vector<15x128xf32>
    %665 = vector.broadcast %9 : vector<1x128xf32> to vector<15x128xf32>
    %666 = arith.mulf %664, %665 : vector<15x128xf32>
    %667 = vector.broadcast %10 : vector<1x128xf32> to vector<15x128xf32>
    %668 = arith.addf %666, %667 : vector<15x128xf32>
    %cst_512 = arith.constant 0.000000e+00 : f32
    %669 = vector.broadcast %cst_512 : f32 to vector<15x128xf32>
    %670 = arith.maximumf %668, %669 : vector<15x128xf32>
    %c1_513 = arith.constant 1 : index
    %c0_514 = arith.constant 0 : index
    %671 = vector.load %arg21[%c1_513, %c0_514] : memref<17x128xf32, #tpu.memory_space<vmem>>, vector<15x128xf32>
    tpu.vector_store %arg21[%c1_513, %c0_514], %670 {strides = array<i32>} : memref<17x128xf32, #tpu.memory_space<vmem>>, vector<15x128xf32>,
    %cst_515 = arith.constant 0.000000e+00 : f32
    %672 = vector.broadcast %cst_515 : f32 to vector<12x256xf32>
    %c0_516 = arith.constant 0 : index
    %c0_517 = arith.constant 0 : index
    %673 = vector.load %arg21[%c0_516, %c0_517] : memref<17x128xf32, #tpu.memory_space<vmem>>, vector<12x128xf32>
    %c0_518 = arith.constant 0 : index
    %c0_519 = arith.constant 0 : index
    %c0_520 = arith.constant 0 : index
    %674 = vector.load %arg14[%c0_518, %c0_519, %c0_520] : memref<6x128x256xf32, #tpu.memory_space<vmem>>, vector<1x128x256xf32>
    %675 = vector.shape_cast %674 : vector<1x128x256xf32> to vector<128x256xf32>
    %cst_521 = arith.constant dense<0.000000e+00> : vector<12x256xf32>
    %676 = tpu.matmul %673, %675, %cst_521 {dimension_numbers = #tpu.dot_dimension_numbers<[1], [0], [0], [1], [0, 0, 1, 1], [], []>} : vector<12x128xf32>, vector<128x256xf32>, vector<12x256xf32> -> vector<12x256xf32>
    %677 = arith.addf %672, %676 : vector<12x256xf32>
    %c1_522 = arith.constant 1 : index
    %c0_523 = arith.constant 0 : index
    %678 = vector.load %arg21[%c1_522, %c0_523] : memref<17x128xf32, #tpu.memory_space<vmem>>, vector<12x128xf32>
    %c1_524 = arith.constant 1 : index
    %c0_525 = arith.constant 0 : index
    %c0_526 = arith.constant 0 : index
    %679 = vector.load %arg14[%c1_524, %c0_525, %c0_526] : memref<6x128x256xf32, #tpu.memory_space<vmem>>, vector<1x128x256xf32>
    %680 = vector.shape_cast %679 : vector<1x128x256xf32> to vector<128x256xf32>
    %cst_527 = arith.constant dense<0.000000e+00> : vector<12x256xf32>
    %681 = tpu.matmul %678, %680, %cst_527 {dimension_numbers = #tpu.dot_dimension_numbers<[1], [0], [0], [1], [0, 0, 1, 1], [], []>} : vector<12x128xf32>, vector<128x256xf32>, vector<12x256xf32> -> vector<12x256xf32>
    %682 = arith.addf %677, %681 : vector<12x256xf32>
    %c2_528 = arith.constant 2 : index
    %c0_529 = arith.constant 0 : index
    %683 = vector.load %arg21[%c2_528, %c0_529] : memref<17x128xf32, #tpu.memory_space<vmem>>, vector<12x128xf32>
    %c2_530 = arith.constant 2 : index
    %c0_531 = arith.constant 0 : index
    %c0_532 = arith.constant 0 : index
    %684 = vector.load %arg14[%c2_530, %c0_531, %c0_532] : memref<6x128x256xf32, #tpu.memory_space<vmem>>, vector<1x128x256xf32>
    %685 = vector.shape_cast %684 : vector<1x128x256xf32> to vector<128x256xf32>
    %cst_533 = arith.constant dense<0.000000e+00> : vector<12x256xf32>
    %686 = tpu.matmul %683, %685, %cst_533 {dimension_numbers = #tpu.dot_dimension_numbers<[1], [0], [0], [1], [0, 0, 1, 1], [], []>} : vector<12x128xf32>, vector<128x256xf32>, vector<12x256xf32> -> vector<12x256xf32>
    %687 = arith.addf %682, %686 : vector<12x256xf32>
    %c3_534 = arith.constant 3 : index
    %c0_535 = arith.constant 0 : index
    %688 = vector.load %arg21[%c3_534, %c0_535] : memref<17x128xf32, #tpu.memory_space<vmem>>, vector<12x128xf32>
    %c3_536 = arith.constant 3 : index
    %c0_537 = arith.constant 0 : index
    %c0_538 = arith.constant 0 : index
    %689 = vector.load %arg14[%c3_536, %c0_537, %c0_538] : memref<6x128x256xf32, #tpu.memory_space<vmem>>, vector<1x128x256xf32>
    %690 = vector.shape_cast %689 : vector<1x128x256xf32> to vector<128x256xf32>
    %cst_539 = arith.constant dense<0.000000e+00> : vector<12x256xf32>
    %691 = tpu.matmul %688, %690, %cst_539 {dimension_numbers = #tpu.dot_dimension_numbers<[1], [0], [0], [1], [0, 0, 1, 1], [], []>} : vector<12x128xf32>, vector<128x256xf32>, vector<12x256xf32> -> vector<12x256xf32>
    %692 = arith.addf %687, %691 : vector<12x256xf32>
    %c4_540 = arith.constant 4 : index
    %c0_541 = arith.constant 0 : index
    %693 = vector.load %arg21[%c4_540, %c0_541] : memref<17x128xf32, #tpu.memory_space<vmem>>, vector<12x128xf32>
    %c4_542 = arith.constant 4 : index
    %c0_543 = arith.constant 0 : index
    %c0_544 = arith.constant 0 : index
    %694 = vector.load %arg14[%c4_542, %c0_543, %c0_544] : memref<6x128x256xf32, #tpu.memory_space<vmem>>, vector<1x128x256xf32>
    %695 = vector.shape_cast %694 : vector<1x128x256xf32> to vector<128x256xf32>
    %cst_545 = arith.constant dense<0.000000e+00> : vector<12x256xf32>
    %696 = tpu.matmul %693, %695, %cst_545 {dimension_numbers = #tpu.dot_dimension_numbers<[1], [0], [0], [1], [0, 0, 1, 1], [], []>} : vector<12x128xf32>, vector<128x256xf32>, vector<12x256xf32> -> vector<12x256xf32>
    %697 = arith.addf %692, %696 : vector<12x256xf32>
    %c5_546 = arith.constant 5 : index
    %c0_547 = arith.constant 0 : index
    %698 = vector.load %arg21[%c5_546, %c0_547] : memref<17x128xf32, #tpu.memory_space<vmem>>, vector<12x128xf32>
    %c5_548 = arith.constant 5 : index
    %c0_549 = arith.constant 0 : index
    %c0_550 = arith.constant 0 : index
    %699 = vector.load %arg14[%c5_548, %c0_549, %c0_550] : memref<6x128x256xf32, #tpu.memory_space<vmem>>, vector<1x128x256xf32>
    %700 = vector.shape_cast %699 : vector<1x128x256xf32> to vector<128x256xf32>
    %cst_551 = arith.constant dense<0.000000e+00> : vector<12x256xf32>
    %701 = tpu.matmul %698, %700, %cst_551 {dimension_numbers = #tpu.dot_dimension_numbers<[1], [0], [0], [1], [0, 0, 1, 1], [], []>} : vector<12x128xf32>, vector<128x256xf32>, vector<12x256xf32> -> vector<12x256xf32>
    %702 = arith.addf %697, %701 : vector<12x256xf32>
    %703 = vector.broadcast %11 : vector<1x256xf32> to vector<12x256xf32>
    %704 = arith.addf %702, %703 : vector<12x256xf32>
    %cst_552 = arith.constant 0.000000e+00 : f32
    %705 = vector.broadcast %cst_552 : f32 to vector<12x256xf32>
    %706 = arith.maximumf %704, %705 : vector<12x256xf32>
    %707 = vector.broadcast %12 : vector<12x1xf32> to vector<12x256xf32>
    %708 = arith.mulf %706, %707 : vector<12x256xf32>
    %cst_553 = arith.constant dense<0.000000e+00> : vector<256xf32>
    %709 = vector.multi_reduction <add>, %708, %cst_553 [0] : vector<12x256xf32> to vector<256xf32>
    %710 = vector.shape_cast %709 : vector<256xf32> to vector<1x256xf32>
    %c2_554 = arith.constant 2 : index
    %c0_555 = arith.constant 0 : index
    %c0_556 = arith.constant 0 : index
    %711 = vector.load %arg17[%c2_554, %c0_555, %c0_556] : memref<3x256x6xf32, #tpu.memory_space<vmem>>, vector<1x256x6xf32>
    %712 = vector.shape_cast %711 : vector<1x256x6xf32> to vector<256x6xf32>
    %cst_557 = arith.constant dense<0.000000e+00> : vector<1x6xf32>
    %713 = tpu.matmul %710, %712, %cst_557 {dimension_numbers = #tpu.dot_dimension_numbers<[1], [0], [0], [1], [0, 0, 1, 1], [], []>} : vector<1x256xf32>, vector<256x6xf32>, vector<1x6xf32> -> vector<1x6xf32>
    %714 = arith.addf %482, %713 : vector<1x6xf32>
    %715 = arith.addf %714, %13 : vector<1x6xf32>
    %c0_558 = arith.constant 0 : index
    %c0_559 = arith.constant 0 : index
    %c0_560 = arith.constant 0 : index
    %716 = vector.load %arg19[%c0_558, %c0_559, %c0_560] : memref<1x1x6xf32, #tpu.memory_space<vmem>>, vector<1x1x6xf32>
    %717 = vector.shape_cast %716 : vector<1x1x6xf32> to vector<1x6xf32>
    %718 = vector.shape_cast %715 : vector<1x6xf32> to vector<1x1x6xf32>
    tpu.vector_store %arg19[%c0_558, %c0_559, %c0_560], %718 {strides = array<i32>} : memref<1x1x6xf32, #tpu.memory_space<vmem>>, vector<1x1x6xf32>,
    return
  }
  func.func @transform_0(%arg0: i32) -> (i32, i32, i32, i32) {
    %c0_i32 = arith.constant 0 : i32
    %c0_i32_0 = arith.constant 0 : i32
    %c0_i32_1 = arith.constant 0 : i32
    %c0_i32_2 = arith.constant 0 : i32
    return %arg0, %c0_i32, %c0_i32_0, %c0_i32_1 : i32, i32, i32, i32
  }
  func.func @transform_1(%arg0: i32) -> (i32, i32) {
    %c0_i32 = arith.constant 0 : i32
    %c0_i32_0 = arith.constant 0 : i32
    %c0_i32_1 = arith.constant 0 : i32
    return %c0_i32, %c0_i32_0 : i32, i32
  }
  func.func @transform_2(%arg0: i32) -> (i32, i32) {
    %c0_i32 = arith.constant 0 : i32
    %c0_i32_0 = arith.constant 0 : i32
    %c0_i32_1 = arith.constant 0 : i32
    return %c0_i32, %c0_i32_0 : i32, i32
  }
  func.func @transform_3(%arg0: i32) -> (i32, i32) {
    %c0_i32 = arith.constant 0 : i32
    %c0_i32_0 = arith.constant 0 : i32
    %c0_i32_1 = arith.constant 0 : i32
    return %c0_i32, %c0_i32_0 : i32, i32
  }
  func.func @transform_4(%arg0: i32) -> (i32, i32) {
    %c0_i32 = arith.constant 0 : i32
    %c0_i32_0 = arith.constant 0 : i32
    %c0_i32_1 = arith.constant 0 : i32
    return %c0_i32, %c0_i32_0 : i32, i32
  }
  func.func @transform_5(%arg0: i32) -> (i32, i32) {
    %c0_i32 = arith.constant 0 : i32
    %c0_i32_0 = arith.constant 0 : i32
    %c0_i32_1 = arith.constant 0 : i32
    return %c0_i32, %c0_i32_0 : i32, i32
  }
  func.func @transform_6(%arg0: i32) -> (i32, i32) {
    %c0_i32 = arith.constant 0 : i32
    %c0_i32_0 = arith.constant 0 : i32
    %c0_i32_1 = arith.constant 0 : i32
    return %c0_i32, %c0_i32_0 : i32, i32
  }
  func.func @transform_7(%arg0: i32) -> (i32, i32) {
    %c0_i32 = arith.constant 0 : i32
    %c0_i32_0 = arith.constant 0 : i32
    %c0_i32_1 = arith.constant 0 : i32
    return %c0_i32, %c0_i32_0 : i32, i32
  }
  func.func @transform_8(%arg0: i32) -> (i32, i32) {
    %c0_i32 = arith.constant 0 : i32
    %c0_i32_0 = arith.constant 0 : i32
    %c0_i32_1 = arith.constant 0 : i32
    return %c0_i32, %c0_i32_0 : i32, i32
  }
  func.func @transform_9(%arg0: i32) -> (i32, i32) {
    %c0_i32 = arith.constant 0 : i32
    %c0_i32_0 = arith.constant 0 : i32
    %c0_i32_1 = arith.constant 0 : i32
    return %c0_i32, %c0_i32_0 : i32, i32
  }
  func.func @transform_10(%arg0: i32) -> (i32, i32) {
    %c0_i32 = arith.constant 0 : i32
    %c0_i32_0 = arith.constant 0 : i32
    %c0_i32_1 = arith.constant 0 : i32
    return %c0_i32, %c0_i32_0 : i32, i32
  }
  func.func @transform_11(%arg0: i32) -> (i32, i32) {
    %c0_i32 = arith.constant 0 : i32
    %c0_i32_0 = arith.constant 0 : i32
    %c0_i32_1 = arith.constant 0 : i32
    return %c0_i32, %c0_i32_0 : i32, i32
  }
  func.func @transform_12(%arg0: i32) -> (i32, i32) {
    %c0_i32 = arith.constant 0 : i32
    %c0_i32_0 = arith.constant 0 : i32
    %c0_i32_1 = arith.constant 0 : i32
    return %c0_i32, %c0_i32_0 : i32, i32
  }
  func.func @transform_13(%arg0: i32) -> (i32, i32, i32) {
    %c0_i32 = arith.constant 0 : i32
    %c0_i32_0 = arith.constant 0 : i32
    %c0_i32_1 = arith.constant 0 : i32
    %c0_i32_2 = arith.constant 0 : i32
    return %c0_i32, %c0_i32_0, %c0_i32_1 : i32, i32, i32
  }
  func.func @transform_14(%arg0: i32) -> (i32, i32) {
    %c0_i32 = arith.constant 0 : i32
    %c0_i32_0 = arith.constant 0 : i32
    %c0_i32_1 = arith.constant 0 : i32
    return %c0_i32, %c0_i32_0 : i32, i32
  }
  func.func @transform_15(%arg0: i32) -> (i32, i32) {
    %c0_i32 = arith.constant 0 : i32
    %c0_i32_0 = arith.constant 0 : i32
    %c0_i32_1 = arith.constant 0 : i32
    return %c0_i32, %c0_i32_0 : i32, i32
  }
  func.func @transform_16(%arg0: i32) -> (i32, i32, i32) {
    %c0_i32 = arith.constant 0 : i32
    %c0_i32_0 = arith.constant 0 : i32
    %c0_i32_1 = arith.constant 0 : i32
    %c0_i32_2 = arith.constant 0 : i32
    return %c0_i32, %c0_i32_0, %c0_i32_1 : i32, i32, i32
  }
  func.func @transform_17(%arg0: i32) -> (i32, i32) {
    %c0_i32 = arith.constant 0 : i32
    %c0_i32_0 = arith.constant 0 : i32
    %c0_i32_1 = arith.constant 0 : i32
    return %c0_i32, %c0_i32_0 : i32, i32
  }
  func.func @transform_18(%arg0: i32) -> (i32, i32, i32) {
    %c0_i32 = arith.constant 0 : i32
    %c0_i32_0 = arith.constant 0 : i32
    %c0_i32_1 = arith.constant 0 : i32
    return %arg0, %c0_i32, %c0_i32_0 : i32, i32, i32
  }
}

</mosaic_0001>

<llo_original>
// kernel: elk_cnn_forward.1
$region0: #{elk_cnn_forward.1}
  #allocation0 [shape = 'u32[]', space=smem, size = 0x4, offset = 0x4, fixed_abs, tag = 'smem constant byte address 0x4 - core index']
  #allocation1 [shape = 'u32[72,128]{1,0:T(1,128)}', space=vmem, size = 0x9000, scoped, tag = 'internal scratch']
  #allocation2 [shape = 'f32[45,128]{1,0:T(8,128)}', space=vmem, size = 0x6000, scoped, tag = 'scratch operand']
  #allocation3 [shape = 'f32[17,128]{1,0:T(8,128)}', space=vmem, size = 0x3000, scoped, tag = 'scratch operand']
  %s0 = inlined_call_operand.vmem [shape: f32[2,3,15,8], index: 0, kind: input, shape index: {}]
  %s1 = inlined_call_operand.vmem [shape: f32[8,64], index: 1, kind: input, shape index: {}]
  %s2 = inlined_call_operand.vmem [shape: f32[1,64], index: 2, kind: input, shape index: {}]
  %s3 = inlined_call_operand.vmem [shape: f32[64,128], index: 3, kind: input, shape index: {}]
  %s4 = inlined_call_operand.vmem [shape: f32[1,128], index: 4, kind: input, shape index: {}]
  %s5 = inlined_call_operand.vmem [shape: f32[31,128], index: 5, kind: input, shape index: {}]
  %s6 = inlined_call_operand.vmem [shape: f32[1,128], index: 6, kind: input, shape index: {}]
  %s7 = inlined_call_operand.vmem [shape: f32[128,128], index: 7, kind: input, shape index: {}]
  %s8 = inlined_call_operand.vmem [shape: f32[1,128], index: 8, kind: input, shape index: {}]
  %s9 = inlined_call_operand.vmem [shape: f32[64,128], index: 9, kind: input, shape index: {}]
  %s10 = inlined_call_operand.vmem [shape: f32[1,128], index: 10, kind: input, shape index: {}]
  %s11 = inlined_call_operand.vmem [shape: f32[1,128], index: 11, kind: input, shape index: {}]
  %s12 = inlined_call_operand.vmem [shape: f32[1,128], index: 12, kind: input, shape index: {}]
  %s13 = inlined_call_operand.vmem [shape: f32[6,128,256], index: 13, kind: input, shape index: {}]
  %s14 = inlined_call_operand.vmem [shape: f32[1,256], index: 14, kind: input, shape index: {}]
  %s15 = inlined_call_operand.vmem [shape: f32[12,1], index: 15, kind: input, shape index: {}]
  %s16 = inlined_call_operand.vmem [shape: f32[3,256,6], index: 16, kind: input, shape index: {}]
  %s17 = inlined_call_operand.vmem [shape: f32[1,6], index: 17, kind: input, shape index: {}]
  %s18 = inlined_call_operand.hbm [shape: f32[2,1,6], index: 18, kind: output, shape index: {}]
  %s19 = sld [smem:[#allocation0]]
  $region105: #{elk_cnn_forward.1} parent=0
    _
  %s21 = ssub.s32 1, %s19
  %s22 = scalar_select 0, %s21, %s19
  $region1: #{elk_cnn_forward.1} parent=0
    #allocation4 [shape = 'u8[1024]{0}', space=vmem, size = 0x400, scoped, tag = 'output window, operand 0']
    #allocation5 [shape = 's32[2]{0}', space=sflag, size = 0x8, scoped, tag = 'scoped memory for elk_cnn_forward.1']
    %23 = vsyncpa [#allocation5], 0
    %s24 = scalar_lea.sflag [#allocation5], 1
    %25 = vsyncpa %s24, 0
    loop: start=0, step=1, limit=4
    $region2: #{elk_cnn_forward.1} parent=1 // loop_pre_header
      _
    $region3: #{elk_cnn_forward.1} parent=1 // loop_header
      %s27 = sphi 0, %s31
      %p28 = scmp.ge.s32.totalorder %s27, 4
      %s37 = sphi 0, %s39
      %s40 = sphi 0, %s37
      %s41 = sphi 0, %s40
      %s57 = sphi 0, %s41
      %s61 = sphi 0, %s61
      %s63 = sphi 0, %s61
      %s64 = sphi 0, %s63
      %s78 = sphi 0, %s64
      %s82 = sphi 0, %s82
      %s84 = sphi 0, %s82
      %s85 = sphi 0, %s84
      %s99 = sphi 0, %s85
      %s103 = sphi 0, %s103
      %s105 = sphi 0, %s103
      %s106 = sphi 0, %s105
      %s120 = sphi 0, %s106
      %s124 = sphi 0, %s124
      %s126 = sphi 0, %s124
      %s127 = sphi 0, %s126
      %s141 = sphi 0, %s127
      %s145 = sphi 0, %s145
      %s147 = sphi 0, %s145
      %s148 = sphi 0, %s147
      %s162 = sphi 0, %s148
      %s166 = sphi 0, %s166
      %s168 = sphi 0, %s166
      %s169 = sphi 0, %s168
      %s183 = sphi 0, %s169
      %s187 = sphi 0, %s187
      %s189 = sphi 0, %s187
      %s190 = sphi 0, %s189
      %s204 = sphi 0, %s190
      %s208 = sphi 0, %s208
      %s210 = sphi 0, %s208
      %s211 = sphi 0, %s210
      %s225 = sphi 0, %s211
      %s229 = sphi 0, %s229
      %s231 = sphi 0, %s229
      %s232 = sphi 0, %s231
      %s246 = sphi 0, %s232
      %s250 = sphi 0, %s250
      %s252 = sphi 0, %s250
      %s253 = sphi 0, %s252
      %s267 = sphi 0, %s253
      %s271 = sphi 0, %s271
      %s273 = sphi 0, %s271
      %s274 = sphi 0, %s273
      %s288 = sphi 0, %s274
      %s292 = sphi 0, %s292
      %s294 = sphi 0, %s292
      %s295 = sphi 0, %s294
      %s309 = sphi 0, %s295
      %s313 = sphi 0, %s313
      %s315 = sphi 0, %s313
      %s316 = sphi 0, %s315
      %s330 = sphi 0, %s316
      %s334 = sphi 0, %s334
      %s336 = sphi 0, %s334
      %s337 = sphi 0, %s336
      %s351 = sphi 0, %s337
      %s355 = sphi 0, %s355
      %s357 = sphi 0, %s355
      %s358 = sphi 0, %s357
      %s372 = sphi 0, %s358
      %s376 = sphi 0, %s376
      %s378 = sphi 0, %s376
      %s379 = sphi 0, %s378
      %s393 = sphi 0, %s379
      %s397 = sphi 0, %s397
      %s399 = sphi 0, %s397
      %s400 = sphi 0, %s399
      %s414 = sphi 0, %s400
      %s420 = sphi 0, %s422
      %s423 = sphi 0, %s420
      %s424 = sphi 0, %s423
      %s440 = sphi 0, %s424
    $region4: #{elk_cnn_forward.1} parent=1 // loop_header_branch
      %30 = sbr.rel (%p28) target = $region8
    $region5: #{elk_cnn_forward.1} parent=1 // loop_body
      %s32 = ssub.s32 %s27, 1
      %s33 = ssub.s32 %s27, 2
      %s34 = sadd.s32 %s27, 1
      %s35 = ssub.s32 %s27, %s34
      %p36 = scmp.eq.s32.totalorder %s35, 0
      %s38 = sadd.s32 %s37, 1
      %s39 = scalar_select %p36, %s37, %s38
      %p42 = pneg %p36
      %p43 = scmp.eq.s32.totalorder %s27, 1
      %p44 = por %p42, %p43
      %p45 = scmp.ne.s32.totalorder %s37, %s40
      %p46 = scmp.eq.s32.totalorder %s27, 0
      %p47 = por %p45, %p46
      %p48 = scmp.ne.s32.totalorder %s37, %s40
      %p49 = scmp.eq.s32.totalorder %s32, 1
      %p50 = por %p48, %p49
      %p51 = scmp.ne.s32.totalorder %s40, %s41
      %p52 = scmp.eq.s32.totalorder %s32, 0
      %p53 = por %p51, %p52
      %p54 = scmp.ne.s32.totalorder %s40, %s41
      %p55 = scmp.eq.s32.totalorder %s33, 1
      %p56 = por %p54, %p55
      %p58 = scmp.ne.s32.totalorder %s41, %s57
      %p59 = scmp.eq.s32.totalorder %s33, 0
      %p60 = por %p58, %p59
      %s62 = sadd.s32 %s61, 1
      %p65 = scmp.eq.s32.totalorder %s27, 1
      %p66 = scmp.ne.s32.totalorder %s61, %s63
      %p67 = scmp.eq.s32.totalorder %s27, 0
      %p68 = por %p66, %p67
      %p69 = scmp.ne.s32.totalorder %s61, %s63
      %p70 = scmp.eq.s32.totalorder %s32, 1
      %p71 = por %p69, %p70
      %p72 = scmp.ne.s32.totalorder %s63, %s64
      %p73 = scmp.eq.s32.totalorder %s32, 0
      %p74 = por %p72, %p73
      %p75 = scmp.ne.s32.totalorder %s63, %s64
      %p76 = scmp.eq.s32.totalorder %s33, 1
      %p77 = por %p75, %p76
      %p79 = scmp.ne.s32.totalorder %s64, %s78
      %p80 = scmp.eq.s32.totalorder %s33, 0
      %p81 = por %p79, %p80
      %s83 = sadd.s32 %s82, 1
      %p86 = scmp.eq.s32.totalorder %s27, 1
      %p87 = scmp.ne.s32.totalorder %s82, %s84
      %p88 = scmp.eq.s32.totalorder %s27, 0
      %p89 = por %p87, %p88
      %p90 = scmp.ne.s32.totalorder %s82, %s84
      %p91 = scmp.eq.s32.totalorder %s32, 1
      %p92 = por %p90, %p91
      %p93 = scmp.ne.s32.totalorder %s84, %s85
      %p94 = scmp.eq.s32.totalorder %s32, 0
      %p95 = por %p93, %p94
      %p96 = scmp.ne.s32.totalorder %s84, %s85
      %p97 = scmp.eq.s32.totalorder %s33, 1
      %p98 = por %p96, %p97
      %p100 = scmp.ne.s32.totalorder %s85, %s99
      %p101 = scmp.eq.s32.totalorder %s33, 0
      %p102 = por %p100, %p101
      %s104 = sadd.s32 %s103, 1
      %p107 = scmp.eq.s32.totalorder %s27, 1
      %p108 = scmp.ne.s32.totalorder %s103, %s105
      %p109 = scmp.eq.s32.totalorder %s27, 0
      %p110 = por %p108, %p109
      %p111 = scmp.ne.s32.totalorder %s103, %s105
      %p112 = scmp.eq.s32.totalorder %s32, 1
      %p113 = por %p111, %p112
      %p114 = scmp.ne.s32.totalorder %s105, %s106
      %p115 = scmp.eq.s32.totalorder %s32, 0
      %p116 = por %p114, %p115
      %p117 = scmp.ne.s32.totalorder %s105, %s106
      %p118 = scmp.eq.s32.totalorder %s33, 1
      %p119 = por %p117, %p118
      %p121 = scmp.ne.s32.totalorder %s106, %s120
      %p122 = scmp.eq.s32.totalorder %s33, 0
      %p123 = por %p121, %p122
      %s125 = sadd.s32 %s124, 1
      %p128 = scmp.eq.s32.totalorder %s27, 1
      %p129 = scmp.ne.s32.totalorder %s124, %s126
      %p130 = scmp.eq.s32.totalorder %s27, 0
      %p131 = por %p129, %p130
      %p132 = scmp.ne.s32.totalorder %s124, %s126
      %p133 = scmp.eq.s32.totalorder %s32, 1
      %p134 = por %p132, %p133
      %p135 = scmp.ne.s32.totalorder %s126, %s127
      %p136 = scmp.eq.s32.totalorder %s32, 0
      %p137 = por %p135, %p136
      %p138 = scmp.ne.s32.totalorder %s126, %s127
      %p139 = scmp.eq.s32.totalorder %s33, 1
      %p140 = por %p138, %p139
      %p142 = scmp.ne.s32.totalorder %s127, %s141
      %p143 = scmp.eq.s32.totalorder %s33, 0
      %p144 = por %p142, %p143
      %s146 = sadd.s32 %s145, 1
      %p149 = scmp.eq.s32.totalorder %s27, 1
      %p150 = scmp.ne.s32.totalorder %s145, %s147
      %p151 = scmp.eq.s32.totalorder %s27, 0
      %p152 = por %p150, %p151
      %p153 = scmp.ne.s32.totalorder %s145, %s147
      %p154 = scmp.eq.s32.totalorder %s32, 1
      %p155 = por %p153, %p154
      %p156 = scmp.ne.s32.totalorder %s147, %s148
      %p157 = scmp.eq.s32.totalorder %s32, 0
      %p158 = por %p156, %p157
      %p159 = scmp.ne.s32.totalorder %s147, %s148
      %p160 = scmp.eq.s32.totalorder %s33, 1
      %p161 = por %p159, %p160
      %p163 = scmp.ne.s32.totalorder %s148, %s162
      %p164 = scmp.eq.s32.totalorder %s33, 0
      %p165 = por %p163, %p164
      %s167 = sadd.s32 %s166, 1
      %p170 = scmp.eq.s32.totalorder %s27, 1
      %p171 = scmp.ne.s32.totalorder %s166, %s168
      %p172 = scmp.eq.s32.totalorder %s27, 0
      %p173 = por %p171, %p172
      %p174 = scmp.ne.s32.totalorder %s166, %s168
      %p175 = scmp.eq.s32.totalorder %s32, 1
      %p176 = por %p174, %p175
      %p177 = scmp.ne.s32.totalorder %s168, %s169
      %p178 = scmp.eq.s32.totalorder %s32, 0
      %p179 = por %p177, %p178
      %p180 = scmp.ne.s32.totalorder %s168, %s169
      %p181 = scmp.eq.s32.totalorder %s33, 1
      %p182 = por %p180, %p181
      %p184 = scmp.ne.s32.totalorder %s169, %s183
      %p185 = scmp.eq.s32.totalorder %s33, 0
      %p186 = por %p184, %p185
      %s188 = sadd.s32 %s187, 1
      %p191 = scmp.eq.s32.totalorder %s27, 1
      %p192 = scmp.ne.s32.totalorder %s187, %s189
      %p193 = scmp.eq.s32.totalorder %s27, 0
      %p194 = por %p192, %p193
      %p195 = scmp.ne.s32.totalorder %s187, %s189
      %p196 = scmp.eq.s32.totalorder %s32, 1
      %p197 = por %p195, %p196
      %p198 = scmp.ne.s32.totalorder %s189, %s190
      %p199 = scmp.eq.s32.totalorder %s32, 0
      %p200 = por %p198, %p199
      %p201 = scmp.ne.s32.totalorder %s189, %s190
      %p202 = scmp.eq.s32.totalorder %s33, 1
      %p203 = por %p201, %p202
      %p205 = scmp.ne.s32.totalorder %s190, %s204
      %p206 = scmp.eq.s32.totalorder %s33, 0
      %p207 = por %p205, %p206
      %s209 = sadd.s32 %s208, 1
      %p212 = scmp.eq.s32.totalorder %s27, 1
      %p213 = scmp.ne.s32.totalorder %s208, %s210
      %p214 = scmp.eq.s32.totalorder %s27, 0
      %p215 = por %p213, %p214
      %p216 = scmp.ne.s32.totalorder %s208, %s210
      %p217 = scmp.eq.s32.totalorder %s32, 1
      %p218 = por %p216, %p217
      %p219 = scmp.ne.s32.totalorder %s210, %s211
      %p220 = scmp.eq.s32.totalorder %s32, 0
      %p221 = por %p219, %p220
      %p222 = scmp.ne.s32.totalorder %s210, %s211
      %p223 = scmp.eq.s32.totalorder %s33, 1
      %p224 = por %p222, %p223
      %p226 = scmp.ne.s32.totalorder %s211, %s225
      %p227 = scmp.eq.s32.totalorder %s33, 0
      %p228 = por %p226, %p227
      %s230 = sadd.s32 %s229, 1
      %p233 = scmp.eq.s32.totalorder %s27, 1
      %p234 = scmp.ne.s32.totalorder %s229, %s231
      %p235 = scmp.eq.s32.totalorder %s27, 0
      %p236 = por %p234, %p235
      %p237 = scmp.ne.s32.totalorder %s229, %s231
      %p238 = scmp.eq.s32.totalorder %s32, 1
      %p239 = por %p237, %p238
      %p240 = scmp.ne.s32.totalorder %s231, %s232
      %p241 = scmp.eq.s32.totalorder %s32, 0
      %p242 = por %p240, %p241
      %p243 = scmp.ne.s32.totalorder %s231, %s232
      %p244 = scmp.eq.s32.totalorder %s33, 1
      %p245 = por %p243, %p244
      %p247 = scmp.ne.s32.totalorder %s232, %s246
      %p248 = scmp.eq.s32.totalorder %s33, 0
      %p249 = por %p247, %p248
      %s251 = sadd.s32 %s250, 1
      %p254 = scmp.eq.s32.totalorder %s27, 1
      %p255 = scmp.ne.s32.totalorder %s250, %s252
      %p256 = scmp.eq.s32.totalorder %s27, 0
      %p257 = por %p255, %p256
      %p258 = scmp.ne.s32.totalorder %s250, %s252
      %p259 = scmp.eq.s32.totalorder %s32, 1
      %p260 = por %p258, %p259
      %p261 = scmp.ne.s32.totalorder %s252, %s253
      %p262 = scmp.eq.s32.totalorder %s32, 0
      %p263 = por %p261, %p262
      %p264 = scmp.ne.s32.totalorder %s252, %s253
      %p265 = scmp.eq.s32.totalorder %s33, 1
      %p266 = por %p264, %p265
      %p268 = scmp.ne.s32.totalorder %s253, %s267
      %p269 = scmp.eq.s32.totalorder %s33, 0
      %p270 = por %p268, %p269
      %s272 = sadd.s32 %s271, 1
      %p275 = scmp.eq.s32.totalorder %s27, 1
      %p276 = scmp.ne.s32.totalorder %s271, %s273
      %p277 = scmp.eq.s32.totalorder %s27, 0
      %p278 = por %p276, %p277
      %p279 = scmp.ne.s32.totalorder %s271, %s273
      %p280 = scmp.eq.s32.totalorder %s32, 1
      %p281 = por %p279, %p280
      %p282 = scmp.ne.s32.totalorder %s273, %s274
      %p283 = scmp.eq.s32.totalorder %s32, 0
      %p284 = por %p282, %p283
      %p285 = scmp.ne.s32.totalorder %s273, %s274
      %p286 = scmp.eq.s32.totalorder %s33, 1
      %p287 = por %p285, %p286
      %p289 = scmp.ne.s32.totalorder %s274, %s288
      %p290 = scmp.eq.s32.totalorder %s33, 0
      %p291 = por %p289, %p290
      %s293 = sadd.s32 %s292, 1
      %p296 = scmp.eq.s32.totalorder %s27, 1
      %p297 = scmp.ne.s32.totalorder %s292, %s294
      %p298 = scmp.eq.s32.totalorder %s27, 0
      %p299 = por %p297, %p298
      %p300 = scmp.ne.s32.totalorder %s292, %s294
      %p301 = scmp.eq.s32.totalorder %s32, 1
      %p302 = por %p300, %p301
      %p303 = scmp.ne.s32.totalorder %s294, %s295
      %p304 = scmp.eq.s32.totalorder %s32, 0
      %p305 = por %p303, %p304
      %p306 = scmp.ne.s32.totalorder %s294, %s295
      %p307 = scmp.eq.s32.totalorder %s33, 1
      %p308 = por %p306, %p307
      %p310 = scmp.ne.s32.totalorder %s295, %s309
      %p311 = scmp.eq.s32.totalorder %s33, 0
      %p312 = por %p310, %p311
      %s314 = sadd.s32 %s313, 1
      %p317 = scmp.eq.s32.totalorder %s27, 1
      %p318 = scmp.ne.s32.totalorder %s313, %s315
      %p319 = scmp.eq.s32.totalorder %s27, 0
      %p320 = por %p318, %p319
      %p321 = scmp.ne.s32.totalorder %s313, %s315
      %p322 = scmp.eq.s32.totalorder %s32, 1
      %p323 = por %p321, %p322
      %p324 = scmp.ne.s32.totalorder %s315, %s316
      %p325 = scmp.eq.s32.totalorder %s32, 0
      %p326 = por %p324, %p325
      %p327 = scmp.ne.s32.totalorder %s315, %s316
      %p328 = scmp.eq.s32.totalorder %s33, 1
      %p329 = por %p327, %p328
      %p331 = scmp.ne.s32.totalorder %s316, %s330
      %p332 = scmp.eq.s32.totalorder %s33, 0
      %p333 = por %p331, %p332
      %s335 = sadd.s32 %s334, 1
      %p338 = scmp.eq.s32.totalorder %s27, 1
      %p339 = scmp.ne.s32.totalorder %s334, %s336
      %p340 = scmp.eq.s32.totalorder %s27, 0
      %p341 = por %p339, %p340
      %p342 = scmp.ne.s32.totalorder %s334, %s336
      %p343 = scmp.eq.s32.totalorder %s32, 1
      %p344 = por %p342, %p343
      %p345 = scmp.ne.s32.totalorder %s336, %s337
      %p346 = scmp.eq.s32.totalorder %s32, 0
      %p347 = por %p345, %p346
      %p348 = scmp.ne.s32.totalorder %s336, %s337
      %p349 = scmp.eq.s32.totalorder %s33, 1
      %p350 = por %p348, %p349
      %p352 = scmp.ne.s32.totalorder %s337, %s351
      %p353 = scmp.eq.s32.totalorder %s33, 0
      %p354 = por %p352, %p353
      %s356 = sadd.s32 %s355, 1
      %p359 = scmp.eq.s32.totalorder %s27, 1
      %p360 = scmp.ne.s32.totalorder %s355, %s357
      %p361 = scmp.eq.s32.totalorder %s27, 0
      %p362 = por %p360, %p361
      %p363 = scmp.ne.s32.totalorder %s355, %s357
      %p364 = scmp.eq.s32.totalorder %s32, 1
      %p365 = por %p363, %p364
      %p366 = scmp.ne.s32.totalorder %s357, %s358
      %p367 = scmp.eq.s32.totalorder %s32, 0
      %p368 = por %p366, %p367
      %p369 = scmp.ne.s32.totalorder %s357, %s358
      %p370 = scmp.eq.s32.totalorder %s33, 1
      %p371 = por %p369, %p370
      %p373 = scmp.ne.s32.totalorder %s358, %s372
      %p374 = scmp.eq.s32.totalorder %s33, 0
      %p375 = por %p373, %p374
      %s377 = sadd.s32 %s376, 1
      %p380 = scmp.eq.s32.totalorder %s27, 1
      %p381 = scmp.ne.s32.totalorder %s376, %s378
      %p382 = scmp.eq.s32.totalorder %s27, 0
      %p383 = por %p381, %p382
      %p384 = scmp.ne.s32.totalorder %s376, %s378
      %p385 = scmp.eq.s32.totalorder %s32, 1
      %p386 = por %p384, %p385
      %p387 = scmp.ne.s32.totalorder %s378, %s379
      %p388 = scmp.eq.s32.totalorder %s32, 0
      %p389 = por %p387, %p388
      %p390 = scmp.ne.s32.totalorder %s378, %s379
      %p391 = scmp.eq.s32.totalorder %s33, 1
      %p392 = por %p390, %p391
      %p394 = scmp.ne.s32.totalorder %s379, %s393
      %p395 = scmp.eq.s32.totalorder %s33, 0
      %p396 = por %p394, %p395
      %s398 = sadd.s32 %s397, 1
      %p401 = scmp.eq.s32.totalorder %s27, 1
      %p402 = scmp.ne.s32.totalorder %s397, %s399
      %p403 = scmp.eq.s32.totalorder %s27, 0
      %p404 = por %p402, %p403
      %p405 = scmp.ne.s32.totalorder %s397, %s399
      %p406 = scmp.eq.s32.totalorder %s32, 1
      %p407 = por %p405, %p406
      %p408 = scmp.ne.s32.totalorder %s399, %s400
      %p409 = scmp.eq.s32.totalorder %s32, 0
      %p410 = por %p408, %p409
      %p411 = scmp.ne.s32.totalorder %s399, %s400
      %p412 = scmp.eq.s32.totalorder %s33, 1
      %p413 = por %p411, %p412
      %p415 = scmp.ne.s32.totalorder %s400, %s414
      %p416 = scmp.eq.s32.totalorder %s33, 0
      %p417 = por %p415, %p416
      %s418 = ssub.s32 %s27, %s34
      %p419 = scmp.eq.s32.totalorder %s418, 0
      %s421 = sadd.s32 %s420, 1
      %s422 = scalar_select %p419, %s420, %s421
      %p425 = pneg %p419
      %p426 = scmp.eq.s32.totalorder %s27, 1
      %p427 = por %p425, %p426
      %p428 = scmp.ne.s32.totalorder %s420, %s423
      %p429 = scmp.eq.s32.totalorder %s27, 0
      %p430 = por %p428, %p429
      %p431 = scmp.ne.s32.totalorder %s420, %s423
      %p432 = scmp.eq.s32.totalorder %s32, 1
      %p433 = por %p431, %p432
      %p434 = scmp.ne.s32.totalorder %s423, %s424
      %p435 = scmp.eq.s32.totalorder %s32, 0
      %p436 = por %p434, %p435
      %p437 = scmp.ne.s32.totalorder %s423, %s424
      %p438 = scmp.eq.s32.totalorder %s33, 1
      %p439 = por %p437, %p438
      %p441 = scmp.ne.s32.totalorder %s424, %s440
      %p442 = scmp.eq.s32.totalorder %s33, 0
      %p443 = por %p441, %p442
      %p444 = scmp.le.s32.totalorder 1, %s27
      %p445 = scmp.lt.s32.totalorder %s27, 3
      %p446 = pnand %p444, %p445
      %p447 = pneg %p446
      // Predicated region
      $region9: #{elk_cnn_forward.1} parent=5 // pred_check
        _
      $region10: #{elk_cnn_forward.1} parent=5 // pred_check_branch
        %449 = sbr.rel (%p446) target = $region12
      $region11: #{elk_cnn_forward.1} parent=5 // pred_region
        %s450 = ssub.s32 %s27, 1
        // Predicated region
        $region13: #{elk_cnn_forward.1} parent=11 // pred_check
          %p451 = pneg %p74
        $region14: #{elk_cnn_forward.1} parent=11 // pred_check_branch
          %453 = sbr.rel (%p451) target = $region16
        $region15: #{elk_cnn_forward.1} parent=11 // pred_region
          _
        $region16: #{elk_cnn_forward.1} parent=11 // pred_fallthru
          _
        // Predicated region
        $region17: #{elk_cnn_forward.1} parent=11 // pred_check
          %p454 = pneg %p95
        $region18: #{elk_cnn_forward.1} parent=11 // pred_check_branch
          %456 = sbr.rel (%p454) target = $region20
        $region19: #{elk_cnn_forward.1} parent=11 // pred_region
          _
        $region20: #{elk_cnn_forward.1} parent=11 // pred_fallthru
          _
        // Predicated region
        $region21: #{elk_cnn_forward.1} parent=11 // pred_check
          %p457 = pneg %p116
        $region22: #{elk_cnn_forward.1} parent=11 // pred_check_branch
          %459 = sbr.rel (%p457) target = $region24
        $region23: #{elk_cnn_forward.1} parent=11 // pred_region
          _
        $region24: #{elk_cnn_forward.1} parent=11 // pred_fallthru
          _
        // Predicated region
        $region25: #{elk_cnn_forward.1} parent=11 // pred_check
          %p460 = pneg %p137
        $region26: #{elk_cnn_forward.1} parent=11 // pred_check_branch
          %462 = sbr.rel (%p460) target = $region28
        $region27: #{elk_cnn_forward.1} parent=11 // pred_region
          _
        $region28: #{elk_cnn_forward.1} parent=11 // pred_fallthru
          _
        // Predicated region
        $region29: #{elk_cnn_forward.1} parent=11 // pred_check
          %p463 = pneg %p158
        $region30: #{elk_cnn_forward.1} parent=11 // pred_check_branch
          %465 = sbr.rel (%p463) target = $region32
        $region31: #{elk_cnn_forward.1} parent=11 // pred_region
          _
        $region32: #{elk_cnn_forward.1} parent=11 // pred_fallthru
          _
        // Predicated region
        $region33: #{elk_cnn_forward.1} parent=11 // pred_check
          %p466 = pneg %p179
        $region34: #{elk_cnn_forward.1} parent=11 // pred_check_branch
          %468 = sbr.rel (%p466) target = $region36
        $region35: #{elk_cnn_forward.1} parent=11 // pred_region
          _
        $region36: #{elk_cnn_forward.1} parent=11 // pred_fallthru
          _
        // Predicated region
        $region37: #{elk_cnn_forward.1} parent=11 // pred_check
          %p469 = pneg %p200
        $region38: #{elk_cnn_forward.1} parent=11 // pred_check_branch
          %471 = sbr.rel (%p469) target = $region40
        $region39: #{elk_cnn_forward.1} parent=11 // pred_region
          _
        $region40: #{elk_cnn_forward.1} parent=11 // pred_fallthru
          _
        // Predicated region
        $region41: #{elk_cnn_forward.1} parent=11 // pred_check
          %p472 = pneg %p221
        $region42: #{elk_cnn_forward.1} parent=11 // pred_check_branch
          %474 = sbr.rel (%p472) target = $region44
        $region43: #{elk_cnn_forward.1} parent=11 // pred_region
          _
        $region44: #{elk_cnn_forward.1} parent=11 // pred_fallthru
          _
        // Predicated region
        $region45: #{elk_cnn_forward.1} parent=11 // pred_check
          %p475 = pneg %p242
        $region46: #{elk_cnn_forward.1} parent=11 // pred_check_branch
          %477 = sbr.rel (%p475) target = $region48
        $region47: #{elk_cnn_forward.1} parent=11 // pred_region
          _
        $region48: #{elk_cnn_forward.1} parent=11 // pred_fallthru
          _
        // Predicated region
        $region49: #{elk_cnn_forward.1} parent=11 // pred_check
          %p478 = pneg %p263
        $region50: #{elk_cnn_forward.1} parent=11 // pred_check_branch
          %480 = sbr.rel (%p478) target = $region52
        $region51: #{elk_cnn_forward.1} parent=11 // pred_region
          _
        $region52: #{elk_cnn_forward.1} parent=11 // pred_fallthru
          _
        // Predicated region
        $region53: #{elk_cnn_forward.1} parent=11 // pred_check
          %p481 = pneg %p284
        $region54: #{elk_cnn_forward.1} parent=11 // pred_check_branch
          %483 = sbr.rel (%p481) target = $region56
        $region55: #{elk_cnn_forward.1} parent=11 // pred_region
          _
        $region56: #{elk_cnn_forward.1} parent=11 // pred_fallthru
          _
        // Predicated region
        $region57: #{elk_cnn_forward.1} parent=11 // pred_check
          %p484 = pneg %p305
        $region58: #{elk_cnn_forward.1} parent=11 // pred_check_branch
          %486 = sbr.rel (%p484) target = $region60
        $region59: #{elk_cnn_forward.1} parent=11 // pred_region
          _
        $region60: #{elk_cnn_forward.1} parent=11 // pred_fallthru
          _
        // Predicated region
        $region61: #{elk_cnn_forward.1} parent=11 // pred_check
          %p487 = pneg %p326
        $region62: #{elk_cnn_forward.1} parent=11 // pred_check_branch
          %489 = sbr.rel (%p487) target = $region64
        $region63: #{elk_cnn_forward.1} parent=11 // pred_region
          _
        $region64: #{elk_cnn_forward.1} parent=11 // pred_fallthru
          _
        // Predicated region
        $region65: #{elk_cnn_forward.1} parent=11 // pred_check
          %p490 = pneg %p347
        $region66: #{elk_cnn_forward.1} parent=11 // pred_check_branch
          %492 = sbr.rel (%p490) target = $region68
        $region67: #{elk_cnn_forward.1} parent=11 // pred_region
          _
        $region68: #{elk_cnn_forward.1} parent=11 // pred_fallthru
          _
        // Predicated region
        $region69: #{elk_cnn_forward.1} parent=11 // pred_check
          %p493 = pneg %p368
        $region70: #{elk_cnn_forward.1} parent=11 // pred_check_branch
          %495 = sbr.rel (%p493) target = $region72
        $region71: #{elk_cnn_forward.1} parent=11 // pred_region
          _
        $region72: #{elk_cnn_forward.1} parent=11 // pred_fallthru
          _
        // Predicated region
        $region73: #{elk_cnn_forward.1} parent=11 // pred_check
          %p496 = pneg %p389
        $region74: #{elk_cnn_forward.1} parent=11 // pred_check_branch
          %498 = sbr.rel (%p496) target = $region76
        $region75: #{elk_cnn_forward.1} parent=11 // pred_region
          _
        $region76: #{elk_cnn_forward.1} parent=11 // pred_fallthru
          _
        // Predicated region
        $region77: #{elk_cnn_forward.1} parent=11 // pred_check
          %p499 = pneg %p410
        $region78: #{elk_cnn_forward.1} parent=11 // pred_check_branch
          %501 = sbr.rel (%p499) target = $region80
        $region79: #{elk_cnn_forward.1} parent=11 // pred_region
          _
        $region80: #{elk_cnn_forward.1} parent=11 // pred_fallthru
          _
      $region12: #{elk_cnn_forward.1} parent=5 // pred_fallthru
        _
      %p502 = scmp.lt.s32.totalorder %s27, 2
      // Predicated region
      $region81: #{elk_cnn_forward.1} parent=5 // pred_check
        %p503 = pneg %p502
      $region82: #{elk_cnn_forward.1} parent=5 // pred_check_branch
        %505 = sbr.rel (%p503) target = $region84
      $region83: #{elk_cnn_forward.1} parent=5 // pred_region
        // Predicated region
        $region85: #{elk_cnn_forward.1} parent=83 // pred_check
          %p506 = pneg %p47
        $region86: #{elk_cnn_forward.1} parent=83 // pred_check_branch
          %508 = sbr.rel (%p506) target = $region88
        $region87: #{elk_cnn_forward.1} parent=83 // pred_region
          %p509 = scmp.lt.s32.totalorder %s27, 1
          %s510 = scalar_select %p509, %s27, 1
          %s511 = smul.addr %s510, 6
          %s512 = smul.addr %s511, 8
          %s513 = scalar_lea.vmem %s0, %s512
        $region88: #{elk_cnn_forward.1} parent=83 // pred_fallthru
          _
      $region84: #{elk_cnn_forward.1} parent=5 // pred_fallthru
        _
      %p514 = scmp.le.s32.totalorder 1, %s27
      %p515 = scmp.lt.s32.totalorder %s27, 3
      %p516 = pnand %p514, %p515
      %p517 = pneg %p516
      // Predicated region
      $region89: #{elk_cnn_forward.1} parent=5 // pred_check
        _
      $region90: #{elk_cnn_forward.1} parent=5 // pred_check_branch
        %519 = sbr.rel (%p516) target = $region92
      $region91: #{elk_cnn_forward.1} parent=5 // pred_region
        %s520 = ssub.s32 %s27, 1
        %p521 = scmp.lt.s32.totalorder %s32, 1
        %s522 = scalar_select %p521, %s32, 1
        %s523 = smul.addr %s522, 6
        %s524 = smul.addr %s523, 8
        %s525 = scalar_lea.vmem %s0, %s524
        %p526 = pneg %p53
        %p527 = pneg %p50
        %p528 = pneg %p74
        %p529 = pneg %p71
        %p530 = pneg %p95
        %p531 = pneg %p92
        %p532 = pneg %p116
        %p533 = pneg %p113
        %p534 = pneg %p137
        %p535 = pneg %p134
        %p536 = pneg %p158
        %p537 = pneg %p155
        %p538 = pneg %p179
        %p539 = pneg %p176
        %p540 = pneg %p200
        %p541 = pneg %p197
        %p542 = pneg %p221
        %p543 = pneg %p218
        %p544 = pneg %p242
        %p545 = pneg %p239
        %p546 = pneg %p263
        %p547 = pneg %p260
        %p548 = pneg %p284
        %p549 = pneg %p281
        %p550 = pneg %p305
        %p551 = pneg %p302
        %p552 = pneg %p326
        %p553 = pneg %p323
        %p554 = pneg %p347
        %p555 = pneg %p344
        %p556 = pneg %p368
        %p557 = pneg %p365
        %p558 = pneg %p389
        %p559 = pneg %p386
        %p560 = pneg %p410
        %p561 = pneg %p407
        %p562 = pneg %p436
        %p563 = pneg %p433
        %s564 = sand.u32 %s423, 1
        %s565 = scalar_lea.sflag [#allocation5], %s564
        %s566 = sand.u32 %s423, 1
        %s567 = scalar_lea.vmem [#allocation4], %s566
        %p568 = scmp.lt.s32.totalorder %s32, 1
        %s569 = scalar_select %p568, %s32, 1
        %s570 = smul.addr %s569, 6
        %s571 = smul.addr %s570, 8
        %s572 = scalar_lea.vmem %s0, %s571
        %v573 = vld [vmem:[%s1] sm:$0xff]
        %v574 = vld [vmem:[%s2] sm:$0x1]
        %v575 = vld [vmem:[%s3] sm:$0xff]
        %v576 = vld [vmem:[%s3 + $0x8] sm:$0xff]
        %v577 = vld [vmem:[%s3 + $0x10] sm:$0xff]
        %v578 = vld [vmem:[%s3 + $0x18] sm:$0xff]
        %v579 = vld [vmem:[%s3 + $0x20] sm:$0xff]
        %v580 = vld [vmem:[%s3 + $0x28] sm:$0xff]
        %v581 = vld [vmem:[%s3 + $0x30] sm:$0xff]
        %v582 = vld [vmem:[%s3 + $0x38] sm:$0xff]
        %v583 = vld [vmem:[%s4] sm:$0x1]
        %v584 = vld [vmem:[%s6] sm:$0x1]
        %v585 = vld [vmem:[%s7] sm:$0xff]
        %v586 = vld [vmem:[%s7 + $0x8] sm:$0xff]
        %v587 = vld [vmem:[%s7 + $0x10] sm:$0xff]
        %v588 = vld [vmem:[%s7 + $0x18] sm:$0xff]
        %v589 = vld [vmem:[%s7 + $0x20] sm:$0xff]
        %v590 = vld [vmem:[%s7 + $0x28] sm:$0xff]
        %v591 = vld [vmem:[%s7 + $0x30] sm:$0xff]
        %v592 = vld [vmem:[%s7 + $0x38] sm:$0xff]
        %v593 = vld [vmem:[%s7 + $0x40] sm:$0xff]
        %v594 = vld [vmem:[%s7 + $0x48] sm:$0xff]
        %v595 = vld [vmem:[%s7 + $0x50] sm:$0xff]
        %v596 = vld [vmem:[%s7 + $0x58] sm:$0xff]
        %v597 = vld [vmem:[%s7 + $0x60] sm:$0xff]
        %v598 = vld [vmem:[%s7 + $0x68] sm:$0xff]
        %v599 = vld [vmem:[%s7 + $0x70] sm:$0xff]
        %v600 = vld [vmem:[%s7 + $0x78] sm:$0xff]
        %v601 = vld [vmem:[%s8] sm:$0x1]
        %v602 = vld [vmem:[%s9] sm:$0xff]
        %v603 = vld [vmem:[%s9 + $0x8] sm:$0xff]
        %v604 = vld [vmem:[%s9 + $0x10] sm:$0xff]
        %v605 = vld [vmem:[%s9 + $0x18] sm:$0xff]
        %v606 = vld [vmem:[%s9 + $0x20] sm:$0xff]
        %v607 = vld [vmem:[%s9 + $0x28] sm:$0xff]
        %v608 = vld [vmem:[%s9 + $0x30] sm:$0xff]
        %v609 = vld [vmem:[%s9 + $0x38] sm:$0xff]
        %v610 = vld [vmem:[%s10] sm:$0x1]
        %v611 = vld [vmem:[%s11] sm:$0x1]
        %v612 = vld [vmem:[%s12] sm:$0x1]
        %v613 = vld [vmem:[%s14] sm:$0x3]
        %v614 = vld [vmem:[%s15] sm:$0xff]
        %v615 = vld [vmem:[%s15 + $0x8] sm:$0xf]
        %v616 = vld [vmem:[%s17] sm:$0x1]
        %617 = vst [vmem:[#allocation2] sm:$0xff] 0.0
        %618 = vst [vmem:[#allocation2 + $0x8] sm:$0xff] 0.0
        %619 = vst [vmem:[#allocation2 + $0x10] sm:$0xff] 0.0
        %620 = vst [vmem:[#allocation2 + $0x18] sm:$0xff] 0.0
        %621 = vst [vmem:[#allocation2 + $0x20] sm:$0xff] 0.0
        %622 = vst [vmem:[#allocation2 + $0x28] sm:$0x1f] 0.0
        %623 = vst [vmem:[#allocation3] sm:$0xff] 0.0
        %624 = vst [vmem:[#allocation3 + $0x8] sm:$0xff] 0.0
        %625 = vst [vmem:[#allocation3 + $0x10] sm:$0x1] 0.0
        %v626 = vld [vmem:[%s572] sm:$0xff]
        %v627 = vld [vmem:[%s572 + $0x8] sm:$0x7f]
        %v629 = vperm.slane %v574, 0
        %vm631 = vcmask 64512
        %v633 = vsel %vm631, %v626, 0
        %v636 = vsel %vm631, %v627, 0
        %638 = vmatpush.msra.mxu0 0.0
        %639 = vmatpush.msra.mxu0 0.0
        %640 = vmatpush.msra.mxu0 0.0
        %641 = vmatpush.msra.mxu0 0.0
        %642 = vmatpush.msra.mxu0 0.0
        %643 = vmatpush.msra.mxu0 0.0
        %644 = vmatpush.msra.mxu0 0.0
        %645 = vmatpush.msra.mxu0 0.0
        %646 = vmatpush.msra.mxu0 0.0
        %647 = vmatpush.msra.mxu0 0.0
        %648 = vmatpush.msra.mxu0 0.0
        %649 = vmatpush.msra.mxu0 0.0
        %650 = vmatpush.msra.mxu0 0.0
        %651 = vmatpush.msra.mxu0 0.0
        %652 = vmatpush.msra.mxu0 0.0
        %653 = vmatpush.msra.mxu0 %v573
        %654 = vmatmul.f32.gmra.mxu0 %v633
        %v655 = vpop.f32.mrf.mxu0
        %v656 = vadd.f32 %v629, %v655
        %657 = vmatmul.f32.gmra.mxu0 %v636
        %v658 = vpop.f32.mrf.mxu0
        %v659 = vadd.f32 %v629, %v658
        %660 = vdwg.mxu0
        %v661 = vmax.f32 %v656, 0.0
        %v662 = vmax.f32 %v659, 0.0
        %v664 = vperm.slane %v583, 0
        %vm666 = vcmask 523264
        %v668 = vsel %vm666, %v661, 0
        %v671 = vsel %vm666, %v662, 0
        %673 = vmatpush.msra.mxu0 0.0
        %674 = vmatpush.msra.mxu0 0.0
        %675 = vmatpush.msra.mxu0 0.0
        %676 = vmatpush.msra.mxu0 0.0
        %677 = vmatpush.msra.mxu0 0.0
        %678 = vmatpush.msra.mxu0 0.0
        %679 = vmatpush.msra.mxu0 0.0
        %680 = vmatpush.msra.mxu0 0.0
        %681 = vmatpush.msra.mxu0 %v582
        %682 = vmatpush.msra.mxu0 %v581
        %683 = vmatpush.msra.mxu0 %v580
        %684 = vmatpush.msra.mxu0 %v579
        %685 = vmatpush.msra.mxu0 %v578
        %686 = vmatpush.msra.mxu0 %v577
        %687 = vmatpush.msra.mxu0 %v576
        %688 = vmatpush.msra.mxu0 %v575
        %689 = vmatmul.f32.gmra.mxu0 %v668
        %v690 = vpop.f32.mrf.mxu0
        %v691 = vadd.f32 %v664, %v690
        %692 = vmatmul.f32.gmra.mxu0 %v671
        %v693 = vpop.f32.mrf.mxu0
        %v694 = vadd.f32 %v664, %v693
        %695 = vdwg.mxu0
        %v696 = vmax.f32 %v691, 0.0
        %v697 = vmax.f32 %v694, 0.0
        %698 = vst [vmem:[#allocation2 + $0xf] sm:$0xff] %v696
        %699 = vst [vmem:[#allocation2 + $0x17] sm:$0x7f] %v697
        %v700 = vld [vmem:[#allocation2] sm:$0xff]
        %v701 = vld [vmem:[#allocation2 + $0x8] sm:$0x7f]
        %v702 = vld [vmem:[%s5] sm:$0x1]
        %v703 = vperm.slane %v702, 0
        %v704 = vmul.f32 %v700, %v703
        %v705 = vmul.f32 %v701, %v703
        %v706 = vadd.f32 %v704, 0.0
        %v707 = vadd.f32 %v705, 0.0
        %v708 = vld [vmem:[#allocation2 + $0x1] sm:$0xff]
        %v709 = vld [vmem:[#allocation2 + $0x9] sm:$0x7f]
        %v710 = vld [vmem:[%s5 + $0x1] sm:$0x1]
        %v711 = vperm.slane %v710, 0
        %v712 = vmul.f32 %v708, %v711
        %v713 = vmul.f32 %v709, %v711
        %v714 = vadd.f32 %v706, %v712
        %v715 = vadd.f32 %v707, %v713
        %v716 = vld [vmem:[#allocation2 + $0x2] sm:$0xff]
        %v717 = vld [vmem:[#allocation2 + $0xa] sm:$0x7f]
        %v718 = vld [vmem:[%s5 + $0x2] sm:$0x1]
        %v719 = vperm.slane %v718, 0
        %v720 = vmul.f32 %v716, %v719
        %v721 = vmul.f32 %v717, %v719
        %v722 = vadd.f32 %v714, %v720
        %v723 = vadd.f32 %v715, %v721
        %v724 = vld [vmem:[#allocation2 + $0x3] sm:$0xff]
        %v725 = vld [vmem:[#allocation2 + $0xb] sm:$0x7f]
        %v726 = vld [vmem:[%s5 + $0x3] sm:$0x1]
        %v727 = vperm.slane %v726, 0
        %v728 = vmul.f32 %v724, %v727
        %v729 = vmul.f32 %v725, %v727
        %v730 = vadd.f32 %v722, %v728
        %v731 = vadd.f32 %v723, %v729
        %v732 = vld [vmem:[#allocation2 + $0x4] sm:$0xff]
        %v733 = vld [vmem:[#allocation2 + $0xc] sm:$0x7f]
        %v734 = vld [vmem:[%s5 + $0x4] sm:$0x1]
        %v735 = vperm.slane %v734, 0
        %v736 = vmul.f32 %v732, %v735
        %v737 = vmul.f32 %v733, %v735
        %v738 = vadd.f32 %v730, %v736
        %v739 = vadd.f32 %v731, %v737
        %v740 = vld [vmem:[#allocation2 + $0x5] sm:$0xff]
        %v741 = vld [vmem:[#allocation2 + $0xd] sm:$0x7f]
        %v742 = vld [vmem:[%s5 + $0x5] sm:$0x1]
        %v743 = vperm.slane %v742, 0
        %v744 = vmul.f32 %v740, %v743
        %v745 = vmul.f32 %v741, %v743
        %v746 = vadd.f32 %v738, %v744
        %v747 = vadd.f32 %v739, %v745
        %v748 = vld [vmem:[#allocation2 + $0x6] sm:$0xff]
        %v749 = vld [vmem:[#allocation2 + $0xe] sm:$0x7f]
        %v750 = vld [vmem:[%s5 + $0x6] sm:$0x1]
        %v751 = vperm.slane %v750, 0
        %v752 = vmul.f32 %v748, %v751
        %v753 = vmul.f32 %v749, %v751
        %v754 = vadd.f32 %v746, %v752
        %v755 = vadd.f32 %v747, %v753
        %v756 = vld [vmem:[#allocation2 + $0x7] sm:$0xff]
        %v757 = vld [vmem:[#allocation2 + $0xf] sm:$0x7f]
        %v758 = vld [vmem:[%s5 + $0x7] sm:$0x1]
        %v759 = vperm.slane %v758, 0
        %v760 = vmul.f32 %v756, %v759
        %v761 = vmul.f32 %v757, %v759
        %v762 = vadd.f32 %v754, %v760
        %v763 = vadd.f32 %v755, %v761
        %v764 = vld [vmem:[#allocation2 + $0x8] sm:$0xff]
        %v765 = vld [vmem:[#allocation2 + $0x10] sm:$0x7f]
        %v766 = vld [vmem:[%s5 + $0x8] sm:$0x1]
        %v767 = vperm.slane %v766, 0
        %v768 = vmul.f32 %v764, %v767
        %v769 = vmul.f32 %v765, %v767
        %v770 = vadd.f32 %v762, %v768
        %v771 = vadd.f32 %v763, %v769
        %v772 = vld [vmem:[#allocation2 + $0x9] sm:$0xff]
        %v773 = vld [vmem:[#allocation2 + $0x11] sm:$0x7f]
        %v774 = vld [vmem:[%s5 + $0x9] sm:$0x1]
        %v775 = vperm.slane %v774, 0
        %v776 = vmul.f32 %v772, %v775
        %v777 = vmul.f32 %v773, %v775
        %v778 = vadd.f32 %v770, %v776
        %v779 = vadd.f32 %v771, %v777
        %v780 = vld [vmem:[#allocation2 + $0xa] sm:$0xff]
        %v781 = vld [vmem:[#allocation2 + $0x12] sm:$0x7f]
        %v782 = vld [vmem:[%s5 + $0xa] sm:$0x1]
        %v783 = vperm.slane %v782, 0
        %v784 = vmul.f32 %v780, %v783
        %v785 = vmul.f32 %v781, %v783
        %v786 = vadd.f32 %v778, %v784
        %v787 = vadd.f32 %v779, %v785
        %v788 = vld [vmem:[#allocation2 + $0xb] sm:$0xff]
        %v789 = vld [vmem:[#allocation2 + $0x13] sm:$0x7f]
        %v790 = vld [vmem:[%s5 + $0xb] sm:$0x1]
        %v791 = vperm.slane %v790, 0
        %v792 = vmul.f32 %v788, %v791
        %v793 = vmul.f32 %v789, %v791
        %v794 = vadd.f32 %v786, %v792
        %v795 = vadd.f32 %v787, %v793
        %v796 = vld [vmem:[#allocation2 + $0xc] sm:$0xff]
        %v797 = vld [vmem:[#allocation2 + $0x14] sm:$0x7f]
        %v798 = vld [vmem:[%s5 + $0xc] sm:$0x1]
        %v799 = vperm.slane %v798, 0
        %v800 = vmul.f32 %v796, %v799
        %v801 = vmul.f32 %v797, %v799
        %v802 = vadd.f32 %v794, %v800
        %v803 = vadd.f32 %v795, %v801
        %v804 = vld [vmem:[#allocation2 + $0xd] sm:$0xff]
        %v805 = vld [vmem:[#allocation2 + $0x15] sm:$0x7f]
        %v806 = vld [vmem:[%s5 + $0xd] sm:$0x1]
        %v807 = vperm.slane %v806, 0
        %v808 = vmul.f32 %v804, %v807
        %v809 = vmul.f32 %v805, %v807
        %v810 = vadd.f32 %v802, %v808
        %v811 = vadd.f32 %v803, %v809
        %v812 = vld [vmem:[#allocation2 + $0xe] sm:$0xff]
        %v813 = vld [vmem:[#allocation2 + $0x16] sm:$0x7f]
        %v814 = vld [vmem:[%s5 + $0xe] sm:$0x1]
        %v815 = vperm.slane %v814, 0
        %v816 = vmul.f32 %v812, %v815
        %v817 = vmul.f32 %v813, %v815
        %v818 = vadd.f32 %v810, %v816
        %v819 = vadd.f32 %v811, %v817
        %v820 = vld [vmem:[#allocation2 + $0xf] sm:$0xff]
        %v821 = vld [vmem:[#allocation2 + $0x17] sm:$0x7f]
        %v822 = vld [vmem:[%s5 + $0xf] sm:$0x1]
        %v823 = vperm.slane %v822, 0
        %v824 = vmul.f32 %v820, %v823
        %v825 = vmul.f32 %v821, %v823
        %v826 = vadd.f32 %v818, %v824
        %v827 = vadd.f32 %v819, %v825
        %v828 = vld [vmem:[#allocation2 + $0x10] sm:$0xff]
        %v829 = vld [vmem:[#allocation2 + $0x18] sm:$0x7f]
        %v830 = vld [vmem:[%s5 + $0x10] sm:$0x1]
        %v831 = vperm.slane %v830, 0
        %v832 = vmul.f32 %v828, %v831
        %v833 = vmul.f32 %v829, %v831
        %v834 = vadd.f32 %v826, %v832
        %v835 = vadd.f32 %v827, %v833
        %v836 = vld [vmem:[#allocation2 + $0x11] sm:$0xff]
        %v837 = vld [vmem:[#allocation2 + $0x19] sm:$0x7f]
        %v838 = vld [vmem:[%s5 + $0x11] sm:$0x1]
        %v839 = vperm.slane %v838, 0
        %v840 = vmul.f32 %v836, %v839
        %v841 = vmul.f32 %v837, %v839
        %v842 = vadd.f32 %v834, %v840
        %v843 = vadd.f32 %v835, %v841
        %v844 = vld [vmem:[#allocation2 + $0x12] sm:$0xff]
        %v845 = vld [vmem:[#allocation2 + $0x1a] sm:$0x7f]
        %v846 = vld [vmem:[%s5 + $0x12] sm:$0x1]
        %v847 = vperm.slane %v846, 0
        %v848 = vmul.f32 %v844, %v847
        %v849 = vmul.f32 %v845, %v847
        %v850 = vadd.f32 %v842, %v848
        %v851 = vadd.f32 %v843, %v849
        %v852 = vld [vmem:[#allocation2 + $0x13] sm:$0xff]
        %v853 = vld [vmem:[#allocation2 + $0x1b] sm:$0x7f]
        %v854 = vld [vmem:[%s5 + $0x13] sm:$0x1]
        %v855 = vperm.slane %v854, 0
        %v856 = vmul.f32 %v852, %v855
        %v857 = vmul.f32 %v853, %v855
        %v858 = vadd.f32 %v850, %v856
        %v859 = vadd.f32 %v851, %v857
        %v860 = vld [vmem:[#allocation2 + $0x14] sm:$0xff]
        %v861 = vld [vmem:[#allocation2 + $0x1c] sm:$0x7f]
        %v862 = vld [vmem:[%s5 + $0x14] sm:$0x1]
        %v863 = vperm.slane %v862, 0
        %v864 = vmul.f32 %v860, %v863
        %v865 = vmul.f32 %v861, %v863
        %v866 = vadd.f32 %v858, %v864
        %v867 = vadd.f32 %v859, %v865
        %v868 = vld [vmem:[#allocation2 + $0x15] sm:$0xff]
        %v869 = vld [vmem:[#allocation2 + $0x1d] sm:$0x7f]
        %v870 = vld [vmem:[%s5 + $0x15] sm:$0x1]
        %v871 = vperm.slane %v870, 0
        %v872 = vmul.f32 %v868, %v871
        %v873 = vmul.f32 %v869, %v871
        %v874 = vadd.f32 %v866, %v872
        %v875 = vadd.f32 %v867, %v873
        %v876 = vld [vmem:[#allocation2 + $0x16] sm:$0xff]
        %v877 = vld [vmem:[#allocation2 + $0x1e] sm:$0x7f]
        %v878 = vld [vmem:[%s5 + $0x16] sm:$0x1]
        %v879 = vperm.slane %v878, 0
        %v880 = vmul.f32 %v876, %v879
        %v881 = vmul.f32 %v877, %v879
        %v882 = vadd.f32 %v874, %v880
        %v883 = vadd.f32 %v875, %v881
        %v884 = vld [vmem:[#allocation2 + $0x17] sm:$0xff]
        %v885 = vld [vmem:[#allocation2 + $0x1f] sm:$0x7f]
        %v886 = vld [vmem:[%s5 + $0x17] sm:$0x1]
        %v887 = vperm.slane %v886, 0
        %v888 = vmul.f32 %v884, %v887
        %v889 = vmul.f32 %v885, %v887
        %v890 = vadd.f32 %v882, %v888
        %v891 = vadd.f32 %v883, %v889
        %v892 = vld [vmem:[#allocation2 + $0x18] sm:$0xff]
        %v893 = vld [vmem:[#allocation2 + $0x20] sm:$0x7f]
        %v894 = vld [vmem:[%s5 + $0x18] sm:$0x1]
        %v895 = vperm.slane %v894, 0
        %v896 = vmul.f32 %v892, %v895
        %v897 = vmul.f32 %v893, %v895
        %v898 = vadd.f32 %v890, %v896
        %v899 = vadd.f32 %v891, %v897
        %v900 = vld [vmem:[#allocation2 + $0x19] sm:$0xff]
        %v901 = vld [vmem:[#allocation2 + $0x21] sm:$0x7f]
        %v902 = vld [vmem:[%s5 + $0x19] sm:$0x1]
        %v903 = vperm.slane %v902, 0
        %v904 = vmul.f32 %v900, %v903
        %v905 = vmul.f32 %v901, %v903
        %v906 = vadd.f32 %v898, %v904
        %v907 = vadd.f32 %v899, %v905
        %v908 = vld [vmem:[#allocation2 + $0x1a] sm:$0xff]
        %v909 = vld [vmem:[#allocation2 + $0x22] sm:$0x7f]
        %v910 = vld [vmem:[%s5 + $0x1a] sm:$0x1]
        %v911 = vperm.slane %v910, 0
        %v912 = vmul.f32 %v908, %v911
        %v913 = vmul.f32 %v909, %v911
        %v914 = vadd.f32 %v906, %v912
        %v915 = vadd.f32 %v907, %v913
        %v916 = vld [vmem:[#allocation2 + $0x1b] sm:$0xff]
        %v917 = vld [vmem:[#allocation2 + $0x23] sm:$0x7f]
        %v918 = vld [vmem:[%s5 + $0x1b] sm:$0x1]
        %v919 = vperm.slane %v918, 0
        %v920 = vmul.f32 %v916, %v919
        %v921 = vmul.f32 %v917, %v919
        %v922 = vadd.f32 %v914, %v920
        %v923 = vadd.f32 %v915, %v921
        %v924 = vld [vmem:[#allocation2 + $0x1c] sm:$0xff]
        %v925 = vld [vmem:[#allocation2 + $0x24] sm:$0x7f]
        %v926 = vld [vmem:[%s5 + $0x1c] sm:$0x1]
        %v927 = vperm.slane %v926, 0
        %v928 = vmul.f32 %v924, %v927
        %v929 = vmul.f32 %v925, %v927
        %v930 = vadd.f32 %v922, %v928
        %v931 = vadd.f32 %v923, %v929
        %v932 = vld [vmem:[#allocation2 + $0x1d] sm:$0xff]
        %v933 = vld [vmem:[#allocation2 + $0x25] sm:$0x7f]
        %v934 = vld [vmem:[%s5 + $0x1d] sm:$0x1]
        %v935 = vperm.slane %v934, 0
        %v936 = vmul.f32 %v932, %v935
        %v937 = vmul.f32 %v933, %v935
        %v938 = vadd.f32 %v930, %v936
        %v939 = vadd.f32 %v931, %v937
        %v940 = vld [vmem:[#allocation2 + $0x1e] sm:$0xff]
        %v941 = vld [vmem:[#allocation2 + $0x26] sm:$0x7f]
        %v942 = vld [vmem:[%s5 + $0x1e] sm:$0x1]
        %v943 = vperm.slane %v942, 0
        %v944 = vmul.f32 %v940, %v943
        %v945 = vmul.f32 %v941, %v943
        %v946 = vadd.f32 %v938, %v944
        %v947 = vadd.f32 %v939, %v945
        %v949 = vperm.slane %v584, 0
        %v951 = vadd.f32 %v946, %v949
        %v952 = vadd.f32 %v947, %v949
        %v953 = vmax.f32 %v951, 0.0
        %v954 = vmax.f32 %v952, 0.0
        %v956 = vperm.slane %v601, 0
        %958 = vmatpush.msra.mxu0 %v600
        %959 = vmatpush.msra.mxu0 %v599
        %960 = vmatpush.msra.mxu0 %v598
        %961 = vmatpush.msra.mxu0 %v597
        %962 = vmatpush.msra.mxu0 %v596
        %963 = vmatpush.msra.mxu0 %v595
        %964 = vmatpush.msra.mxu0 %v594
        %965 = vmatpush.msra.mxu0 %v593
        %966 = vmatpush.msra.mxu0 %v592
        %967 = vmatpush.msra.mxu0 %v591
        %968 = vmatpush.msra.mxu0 %v590
        %969 = vmatpush.msra.mxu0 %v589
        %970 = vmatpush.msra.mxu0 %v588
        %971 = vmatpush.msra.mxu0 %v587
        %972 = vmatpush.msra.mxu0 %v586
        %973 = vmatpush.msra.mxu0 %v585
        %974 = vmatmul.f32.gmra.mxu0 %v953
        %v975 = vpop.f32.mrf.mxu0
        %v976 = vadd.f32 %v956, %v975
        %977 = vmatmul.f32.gmra.mxu0 %v954
        %v978 = vpop.f32.mrf.mxu0
        %v979 = vadd.f32 %v956, %v978
        %980 = vdwg.mxu0
        %v982 = vperm.slane %v610, 0
        %984 = vmatpush.msra.mxu0 0.0
        %985 = vmatpush.msra.mxu0 0.0
        %986 = vmatpush.msra.mxu0 0.0
        %987 = vmatpush.msra.mxu0 0.0
        %988 = vmatpush.msra.mxu0 0.0
        %989 = vmatpush.msra.mxu0 0.0
        %990 = vmatpush.msra.mxu0 0.0
        %991 = vmatpush.msra.mxu0 0.0
        %992 = vmatpush.msra.mxu0 %v609
        %993 = vmatpush.msra.mxu0 %v608
        %994 = vmatpush.msra.mxu0 %v607
        %995 = vmatpush.msra.mxu0 %v606
        %996 = vmatpush.msra.mxu0 %v605
        %997 = vmatpush.msra.mxu0 %v604
        %998 = vmatpush.msra.mxu0 %v603
        %999 = vmatpush.msra.mxu0 %v602
        %1000 = vmatmul.f32.gmra.mxu0 %v668
        %v1001 = vpop.f32.mrf.mxu0
        %v1002 = vadd.f32 %v982, %v1001
        %1003 = vmatmul.f32.gmra.mxu0 %v671
        %v1004 = vpop.f32.mrf.mxu0
        %v1005 = vadd.f32 %v982, %v1004
        %1006 = vdwg.mxu0
        %v1007 = vmax.f32 %v1002, 0.0
        %v1008 = vmax.f32 %v1005, 0.0
        %v1009 = vadd.f32 %v1007, %v976
        %v1010 = vadd.f32 %v1008, %v979
        %v1012 = vperm.slane %v611, 0
        %v1014 = vmul.f32 %v1009, %v1012
        %v1015 = vmul.f32 %v1010, %v1012
        %v1017 = vperm.slane %v612, 0
        %v1019 = vadd.f32 %v1014, %v1017
        %v1020 = vadd.f32 %v1015, %v1017
        %v1021 = vmax.f32 %v1019, 0.0
        %v1022 = vmax.f32 %v1020, 0.0
        %1023 = vst [vmem:[#allocation3 + $0x1] sm:$0xff] %v1021
        %1024 = vst [vmem:[#allocation3 + $0x9] sm:$0x7f] %v1022
        %v1025 = vld [vmem:[#allocation3] sm:$0xff]
        %v1026 = vld [vmem:[#allocation3 + $0x8] sm:$0xf]
        %v1027 = vld [vmem:[%s13] sm:$0xff]
        %v1028 = vld [vmem:[%s13 + $0x8] sm:$0xff]
        %v1029 = vld [vmem:[%s13 + $0x10] sm:$0xff]
        %v1030 = vld [vmem:[%s13 + $0x18] sm:$0xff]
        %v1031 = vld [vmem:[%s13 + $0x20] sm:$0xff]
        %v1032 = vld [vmem:[%s13 + $0x28] sm:$0xff]
        %v1033 = vld [vmem:[%s13 + $0x30] sm:$0xff]
        %v1034 = vld [vmem:[%s13 + $0x38] sm:$0xff]
        %v1035 = vld [vmem:[%s13 + $0x40] sm:$0xff]
        %v1036 = vld [vmem:[%s13 + $0x48] sm:$0xff]
        %v1037 = vld [vmem:[%s13 + $0x50] sm:$0xff]
        %v1038 = vld [vmem:[%s13 + $0x58] sm:$0xff]
        %v1039 = vld [vmem:[%s13 + $0x60] sm:$0xff]
        %v1040 = vld [vmem:[%s13 + $0x68] sm:$0xff]
        %v1041 = vld [vmem:[%s13 + $0x70] sm:$0xff]
        %v1042 = vld [vmem:[%s13 + $0x78] sm:$0xff]
        %v1043 = vld [vmem:[%s13 + $0x80] sm:$0xff]
        %v1044 = vld [vmem:[%s13 + $0x88] sm:$0xff]
        %v1045 = vld [vmem:[%s13 + $0x90] sm:$0xff]
        %v1046 = vld [vmem:[%s13 + $0x98] sm:$0xff]
        %v1047 = vld [vmem:[%s13 + $0xa0] sm:$0xff]
        %v1048 = vld [vmem:[%s13 + $0xa8] sm:$0xff]
        %v1049 = vld [vmem:[%s13 + $0xb0] sm:$0xff]
        %v1050 = vld [vmem:[%s13 + $0xb8] sm:$0xff]
        %v1051 = vld [vmem:[%s13 + $0xc0] sm:$0xff]
        %v1052 = vld [vmem:[%s13 + $0xc8] sm:$0xff]
        %v1053 = vld [vmem:[%s13 + $0xd0] sm:$0xff]
        %v1054 = vld [vmem:[%s13 + $0xd8] sm:$0xff]
        %v1055 = vld [vmem:[%s13 + $0xe0] sm:$0xff]
        %v1056 = vld [vmem:[%s13 + $0xe8] sm:$0xff]
        %v1057 = vld [vmem:[%s13 + $0xf0] sm:$0xff]
        %v1058 = vld [vmem:[%s13 + $0xf8] sm:$0xff]
        %v1059 = vld [vmem:[#allocation3 + $0x1] sm:$0xff]
        %v1060 = vld [vmem:[#allocation3 + $0x9] sm:$0xf]
        %s1061 = scalar_lea.vmem %s13, 256
        %v1062 = vld [vmem:[%s1061] sm:$0xff]
        %v1063 = vld [vmem:[%s1061 + $0x8] sm:$0xff]
        %v1064 = vld [vmem:[%s1061 + $0x10] sm:$0xff]
        %v1065 = vld [vmem:[%s1061 + $0x18] sm:$0xff]
        %v1066 = vld [vmem:[%s1061 + $0x20] sm:$0xff]
        %v1067 = vld [vmem:[%s1061 + $0x28] sm:$0xff]
        %v1068 = vld [vmem:[%s1061 + $0x30] sm:$0xff]
        %v1069 = vld [vmem:[%s1061 + $0x38] sm:$0xff]
        %v1070 = vld [vmem:[%s1061 + $0x40] sm:$0xff]
        %v1071 = vld [vmem:[%s1061 + $0x48] sm:$0xff]
        %v1072 = vld [vmem:[%s1061 + $0x50] sm:$0xff]
        %v1073 = vld [vmem:[%s1061 + $0x58] sm:$0xff]
        %v1074 = vld [vmem:[%s1061 + $0x60] sm:$0xff]
        %v1075 = vld [vmem:[%s1061 + $0x68] sm:$0xff]
        %v1076 = vld [vmem:[%s1061 + $0x70] sm:$0xff]
        %v1077 = vld [vmem:[%s1061 + $0x78] sm:$0xff]
        %v1078 = vld [vmem:[%s1061 + $0x80] sm:$0xff]
        %v1079 = vld [vmem:[%s1061 + $0x88] sm:$0xff]
        %v1080 = vld [vmem:[%s1061 + $0x90] sm:$0xff]
        %v1081 = vld [vmem:[%s1061 + $0x98] sm:$0xff]
        %v1082 = vld [vmem:[%s1061 + $0xa0] sm:$0xff]
        %v1083 = vld [vmem:[%s1061 + $0xa8] sm:$0xff]
        %v1084 = vld [vmem:[%s1061 + $0xb0] sm:$0xff]
        %v1085 = vld [vmem:[%s1061 + $0xb8] sm:$0xff]
        %v1086 = vld [vmem:[%s1061 + $0xc0] sm:$0xff]
        %v1087 = vld [vmem:[%s1061 + $0xc8] sm:$0xff]
        %v1088 = vld [vmem:[%s1061 + $0xd0] sm:$0xff]
        %v1089 = vld [vmem:[%s1061 + $0xd8] sm:$0xff]
        %v1090 = vld [vmem:[%s1061 + $0xe0] sm:$0xff]
        %v1091 = vld [vmem:[%s1061 + $0xe8] sm:$0xff]
        %v1092 = vld [vmem:[%s1061 + $0xf0] sm:$0xff]
        %v1093 = vld [vmem:[%s1061 + $0xf8] sm:$0xff]
        %1094 = vmatpush.msra.mxu0 %v1092
        %1095 = vmatpush.msra.mxu0 %v1090
        %1096 = vmatpush.msra.mxu0 %v1088
        %1097 = vmatpush.msra.mxu0 %v1086
        %1098 = vmatpush.msra.mxu0 %v1084
        %1099 = vmatpush.msra.mxu0 %v1082
        %1100 = vmatpush.msra.mxu0 %v1080
        %1101 = vmatpush.msra.mxu0 %v1078
        %1102 = vmatpush.msra.mxu0 %v1076
        %1103 = vmatpush.msra.mxu0 %v1074
        %1104 = vmatpush.msra.mxu0 %v1072
        %1105 = vmatpush.msra.mxu0 %v1070
        %1106 = vmatpush.msra.mxu0 %v1068
        %1107 = vmatpush.msra.mxu0 %v1066
        %1108 = vmatpush.msra.mxu0 %v1064
        %1109 = vmatpush.msra.mxu0 %v1062
        %1110 = vmatmul.f32.gmra.mxu0 %v1059
        %v1111 = vpop.f32.mrf.mxu0
        %v1112 = vadd.f32 0.0, %v1111
        %1113 = vmatmul.f32.gmra.mxu0 %v1060
        %v1114 = vpop.f32.mrf.mxu0
        %v1115 = vadd.f32 0.0, %v1114
        %1116 = vdwg.mxu0
        %1117 = vmatpush.msra.mxu0 %v1093
        %1118 = vmatpush.msra.mxu0 %v1091
        %1119 = vmatpush.msra.mxu0 %v1089
        %1120 = vmatpush.msra.mxu0 %v1087
        %1121 = vmatpush.msra.mxu0 %v1085
        %1122 = vmatpush.msra.mxu0 %v1083
        %1123 = vmatpush.msra.mxu0 %v1081
        %1124 = vmatpush.msra.mxu0 %v1079
        %1125 = vmatpush.msra.mxu0 %v1077
        %1126 = vmatpush.msra.mxu0 %v1075
        %1127 = vmatpush.msra.mxu0 %v1073
        %1128 = vmatpush.msra.mxu0 %v1071
        %1129 = vmatpush.msra.mxu0 %v1069
        %1130 = vmatpush.msra.mxu0 %v1067
        %1131 = vmatpush.msra.mxu0 %v1065
        %1132 = vmatpush.msra.mxu0 %v1063
        %1133 = vmatmul.f32.gmra.mxu0 %v1059
        %v1134 = vpop.f32.mrf.mxu0
        %v1135 = vadd.f32 0.0, %v1134
        %1136 = vmatmul.f32.gmra.mxu0 %v1060
        %v1137 = vpop.f32.mrf.mxu0
        %v1138 = vadd.f32 0.0, %v1137
        %1139 = vdwg.mxu0
        %1140 = vmatpush.msra.mxu0 %v1057
        %1141 = vmatpush.msra.mxu0 %v1055
        %1142 = vmatpush.msra.mxu0 %v1053
        %1143 = vmatpush.msra.mxu0 %v1051
        %1144 = vmatpush.msra.mxu0 %v1049
        %1145 = vmatpush.msra.mxu0 %v1047
        %1146 = vmatpush.msra.mxu0 %v1045
        %1147 = vmatpush.msra.mxu0 %v1043
        %1148 = vmatpush.msra.mxu0 %v1041
        %1149 = vmatpush.msra.mxu0 %v1039
        %1150 = vmatpush.msra.mxu0 %v1037
        %1151 = vmatpush.msra.mxu0 %v1035
        %1152 = vmatpush.msra.mxu0 %v1033
        %1153 = vmatpush.msra.mxu0 %v1031
        %1154 = vmatpush.msra.mxu0 %v1029
        %1155 = vmatpush.msra.mxu0 %v1027
        %1156 = vmatmul.f32.gmra.mxu0 %v1025
        %v1157 = vpop.f32.mrf.mxu0
        %v1158 = vadd.f32 %v1112, %v1157
        %1159 = vmatmul.f32.gmra.mxu0 %v1026
        %v1160 = vpop.f32.mrf.mxu0
        %v1161 = vadd.f32 %v1115, %v1160
        %1162 = vdwg.mxu0
        %1163 = vmatpush.msra.mxu0 %v1058
        %1164 = vmatpush.msra.mxu0 %v1056
        %1165 = vmatpush.msra.mxu0 %v1054
        %1166 = vmatpush.msra.mxu0 %v1052
        %1167 = vmatpush.msra.mxu0 %v1050
        %1168 = vmatpush.msra.mxu0 %v1048
        %1169 = vmatpush.msra.mxu0 %v1046
        %1170 = vmatpush.msra.mxu0 %v1044
        %1171 = vmatpush.msra.mxu0 %v1042
        %1172 = vmatpush.msra.mxu0 %v1040
        %1173 = vmatpush.msra.mxu0 %v1038
        %1174 = vmatpush.msra.mxu0 %v1036
        %1175 = vmatpush.msra.mxu0 %v1034
        %1176 = vmatpush.msra.mxu0 %v1032
        %1177 = vmatpush.msra.mxu0 %v1030
        %1178 = vmatpush.msra.mxu0 %v1028
        %1179 = vmatmul.f32.gmra.mxu0 %v1025
        %v1180 = vpop.f32.mrf.mxu0
        %v1181 = vadd.f32 %v1135, %v1180
        %1182 = vmatmul.f32.gmra.mxu0 %v1026
        %v1183 = vpop.f32.mrf.mxu0
        %v1184 = vadd.f32 %v1138, %v1183
        %1185 = vdwg.mxu0
        %v1186 = vld [vmem:[#allocation3 + $0x2] sm:$0xff]
        %v1187 = vld [vmem:[#allocation3 + $0xa] sm:$0xf]
        %s1188 = scalar_lea.vmem %s13, 512
        %v1189 = vld [vmem:[%s1188] sm:$0xff]
        %v1190 = vld [vmem:[%s1188 + $0x8] sm:$0xff]
        %v1191 = vld [vmem:[%s1188 + $0x10] sm:$0xff]
        %v1192 = vld [vmem:[%s1188 + $0x18] sm:$0xff]
        %v1193 = vld [vmem:[%s1188 + $0x20] sm:$0xff]
        %v1194 = vld [vmem:[%s1188 + $0x28] sm:$0xff]
        %v1195 = vld [vmem:[%s1188 + $0x30] sm:$0xff]
        %v1196 = vld [vmem:[%s1188 + $0x38] sm:$0xff]
        %v1197 = vld [vmem:[%s1188 + $0x40] sm:$0xff]
        %v1198 = vld [vmem:[%s1188 + $0x48] sm:$0xff]
        %v1199 = vld [vmem:[%s1188 + $0x50] sm:$0xff]
        %v1200 = vld [vmem:[%s1188 + $0x58] sm:$0xff]
        %v1201 = vld [vmem:[%s1188 + $0x60] sm:$0xff]
        %v1202 = vld [vmem:[%s1188 + $0x68] sm:$0xff]
        %v1203 = vld [vmem:[%s1188 + $0x70] sm:$0xff]
        %v1204 = vld [vmem:[%s1188 + $0x78] sm:$0xff]
        %v1205 = vld [vmem:[%s1188 + $0x80] sm:$0xff]
        %v1206 = vld [vmem:[%s1188 + $0x88] sm:$0xff]
        %v1207 = vld [vmem:[%s1188 + $0x90] sm:$0xff]
        %v1208 = vld [vmem:[%s1188 + $0x98] sm:$0xff]
        %v1209 = vld [vmem:[%s1188 + $0xa0] sm:$0xff]
        %v1210 = vld [vmem:[%s1188 + $0xa8] sm:$0xff]
        %v1211 = vld [vmem:[%s1188 + $0xb0] sm:$0xff]
        %v1212 = vld [vmem:[%s1188 + $0xb8] sm:$0xff]
        %v1213 = vld [vmem:[%s1188 + $0xc0] sm:$0xff]
        %v1214 = vld [vmem:[%s1188 + $0xc8] sm:$0xff]
        %v1215 = vld [vmem:[%s1188 + $0xd0] sm:$0xff]
        %v1216 = vld [vmem:[%s1188 + $0xd8] sm:$0xff]
        %v1217 = vld [vmem:[%s1188 + $0xe0] sm:$0xff]
        %v1218 = vld [vmem:[%s1188 + $0xe8] sm:$0xff]
        %v1219 = vld [vmem:[%s1188 + $0xf0] sm:$0xff]
        %v1220 = vld [vmem:[%s1188 + $0xf8] sm:$0xff]
        %1221 = vmatpush.msra.mxu0 %v1219
        %1222 = vmatpush.msra.mxu0 %v1217
        %1223 = vmatpush.msra.mxu0 %v1215
        %1224 = vmatpush.msra.mxu0 %v1213
        %1225 = vmatpush.msra.mxu0 %v1211
        %1226 = vmatpush.msra.mxu0 %v1209
        %1227 = vmatpush.msra.mxu0 %v1207
        %1228 = vmatpush.msra.mxu0 %v1205
        %1229 = vmatpush.msra.mxu0 %v1203
        %1230 = vmatpush.msra.mxu0 %v1201
        %1231 = vmatpush.msra.mxu0 %v1199
        %1232 = vmatpush.msra.mxu0 %v1197
        %1233 = vmatpush.msra.mxu0 %v1195
        %1234 = vmatpush.msra.mxu0 %v1193
        %1235 = vmatpush.msra.mxu0 %v1191
        %1236 = vmatpush.msra.mxu0 %v1189
        %1237 = vmatmul.f32.gmra.mxu0 %v1186
        %v1238 = vpop.f32.mrf.mxu0
        %v1239 = vadd.f32 0.0, %v1238
        %1240 = vmatmul.f32.gmra.mxu0 %v1187
        %v1241 = vpop.f32.mrf.mxu0
        %v1242 = vadd.f32 0.0, %v1241
        %1243 = vdwg.mxu0
        %1244 = vmatpush.msra.mxu0 %v1220
        %1245 = vmatpush.msra.mxu0 %v1218
        %1246 = vmatpush.msra.mxu0 %v1216
        %1247 = vmatpush.msra.mxu0 %v1214
        %1248 = vmatpush.msra.mxu0 %v1212
        %1249 = vmatpush.msra.mxu0 %v1210
        %1250 = vmatpush.msra.mxu0 %v1208
        %1251 = vmatpush.msra.mxu0 %v1206
        %1252 = vmatpush.msra.mxu0 %v1204
        %1253 = vmatpush.msra.mxu0 %v1202
        %1254 = vmatpush.msra.mxu0 %v1200
        %1255 = vmatpush.msra.mxu0 %v1198
        %1256 = vmatpush.msra.mxu0 %v1196
        %1257 = vmatpush.msra.mxu0 %v1194
        %1258 = vmatpush.msra.mxu0 %v1192
        %1259 = vmatpush.msra.mxu0 %v1190
        %1260 = vmatmul.f32.gmra.mxu0 %v1186
        %v1261 = vpop.f32.mrf.mxu0
        %v1262 = vadd.f32 0.0, %v1261
        %1263 = vmatmul.f32.gmra.mxu0 %v1187
        %v1264 = vpop.f32.mrf.mxu0
        %v1265 = vadd.f32 0.0, %v1264
        %1266 = vdwg.mxu0
        %v1267 = vadd.f32 %v1158, %v1239
        %v1268 = vadd.f32 %v1181, %v1262
        %v1269 = vadd.f32 %v1161, %v1242
        %v1270 = vadd.f32 %v1184, %v1265
        %v1271 = vld [vmem:[#allocation3 + $0x3] sm:$0xff]
        %v1272 = vld [vmem:[#allocation3 + $0xb] sm:$0xf]
        %s1273 = scalar_lea.vmem %s13, 768
        %v1274 = vld [vmem:[%s1273] sm:$0xff]
        %v1275 = vld [vmem:[%s1273 + $0x8] sm:$0xff]
        %v1276 = vld [vmem:[%s1273 + $0x10] sm:$0xff]
        %v1277 = vld [vmem:[%s1273 + $0x18] sm:$0xff]
        %v1278 = vld [vmem:[%s1273 + $0x20] sm:$0xff]
        %v1279 = vld [vmem:[%s1273 + $0x28] sm:$0xff]
        %v1280 = vld [vmem:[%s1273 + $0x30] sm:$0xff]
        %v1281 = vld [vmem:[%s1273 + $0x38] sm:$0xff]
        %v1282 = vld [vmem:[%s1273 + $0x40] sm:$0xff]
        %v1283 = vld [vmem:[%s1273 + $0x48] sm:$0xff]
        %v1284 = vld [vmem:[%s1273 + $0x50] sm:$0xff]
        %v1285 = vld [vmem:[%s1273 + $0x58] sm:$0xff]
        %v1286 = vld [vmem:[%s1273 + $0x60] sm:$0xff]
        %v1287 = vld [vmem:[%s1273 + $0x68] sm:$0xff]
        %v1288 = vld [vmem:[%s1273 + $0x70] sm:$0xff]
        %v1289 = vld [vmem:[%s1273 + $0x78] sm:$0xff]
        %v1290 = vld [vmem:[%s1273 + $0x80] sm:$0xff]
        %v1291 = vld [vmem:[%s1273 + $0x88] sm:$0xff]
        %v1292 = vld [vmem:[%s1273 + $0x90] sm:$0xff]
        %v1293 = vld [vmem:[%s1273 + $0x98] sm:$0xff]
        %v1294 = vld [vmem:[%s1273 + $0xa0] sm:$0xff]
        %v1295 = vld [vmem:[%s1273 + $0xa8] sm:$0xff]
        %v1296 = vld [vmem:[%s1273 + $0xb0] sm:$0xff]
        %v1297 = vld [vmem:[%s1273 + $0xb8] sm:$0xff]
        %v1298 = vld [vmem:[%s1273 + $0xc0] sm:$0xff]
        %v1299 = vld [vmem:[%s1273 + $0xc8] sm:$0xff]
        %v1300 = vld [vmem:[%s1273 + $0xd0] sm:$0xff]
        %v1301 = vld [vmem:[%s1273 + $0xd8] sm:$0xff]
        %v1302 = vld [vmem:[%s1273 + $0xe0] sm:$0xff]
        %v1303 = vld [vmem:[%s1273 + $0xe8] sm:$0xff]
        %v1304 = vld [vmem:[%s1273 + $0xf0] sm:$0xff]
        %v1305 = vld [vmem:[%s1273 + $0xf8] sm:$0xff]
        %1306 = vmatpush.msra.mxu0 %v1304
        %1307 = vmatpush.msra.mxu0 %v1302
        %1308 = vmatpush.msra.mxu0 %v1300
        %1309 = vmatpush.msra.mxu0 %v1298
        %1310 = vmatpush.msra.mxu0 %v1296
        %1311 = vmatpush.msra.mxu0 %v1294
        %1312 = vmatpush.msra.mxu0 %v1292
        %1313 = vmatpush.msra.mxu0 %v1290
        %1314 = vmatpush.msra.mxu0 %v1288
        %1315 = vmatpush.msra.mxu0 %v1286
        %1316 = vmatpush.msra.mxu0 %v1284
        %1317 = vmatpush.msra.mxu0 %v1282
        %1318 = vmatpush.msra.mxu0 %v1280
        %1319 = vmatpush.msra.mxu0 %v1278
        %1320 = vmatpush.msra.mxu0 %v1276
        %1321 = vmatpush.msra.mxu0 %v1274
        %1322 = vmatmul.f32.gmra.mxu0 %v1271
        %v1323 = vpop.f32.mrf.mxu0
        %v1324 = vadd.f32 0.0, %v1323
        %1325 = vmatmul.f32.gmra.mxu0 %v1272
        %v1326 = vpop.f32.mrf.mxu0
        %v1327 = vadd.f32 0.0, %v1326
        %1328 = vdwg.mxu0
        %1329 = vmatpush.msra.mxu0 %v1305
        %1330 = vmatpush.msra.mxu0 %v1303
        %1331 = vmatpush.msra.mxu0 %v1301
        %1332 = vmatpush.msra.mxu0 %v1299
        %1333 = vmatpush.msra.mxu0 %v1297
        %1334 = vmatpush.msra.mxu0 %v1295
        %1335 = vmatpush.msra.mxu0 %v1293
        %1336 = vmatpush.msra.mxu0 %v1291
        %1337 = vmatpush.msra.mxu0 %v1289
        %1338 = vmatpush.msra.mxu0 %v1287
        %1339 = vmatpush.msra.mxu0 %v1285
        %1340 = vmatpush.msra.mxu0 %v1283
        %1341 = vmatpush.msra.mxu0 %v1281
        %1342 = vmatpush.msra.mxu0 %v1279
        %1343 = vmatpush.msra.mxu0 %v1277
        %1344 = vmatpush.msra.mxu0 %v1275
        %1345 = vmatmul.f32.gmra.mxu0 %v1271
        %v1346 = vpop.f32.mrf.mxu0
        %v1347 = vadd.f32 0.0, %v1346
        %1348 = vmatmul.f32.gmra.mxu0 %v1272
        %v1349 = vpop.f32.mrf.mxu0
        %v1350 = vadd.f32 0.0, %v1349
        %1351 = vdwg.mxu0
        %v1352 = vadd.f32 %v1267, %v1324
        %v1353 = vadd.f32 %v1268, %v1347
        %v1354 = vadd.f32 %v1269, %v1327
        %v1355 = vadd.f32 %v1270, %v1350
        %v1356 = vld [vmem:[#allocation3 + $0x4] sm:$0xff]
        %v1357 = vld [vmem:[#allocation3 + $0xc] sm:$0xf]
        %s1358 = scalar_lea.vmem %s13, 1024
        %v1359 = vld [vmem:[%s1358] sm:$0xff]
        %v1360 = vld [vmem:[%s1358 + $0x8] sm:$0xff]
        %v1361 = vld [vmem:[%s1358 + $0x10] sm:$0xff]
        %v1362 = vld [vmem:[%s1358 + $0x18] sm:$0xff]
        %v1363 = vld [vmem:[%s1358 + $0x20] sm:$0xff]
        %v1364 = vld [vmem:[%s1358 + $0x28] sm:$0xff]
        %v1365 = vld [vmem:[%s1358 + $0x30] sm:$0xff]
        %v1366 = vld [vmem:[%s1358 + $0x38] sm:$0xff]
        %v1367 = vld [vmem:[%s1358 + $0x40] sm:$0xff]
        %v1368 = vld [vmem:[%s1358 + $0x48] sm:$0xff]
        %v1369 = vld [vmem:[%s1358 + $0x50] sm:$0xff]
        %v1370 = vld [vmem:[%s1358 + $0x58] sm:$0xff]
        %v1371 = vld [vmem:[%s1358 + $0x60] sm:$0xff]
        %v1372 = vld [vmem:[%s1358 + $0x68] sm:$0xff]
        %v1373 = vld [vmem:[%s1358 + $0x70] sm:$0xff]
        %v1374 = vld [vmem:[%s1358 + $0x78] sm:$0xff]
        %v1375 = vld [vmem:[%s1358 + $0x80] sm:$0xff]
        %v1376 = vld [vmem:[%s1358 + $0x88] sm:$0xff]
        %v1377 = vld [vmem:[%s1358 + $0x90] sm:$0xff]
        %v1378 = vld [vmem:[%s1358 + $0x98] sm:$0xff]
        %v1379 = vld [vmem:[%s1358 + $0xa0] sm:$0xff]
        %v1380 = vld [vmem:[%s1358 + $0xa8] sm:$0xff]
        %v1381 = vld [vmem:[%s1358 + $0xb0] sm:$0xff]
        %v1382 = vld [vmem:[%s1358 + $0xb8] sm:$0xff]
        %v1383 = vld [vmem:[%s1358 + $0xc0] sm:$0xff]
        %v1384 = vld [vmem:[%s1358 + $0xc8] sm:$0xff]
        %v1385 = vld [vmem:[%s1358 + $0xd0] sm:$0xff]
        %v1386 = vld [vmem:[%s1358 + $0xd8] sm:$0xff]
        %v1387 = vld [vmem:[%s1358 + $0xe0] sm:$0xff]
        %v1388 = vld [vmem:[%s1358 + $0xe8] sm:$0xff]
        %v1389 = vld [vmem:[%s1358 + $0xf0] sm:$0xff]
        %v1390 = vld [vmem:[%s1358 + $0xf8] sm:$0xff]
        %1391 = vmatpush.msra.mxu0 %v1389
        %1392 = vmatpush.msra.mxu0 %v1387
        %1393 = vmatpush.msra.mxu0 %v1385
        %1394 = vmatpush.msra.mxu0 %v1383
        %1395 = vmatpush.msra.mxu0 %v1381
        %1396 = vmatpush.msra.mxu0 %v1379
        %1397 = vmatpush.msra.mxu0 %v1377
        %1398 = vmatpush.msra.mxu0 %v1375
        %1399 = vmatpush.msra.mxu0 %v1373
        %1400 = vmatpush.msra.mxu0 %v1371
        %1401 = vmatpush.msra.mxu0 %v1369
        %1402 = vmatpush.msra.mxu0 %v1367
        %1403 = vmatpush.msra.mxu0 %v1365
        %1404 = vmatpush.msra.mxu0 %v1363
        %1405 = vmatpush.msra.mxu0 %v1361
        %1406 = vmatpush.msra.mxu0 %v1359
        %1407 = vmatmul.f32.gmra.mxu0 %v1356
        %v1408 = vpop.f32.mrf.mxu0
        %v1409 = vadd.f32 0.0, %v1408
        %1410 = vmatmul.f32.gmra.mxu0 %v1357
        %v1411 = vpop.f32.mrf.mxu0
        %v1412 = vadd.f32 0.0, %v1411
        %1413 = vdwg.mxu0
        %1414 = vmatpush.msra.mxu0 %v1390
        %1415 = vmatpush.msra.mxu0 %v1388
        %1416 = vmatpush.msra.mxu0 %v1386
        %1417 = vmatpush.msra.mxu0 %v1384
        %1418 = vmatpush.msra.mxu0 %v1382
        %1419 = vmatpush.msra.mxu0 %v1380
        %1420 = vmatpush.msra.mxu0 %v1378
        %1421 = vmatpush.msra.mxu0 %v1376
        %1422 = vmatpush.msra.mxu0 %v1374
        %1423 = vmatpush.msra.mxu0 %v1372
        %1424 = vmatpush.msra.mxu0 %v1370
        %1425 = vmatpush.msra.mxu0 %v1368
        %1426 = vmatpush.msra.mxu0 %v1366
        %1427 = vmatpush.msra.mxu0 %v1364
        %1428 = vmatpush.msra.mxu0 %v1362
        %1429 = vmatpush.msra.mxu0 %v1360
        %1430 = vmatmul.f32.gmra.mxu0 %v1356
        %v1431 = vpop.f32.mrf.mxu0
        %v1432 = vadd.f32 0.0, %v1431
        %1433 = vmatmul.f32.gmra.mxu0 %v1357
        %v1434 = vpop.f32.mrf.mxu0
        %v1435 = vadd.f32 0.0, %v1434
        %1436 = vdwg.mxu0
        %v1437 = vadd.f32 %v1352, %v1409
        %v1438 = vadd.f32 %v1353, %v1432
        %v1439 = vadd.f32 %v1354, %v1412
        %v1440 = vadd.f32 %v1355, %v1435
        %v1441 = vld [vmem:[#allocation3 + $0x5] sm:$0xff]
        %v1442 = vld [vmem:[#allocation3 + $0xd] sm:$0xf]
        %s1443 = scalar_lea.vmem %s13, 1280
        %v1444 = vld [vmem:[%s1443] sm:$0xff]
        %v1445 = vld [vmem:[%s1443 + $0x8] sm:$0xff]
        %v1446 = vld [vmem:[%s1443 + $0x10] sm:$0xff]
        %v1447 = vld [vmem:[%s1443 + $0x18] sm:$0xff]
        %v1448 = vld [vmem:[%s1443 + $0x20] sm:$0xff]
        %v1449 = vld [vmem:[%s1443 + $0x28] sm:$0xff]
        %v1450 = vld [vmem:[%s1443 + $0x30] sm:$0xff]
        %v1451 = vld [vmem:[%s1443 + $0x38] sm:$0xff]
        %v1452 = vld [vmem:[%s1443 + $0x40] sm:$0xff]
        %v1453 = vld [vmem:[%s1443 + $0x48] sm:$0xff]
        %v1454 = vld [vmem:[%s1443 + $0x50] sm:$0xff]
        %v1455 = vld [vmem:[%s1443 + $0x58] sm:$0xff]
        %v1456 = vld [vmem:[%s1443 + $0x60] sm:$0xff]
        %v1457 = vld [vmem:[%s1443 + $0x68] sm:$0xff]
        %v1458 = vld [vmem:[%s1443 + $0x70] sm:$0xff]
        %v1459 = vld [vmem:[%s1443 + $0x78] sm:$0xff]
        %v1460 = vld [vmem:[%s1443 + $0x80] sm:$0xff]
        %v1461 = vld [vmem:[%s1443 + $0x88] sm:$0xff]
        %v1462 = vld [vmem:[%s1443 + $0x90] sm:$0xff]
        %v1463 = vld [vmem:[%s1443 + $0x98] sm:$0xff]
        %v1464 = vld [vmem:[%s1443 + $0xa0] sm:$0xff]
        %v1465 = vld [vmem:[%s1443 + $0xa8] sm:$0xff]
        %v1466 = vld [vmem:[%s1443 + $0xb0] sm:$0xff]
        %v1467 = vld [vmem:[%s1443 + $0xb8] sm:$0xff]
        %v1468 = vld [vmem:[%s1443 + $0xc0] sm:$0xff]
        %v1469 = vld [vmem:[%s1443 + $0xc8] sm:$0xff]
        %v1470 = vld [vmem:[%s1443 + $0xd0] sm:$0xff]
        %v1471 = vld [vmem:[%s1443 + $0xd8] sm:$0xff]
        %v1472 = vld [vmem:[%s1443 + $0xe0] sm:$0xff]
        %v1473 = vld [vmem:[%s1443 + $0xe8] sm:$0xff]
        %v1474 = vld [vmem:[%s1443 + $0xf0] sm:$0xff]
        %v1475 = vld [vmem:[%s1443 + $0xf8] sm:$0xff]
        %1476 = vmatpush.msra.mxu0 %v1474
        %1477 = vmatpush.msra.mxu0 %v1472
        %1478 = vmatpush.msra.mxu0 %v1470
        %1479 = vmatpush.msra.mxu0 %v1468
        %1480 = vmatpush.msra.mxu0 %v1466
        %1481 = vmatpush.msra.mxu0 %v1464
        %1482 = vmatpush.msra.mxu0 %v1462
        %1483 = vmatpush.msra.mxu0 %v1460
        %1484 = vmatpush.msra.mxu0 %v1458
        %1485 = vmatpush.msra.mxu0 %v1456
        %1486 = vmatpush.msra.mxu0 %v1454
        %1487 = vmatpush.msra.mxu0 %v1452
        %1488 = vmatpush.msra.mxu0 %v1450
        %1489 = vmatpush.msra.mxu0 %v1448
        %1490 = vmatpush.msra.mxu0 %v1446
        %1491 = vmatpush.msra.mxu0 %v1444
        %1492 = vmatmul.f32.gmra.mxu0 %v1441
        %v1493 = vpop.f32.mrf.mxu0
        %v1494 = vadd.f32 0.0, %v1493
        %1495 = vmatmul.f32.gmra.mxu0 %v1442
        %v1496 = vpop.f32.mrf.mxu0
        %v1497 = vadd.f32 0.0, %v1496
        %1498 = vdwg.mxu0
        %1499 = vmatpush.msra.mxu0 %v1475
        %1500 = vmatpush.msra.mxu0 %v1473
        %1501 = vmatpush.msra.mxu0 %v1471
        %1502 = vmatpush.msra.mxu0 %v1469
        %1503 = vmatpush.msra.mxu0 %v1467
        %1504 = vmatpush.msra.mxu0 %v1465
        %1505 = vmatpush.msra.mxu0 %v1463
        %1506 = vmatpush.msra.mxu0 %v1461
        %1507 = vmatpush.msra.mxu0 %v1459
        %1508 = vmatpush.msra.mxu0 %v1457
        %1509 = vmatpush.msra.mxu0 %v1455
        %1510 = vmatpush.msra.mxu0 %v1453
        %1511 = vmatpush.msra.mxu0 %v1451
        %1512 = vmatpush.msra.mxu0 %v1449
        %1513 = vmatpush.msra.mxu0 %v1447
        %1514 = vmatpush.msra.mxu0 %v1445
        %1515 = vmatmul.f32.gmra.mxu0 %v1441
        %v1516 = vpop.f32.mrf.mxu0
        %v1517 = vadd.f32 0.0, %v1516
        %1518 = vmatmul.f32.gmra.mxu0 %v1442
        %v1519 = vpop.f32.mrf.mxu0
        %v1520 = vadd.f32 0.0, %v1519
        %1521 = vdwg.mxu0
        %v1522 = vadd.f32 %v1437, %v1494
        %v1523 = vadd.f32 %v1438, %v1517
        %v1524 = vadd.f32 %v1439, %v1497
        %v1525 = vadd.f32 %v1440, %v1520
        %v1527 = vperm.slane %v613, 0
        %v1528 = vperm.slane %v613, 1
        %v1531 = vadd.f32 %v1522, %v1527
        %v1532 = vadd.f32 %v1523, %v1528
        %v1533 = vadd.f32 %v1524, %v1527
        %v1534 = vadd.f32 %v1525, %v1528
        %v1535 = vmax.f32 %v1531, 0.0
        %v1536 = vmax.f32 %v1532, 0.0
        %v1537 = vmax.f32 %v1533, 0.0
        %v1538 = vmax.f32 %v1534, 0.0
        %1540 = vset.pattern.permute.xlu0 0
        %1541 = vperm.xlu0 %1540, %v614
        %v1542 = vpop.permute.xlu0 %1541
        %1545 = vset.pattern.permute.xlu0 0
        %1546 = vperm.xlu0 %1545, %v615
        %v1547 = vpop.permute.xlu0 %1546
        %v1549 = vmul.f32 %v1535, %v1542
        %v1550 = vmul.f32 %v1536, %v1542
        %v1551 = vmul.f32 %v1537, %v1547
        %v1552 = vmul.f32 %v1538, %v1547
        %vm1553 = vcmask 1043456
        %v1554 = vsel %vm1553, %v1551, 0.0
        %v1555 = vadd.f32 %v1549, %v1554
        %v1556 = vrot.slane %v1555, 4
        %v1557 = vadd.f32 %v1555, %v1556
        %v1558 = vrot.slane %v1557, 2
        %v1559 = vadd.f32 %v1557, %v1558
        %v1560 = vrot.slane %v1559, 1
        %v1561 = vadd.f32 %v1559, %v1560
        %v1562 = vsel %vm1553, %v1552, 0.0
        %v1563 = vadd.f32 %v1550, %v1562
        %v1564 = vrot.slane %v1563, 4
        %v1565 = vadd.f32 %v1563, %v1564
        %v1566 = vrot.slane %v1565, 2
        %v1567 = vadd.f32 %v1565, %v1566
        %v1568 = vrot.slane %v1567, 1
        %v1569 = vadd.f32 %v1567, %v1568
        %v1570 = vld [vmem:[%s16] sm:$0xff]
        %v1571 = vld [vmem:[%s16 + $0x8] sm:$0xff]
        %v1572 = vld [vmem:[%s16 + $0x10] sm:$0xff]
        %v1573 = vld [vmem:[%s16 + $0x18] sm:$0xff]
        %v1574 = vld [vmem:[%s16 + $0x20] sm:$0xff]
        %v1575 = vld [vmem:[%s16 + $0x28] sm:$0xff]
        %v1576 = vld [vmem:[%s16 + $0x30] sm:$0xff]
        %v1577 = vld [vmem:[%s16 + $0x38] sm:$0xff]
        %v1578 = vld [vmem:[%s16 + $0x40] sm:$0xff]
        %v1579 = vld [vmem:[%s16 + $0x48] sm:$0xff]
        %v1580 = vld [vmem:[%s16 + $0x50] sm:$0xff]
        %v1581 = vld [vmem:[%s16 + $0x58] sm:$0xff]
        %v1582 = vld [vmem:[%s16 + $0x60] sm:$0xff]
        %v1583 = vld [vmem:[%s16 + $0x68] sm:$0xff]
        %v1584 = vld [vmem:[%s16 + $0x70] sm:$0xff]
        %v1585 = vld [vmem:[%s16 + $0x78] sm:$0xff]
        %v1586 = vld [vmem:[%s16 + $0x80] sm:$0xff]
        %v1587 = vld [vmem:[%s16 + $0x88] sm:$0xff]
        %v1588 = vld [vmem:[%s16 + $0x90] sm:$0xff]
        %v1589 = vld [vmem:[%s16 + $0x98] sm:$0xff]
        %v1590 = vld [vmem:[%s16 + $0xa0] sm:$0xff]
        %v1591 = vld [vmem:[%s16 + $0xa8] sm:$0xff]
        %v1592 = vld [vmem:[%s16 + $0xb0] sm:$0xff]
        %v1593 = vld [vmem:[%s16 + $0xb8] sm:$0xff]
        %v1594 = vld [vmem:[%s16 + $0xc0] sm:$0xff]
        %v1595 = vld [vmem:[%s16 + $0xc8] sm:$0xff]
        %v1596 = vld [vmem:[%s16 + $0xd0] sm:$0xff]
        %v1597 = vld [vmem:[%s16 + $0xd8] sm:$0xff]
        %v1598 = vld [vmem:[%s16 + $0xe0] sm:$0xff]
        %v1599 = vld [vmem:[%s16 + $0xe8] sm:$0xff]
        %v1600 = vld [vmem:[%s16 + $0xf0] sm:$0xff]
        %v1601 = vld [vmem:[%s16 + $0xf8] sm:$0xff]
        %s1602 = scalar_lea.vmem %s572, 16
        %v1603 = vld [vmem:[%s1602] sm:$0xff]
        %v1604 = vld [vmem:[%s1602 + $0x8] sm:$0x7f]
        %v1606 = vsel %vm631, %v1603, 0
        %v1609 = vsel %vm631, %v1604, 0
        %1611 = vmatpush.msra.mxu0 0.0
        %1612 = vmatpush.msra.mxu0 0.0
        %1613 = vmatpush.msra.mxu0 0.0
        %1614 = vmatpush.msra.mxu0 0.0
        %1615 = vmatpush.msra.mxu0 0.0
        %1616 = vmatpush.msra.mxu0 0.0
        %1617 = vmatpush.msra.mxu0 0.0
        %1618 = vmatpush.msra.mxu0 0.0
        %1619 = vmatpush.msra.mxu0 0.0
        %1620 = vmatpush.msra.mxu0 0.0
        %1621 = vmatpush.msra.mxu0 0.0
        %1622 = vmatpush.msra.mxu0 0.0
        %1623 = vmatpush.msra.mxu0 0.0
        %1624 = vmatpush.msra.mxu0 0.0
        %1625 = vmatpush.msra.mxu0 0.0
        %1626 = vmatpush.msra.mxu0 %v573
        %1627 = vmatmul.f32.gmra.mxu0 %v1606
        %v1628 = vpop.f32.mrf.mxu0
        %v1629 = vadd.f32 %v629, %v1628
        %1630 = vmatmul.f32.gmra.mxu0 %v1609
        %v1631 = vpop.f32.mrf.mxu0
        %v1632 = vadd.f32 %v629, %v1631
        %1633 = vdwg.mxu0
        %v1634 = vmax.f32 %v1629, 0.0
        %v1635 = vmax.f32 %v1632, 0.0
        %v1637 = vsel %vm666, %v1634, 0
        %v1640 = vsel %vm666, %v1635, 0
        %1642 = vmatpush.msra.mxu0 0.0
        %1643 = vmatpush.msra.mxu0 0.0
        %1644 = vmatpush.msra.mxu0 0.0
        %1645 = vmatpush.msra.mxu0 0.0
        %1646 = vmatpush.msra.mxu0 0.0
        %1647 = vmatpush.msra.mxu0 0.0
        %1648 = vmatpush.msra.mxu0 0.0
        %1649 = vmatpush.msra.mxu0 0.0
        %1650 = vmatpush.msra.mxu0 %v582
        %1651 = vmatpush.msra.mxu0 %v581
        %1652 = vmatpush.msra.mxu0 %v580
        %1653 = vmatpush.msra.mxu0 %v579
        %1654 = vmatpush.msra.mxu0 %v578
        %1655 = vmatpush.msra.mxu0 %v577
        %1656 = vmatpush.msra.mxu0 %v576
        %1657 = vmatpush.msra.mxu0 %v575
        %1658 = vmatmul.f32.gmra.mxu0 %v1637
        %v1659 = vpop.f32.mrf.mxu0
        %v1660 = vadd.f32 %v664, %v1659
        %1661 = vmatmul.f32.gmra.mxu0 %v1640
        %v1662 = vpop.f32.mrf.mxu0
        %v1663 = vadd.f32 %v664, %v1662
        %1664 = vdwg.mxu0
        %v1665 = vmax.f32 %v1660, 0.0
        %v1666 = vmax.f32 %v1663, 0.0
        %1667 = vst [vmem:[#allocation2 + $0xf] sm:$0xff] %v1665
        %1668 = vst [vmem:[#allocation2 + $0x17] sm:$0x7f] %v1666
        %v1669 = vld [vmem:[#allocation2] sm:$0xff]
        %v1670 = vld [vmem:[#allocation2 + $0x8] sm:$0x7f]
        %v1671 = vld [vmem:[%s5] sm:$0x1]
        %v1672 = vperm.slane %v1671, 0
        %v1673 = vmul.f32 %v1669, %v1672
        %v1674 = vmul.f32 %v1670, %v1672
        %v1675 = vadd.f32 %v1673, 0.0
        %v1676 = vadd.f32 %v1674, 0.0
        %v1677 = vld [vmem:[#allocation2 + $0x1] sm:$0xff]
        %v1678 = vld [vmem:[#allocation2 + $0x9] sm:$0x7f]
        %v1679 = vld [vmem:[%s5 + $0x1] sm:$0x1]
        %v1680 = vperm.slane %v1679, 0
        %v1681 = vmul.f32 %v1677, %v1680
        %v1682 = vmul.f32 %v1678, %v1680
        %v1683 = vadd.f32 %v1675, %v1681
        %v1684 = vadd.f32 %v1676, %v1682
        %v1685 = vld [vmem:[#allocation2 + $0x2] sm:$0xff]
        %v1686 = vld [vmem:[#allocation2 + $0xa] sm:$0x7f]
        %v1687 = vld [vmem:[%s5 + $0x2] sm:$0x1]
        %v1688 = vperm.slane %v1687, 0
        %v1689 = vmul.f32 %v1685, %v1688
        %v1690 = vmul.f32 %v1686, %v1688
        %v1691 = vadd.f32 %v1683, %v1689
        %v1692 = vadd.f32 %v1684, %v1690
        %v1693 = vld [vmem:[#allocation2 + $0x3] sm:$0xff]
        %v1694 = vld [vmem:[#allocation2 + $0xb] sm:$0x7f]
        %v1695 = vld [vmem:[%s5 + $0x3] sm:$0x1]
        %v1696 = vperm.slane %v1695, 0
        %v1697 = vmul.f32 %v1693, %v1696
        %v1698 = vmul.f32 %v1694, %v1696
        %v1699 = vadd.f32 %v1691, %v1697
        %v1700 = vadd.f32 %v1692, %v1698
        %v1701 = vld [vmem:[#allocation2 + $0x4] sm:$0xff]
        %v1702 = vld [vmem:[#allocation2 + $0xc] sm:$0x7f]
        %v1703 = vld [vmem:[%s5 + $0x4] sm:$0x1]
        %v1704 = vperm.slane %v1703, 0
        %v1705 = vmul.f32 %v1701, %v1704
        %v1706 = vmul.f32 %v1702, %v1704
        %v1707 = vadd.f32 %v1699, %v1705
        %v1708 = vadd.f32 %v1700, %v1706
        %v1709 = vld [vmem:[#allocation2 + $0x5] sm:$0xff]
        %v1710 = vld [vmem:[#allocation2 + $0xd] sm:$0x7f]
        %v1711 = vld [vmem:[%s5 + $0x5] sm:$0x1]
        %v1712 = vperm.slane %v1711, 0
        %v1713 = vmul.f32 %v1709, %v1712
        %v1714 = vmul.f32 %v1710, %v1712
        %v1715 = vadd.f32 %v1707, %v1713
        %v1716 = vadd.f32 %v1708, %v1714
        %v1717 = vld [vmem:[#allocation2 + $0x6] sm:$0xff]
        %v1718 = vld [vmem:[#allocation2 + $0xe] sm:$0x7f]
        %v1719 = vld [vmem:[%s5 + $0x6] sm:$0x1]
        %v1720 = vperm.slane %v1719, 0
        %v1721 = vmul.f32 %v1717, %v1720
        %v1722 = vmul.f32 %v1718, %v1720
        %v1723 = vadd.f32 %v1715, %v1721
        %v1724 = vadd.f32 %v1716, %v1722
        %v1725 = vld [vmem:[#allocation2 + $0x7] sm:$0xff]
        %v1726 = vld [vmem:[#allocation2 + $0xf] sm:$0x7f]
        %v1727 = vld [vmem:[%s5 + $0x7] sm:$0x1]
        %v1728 = vperm.slane %v1727, 0
        %v1729 = vmul.f32 %v1725, %v1728
        %v1730 = vmul.f32 %v1726, %v1728
        %v1731 = vadd.f32 %v1723, %v1729
        %v1732 = vadd.f32 %v1724, %v1730
        %v1733 = vld [vmem:[#allocation2 + $0x8] sm:$0xff]
        %v1734 = vld [vmem:[#allocation2 + $0x10] sm:$0x7f]
        %v1735 = vld [vmem:[%s5 + $0x8] sm:$0x1]
        %v1736 = vperm.slane %v1735, 0
        %v1737 = vmul.f32 %v1733, %v1736
        %v1738 = vmul.f32 %v1734, %v1736
        %v1739 = vadd.f32 %v1731, %v1737
        %v1740 = vadd.f32 %v1732, %v1738
        %v1741 = vld [vmem:[#allocation2 + $0x9] sm:$0xff]
        %v1742 = vld [vmem:[#allocation2 + $0x11] sm:$0x7f]
        %v1743 = vld [vmem:[%s5 + $0x9] sm:$0x1]
        %v1744 = vperm.slane %v1743, 0
        %v1745 = vmul.f32 %v1741, %v1744
        %v1746 = vmul.f32 %v1742, %v1744
        %v1747 = vadd.f32 %v1739, %v1745
        %v1748 = vadd.f32 %v1740, %v1746
        %v1749 = vld [vmem:[#allocation2 + $0xa] sm:$0xff]
        %v1750 = vld [vmem:[#allocation2 + $0x12] sm:$0x7f]
        %v1751 = vld [vmem:[%s5 + $0xa] sm:$0x1]
        %v1752 = vperm.slane %v1751, 0
        %v1753 = vmul.f32 %v1749, %v1752
        %v1754 = vmul.f32 %v1750, %v1752
        %v1755 = vadd.f32 %v1747, %v1753
        %v1756 = vadd.f32 %v1748, %v1754
        %v1757 = vld [vmem:[#allocation2 + $0xb] sm:$0xff]
        %v1758 = vld [vmem:[#allocation2 + $0x13] sm:$0x7f]
        %v1759 = vld [vmem:[%s5 + $0xb] sm:$0x1]
        %v1760 = vperm.slane %v1759, 0
        %v1761 = vmul.f32 %v1757, %v1760
        %v1762 = vmul.f32 %v1758, %v1760
        %v1763 = vadd.f32 %v1755, %v1761
        %v1764 = vadd.f32 %v1756, %v1762
        %v1765 = vld [vmem:[#allocation2 + $0xc] sm:$0xff]
        %v1766 = vld [vmem:[#allocation2 + $0x14] sm:$0x7f]
        %v1767 = vld [vmem:[%s5 + $0xc] sm:$0x1]
        %v1768 = vperm.slane %v1767, 0
        %v1769 = vmul.f32 %v1765, %v1768
        %v1770 = vmul.f32 %v1766, %v1768
        %v1771 = vadd.f32 %v1763, %v1769
        %v1772 = vadd.f32 %v1764, %v1770
        %v1773 = vld [vmem:[#allocation2 + $0xd] sm:$0xff]
        %v1774 = vld [vmem:[#allocation2 + $0x15] sm:$0x7f]
        %v1775 = vld [vmem:[%s5 + $0xd] sm:$0x1]
        %v1776 = vperm.slane %v1775, 0
        %v1777 = vmul.f32 %v1773, %v1776
        %v1778 = vmul.f32 %v1774, %v1776
        %v1779 = vadd.f32 %v1771, %v1777
        %v1780 = vadd.f32 %v1772, %v1778
        %v1781 = vld [vmem:[#allocation2 + $0xe] sm:$0xff]
        %v1782 = vld [vmem:[#allocation2 + $0x16] sm:$0x7f]
        %v1783 = vld [vmem:[%s5 + $0xe] sm:$0x1]
        %v1784 = vperm.slane %v1783, 0
        %v1785 = vmul.f32 %v1781, %v1784
        %v1786 = vmul.f32 %v1782, %v1784
        %v1787 = vadd.f32 %v1779, %v1785
        %v1788 = vadd.f32 %v1780, %v1786
        %v1789 = vld [vmem:[#allocation2 + $0xf] sm:$0xff]
        %v1790 = vld [vmem:[#allocation2 + $0x17] sm:$0x7f]
        %v1791 = vld [vmem:[%s5 + $0xf] sm:$0x1]
        %v1792 = vperm.slane %v1791, 0
        %v1793 = vmul.f32 %v1789, %v1792
        %v1794 = vmul.f32 %v1790, %v1792
        %v1795 = vadd.f32 %v1787, %v1793
        %v1796 = vadd.f32 %v1788, %v1794
        %v1797 = vld [vmem:[#allocation2 + $0x10] sm:$0xff]
        %v1798 = vld [vmem:[#allocation2 + $0x18] sm:$0x7f]
        %v1799 = vld [vmem:[%s5 + $0x10] sm:$0x1]
        %v1800 = vperm.slane %v1799, 0
        %v1801 = vmul.f32 %v1797, %v1800
        %v1802 = vmul.f32 %v1798, %v1800
        %v1803 = vadd.f32 %v1795, %v1801
        %v1804 = vadd.f32 %v1796, %v1802
        %v1805 = vld [vmem:[#allocation2 + $0x11] sm:$0xff]
        %v1806 = vld [vmem:[#allocation2 + $0x19] sm:$0x7f]
        %v1807 = vld [vmem:[%s5 + $0x11] sm:$0x1]
        %v1808 = vperm.slane %v1807, 0
        %v1809 = vmul.f32 %v1805, %v1808
        %v1810 = vmul.f32 %v1806, %v1808
        %v1811 = vadd.f32 %v1803, %v1809
        %v1812 = vadd.f32 %v1804, %v1810
        %v1813 = vld [vmem:[#allocation2 + $0x12] sm:$0xff]
        %v1814 = vld [vmem:[#allocation2 + $0x1a] sm:$0x7f]
        %v1815 = vld [vmem:[%s5 + $0x12] sm:$0x1]
        %v1816 = vperm.slane %v1815, 0
        %v1817 = vmul.f32 %v1813, %v1816
        %v1818 = vmul.f32 %v1814, %v1816
        %v1819 = vadd.f32 %v1811, %v1817
        %v1820 = vadd.f32 %v1812, %v1818
        %v1821 = vld [vmem:[#allocation2 + $0x13] sm:$0xff]
        %v1822 = vld [vmem:[#allocation2 + $0x1b] sm:$0x7f]
        %v1823 = vld [vmem:[%s5 + $0x13] sm:$0x1]
        %v1824 = vperm.slane %v1823, 0
        %v1825 = vmul.f32 %v1821, %v1824
        %v1826 = vmul.f32 %v1822, %v1824
        %v1827 = vadd.f32 %v1819, %v1825
        %v1828 = vadd.f32 %v1820, %v1826
        %v1829 = vld [vmem:[#allocation2 + $0x14] sm:$0xff]
        %v1830 = vld [vmem:[#allocation2 + $0x1c] sm:$0x7f]
        %v1831 = vld [vmem:[%s5 + $0x14] sm:$0x1]
        %v1832 = vperm.slane %v1831, 0
        %v1833 = vmul.f32 %v1829, %v1832
        %v1834 = vmul.f32 %v1830, %v1832
        %v1835 = vadd.f32 %v1827, %v1833
        %v1836 = vadd.f32 %v1828, %v1834
        %v1837 = vld [vmem:[#allocation2 + $0x15] sm:$0xff]
        %v1838 = vld [vmem:[#allocation2 + $0x1d] sm:$0x7f]
        %v1839 = vld [vmem:[%s5 + $0x15] sm:$0x1]
        %v1840 = vperm.slane %v1839, 0
        %v1841 = vmul.f32 %v1837, %v1840
        %v1842 = vmul.f32 %v1838, %v1840
        %v1843 = vadd.f32 %v1835, %v1841
        %v1844 = vadd.f32 %v1836, %v1842
        %v1845 = vld [vmem:[#allocation2 + $0x16] sm:$0xff]
        %v1846 = vld [vmem:[#allocation2 + $0x1e] sm:$0x7f]
        %v1847 = vld [vmem:[%s5 + $0x16] sm:$0x1]
        %v1848 = vperm.slane %v1847, 0
        %v1849 = vmul.f32 %v1845, %v1848
        %v1850 = vmul.f32 %v1846, %v1848
        %v1851 = vadd.f32 %v1843, %v1849
        %v1852 = vadd.f32 %v1844, %v1850
        %v1853 = vld [vmem:[#allocation2 + $0x17] sm:$0xff]
        %v1854 = vld [vmem:[#allocation2 + $0x1f] sm:$0x7f]
        %v1855 = vld [vmem:[%s5 + $0x17] sm:$0x1]
        %v1856 = vperm.slane %v1855, 0
        %v1857 = vmul.f32 %v1853, %v1856
        %v1858 = vmul.f32 %v1854, %v1856
        %v1859 = vadd.f32 %v1851, %v1857
        %v1860 = vadd.f32 %v1852, %v1858
        %v1861 = vld [vmem:[#allocation2 + $0x18] sm:$0xff]
        %v1862 = vld [vmem:[#allocation2 + $0x20] sm:$0x7f]
        %v1863 = vld [vmem:[%s5 + $0x18] sm:$0x1]
        %v1864 = vperm.slane %v1863, 0
        %v1865 = vmul.f32 %v1861, %v1864
        %v1866 = vmul.f32 %v1862, %v1864
        %v1867 = vadd.f32 %v1859, %v1865
        %v1868 = vadd.f32 %v1860, %v1866
        %v1869 = vld [vmem:[#allocation2 + $0x19] sm:$0xff]
        %v1870 = vld [vmem:[#allocation2 + $0x21] sm:$0x7f]
        %v1871 = vld [vmem:[%s5 + $0x19] sm:$0x1]
        %v1872 = vperm.slane %v1871, 0
        %v1873 = vmul.f32 %v1869, %v1872
        %v1874 = vmul.f32 %v1870, %v1872
        %v1875 = vadd.f32 %v1867, %v1873
        %v1876 = vadd.f32 %v1868, %v1874
        %v1877 = vld [vmem:[#allocation2 + $0x1a] sm:$0xff]
        %v1878 = vld [vmem:[#allocation2 + $0x22] sm:$0x7f]
        %v1879 = vld [vmem:[%s5 + $0x1a] sm:$0x1]
        %v1880 = vperm.slane %v1879, 0
        %v1881 = vmul.f32 %v1877, %v1880
        %v1882 = vmul.f32 %v1878, %v1880
        %v1883 = vadd.f32 %v1875, %v1881
        %v1884 = vadd.f32 %v1876, %v1882
        %v1885 = vld [vmem:[#allocation2 + $0x1b] sm:$0xff]
        %v1886 = vld [vmem:[#allocation2 + $0x23] sm:$0x7f]
        %v1887 = vld [vmem:[%s5 + $0x1b] sm:$0x1]
        %v1888 = vperm.slane %v1887, 0
        %v1889 = vmul.f32 %v1885, %v1888
        %v1890 = vmul.f32 %v1886, %v1888
        %v1891 = vadd.f32 %v1883, %v1889
        %v1892 = vadd.f32 %v1884, %v1890
        %v1893 = vld [vmem:[#allocation2 + $0x1c] sm:$0xff]
        %v1894 = vld [vmem:[#allocation2 + $0x24] sm:$0x7f]
        %v1895 = vld [vmem:[%s5 + $0x1c] sm:$0x1]
        %v1896 = vperm.slane %v1895, 0
        %v1897 = vmul.f32 %v1893, %v1896
        %v1898 = vmul.f32 %v1894, %v1896
        %v1899 = vadd.f32 %v1891, %v1897
        %v1900 = vadd.f32 %v1892, %v1898
        %v1901 = vld [vmem:[#allocation2 + $0x1d] sm:$0xff]
        %v1902 = vld [vmem:[#allocation2 + $0x25] sm:$0x7f]
        %v1903 = vld [vmem:[%s5 + $0x1d] sm:$0x1]
        %v1904 = vperm.slane %v1903, 0
        %v1905 = vmul.f32 %v1901, %v1904
        %v1906 = vmul.f32 %v1902, %v1904
        %v1907 = vadd.f32 %v1899, %v1905
        %v1908 = vadd.f32 %v1900, %v1906
        %v1909 = vld [vmem:[#allocation2 + $0x1e] sm:$0xff]
        %v1910 = vld [vmem:[#allocation2 + $0x26] sm:$0x7f]
        %v1911 = vld [vmem:[%s5 + $0x1e] sm:$0x1]
        %v1912 = vperm.slane %v1911, 0
        %v1913 = vmul.f32 %v1909, %v1912
        %v1914 = vmul.f32 %v1910, %v1912
        %v1915 = vadd.f32 %v1907, %v1913
        %v1916 = vadd.f32 %v1908, %v1914
        %v1917 = vadd.f32 %v1915, %v949
        %v1918 = vadd.f32 %v1916, %v949
        %v1919 = vmax.f32 %v1917, 0.0
        %v1920 = vmax.f32 %v1918, 0.0
        %1921 = vmatpush.msra.mxu0 %v600
        %1922 = vmatpush.msra.mxu0 %v599
        %1923 = vmatpush.msra.mxu0 %v598
        %1924 = vmatpush.msra.mxu0 %v597
        %1925 = vmatpush.msra.mxu0 %v596
        %1926 = vmatpush.msra.mxu0 %v595
        %1927 = vmatpush.msra.mxu0 %v594
        %1928 = vmatpush.msra.mxu0 %v593
        %1929 = vmatpush.msra.mxu0 %v592
        %1930 = vmatpush.msra.mxu0 %v591
        %1931 = vmatpush.msra.mxu0 %v590
        %1932 = vmatpush.msra.mxu0 %v589
        %1933 = vmatpush.msra.mxu0 %v588
        %1934 = vmatpush.msra.mxu0 %v587
        %1935 = vmatpush.msra.mxu0 %v586
        %1936 = vmatpush.msra.mxu0 %v585
        %1937 = vmatmul.f32.gmra.mxu0 %v1919
        %v1938 = vpop.f32.mrf.mxu0
        %v1939 = vadd.f32 %v956, %v1938
        %1940 = vmatmul.f32.gmra.mxu0 %v1920
        %v1941 = vpop.f32.mrf.mxu0
        %v1942 = vadd.f32 %v956, %v1941
        %1943 = vdwg.mxu0
        %1944 = vmatpush.msra.mxu0 0.0
        %1945 = vmatpush.msra.mxu0 0.0
        %1946 = vmatpush.msra.mxu0 0.0
        %1947 = vmatpush.msra.mxu0 0.0
        %1948 = vmatpush.msra.mxu0 0.0
        %1949 = vmatpush.msra.mxu0 0.0
        %1950 = vmatpush.msra.mxu0 0.0
        %1951 = vmatpush.msra.mxu0 0.0
        %1952 = vmatpush.msra.mxu0 %v609
        %1953 = vmatpush.msra.mxu0 %v608
        %1954 = vmatpush.msra.mxu0 %v607
        %1955 = vmatpush.msra.mxu0 %v606
        %1956 = vmatpush.msra.mxu0 %v605
        %1957 = vmatpush.msra.mxu0 %v604
        %1958 = vmatpush.msra.mxu0 %v603
        %1959 = vmatpush.msra.mxu0 %v602
        %1960 = vmatmul.f32.gmra.mxu0 %v1637
        %v1961 = vpop.f32.mrf.mxu0
        %v1962 = vadd.f32 %v982, %v1961
        %1963 = vmatmul.f32.gmra.mxu0 %v1640
        %v1964 = vpop.f32.mrf.mxu0
        %v1965 = vadd.f32 %v982, %v1964
        %1966 = vdwg.mxu0
        %v1967 = vmax.f32 %v1962, 0.0
        %v1968 = vmax.f32 %v1965, 0.0
        %v1969 = vadd.f32 %v1967, %v1939
        %v1970 = vadd.f32 %v1968, %v1942
        %v1971 = vmul.f32 %v1969, %v1012
        %v1972 = vmul.f32 %v1970, %v1012
        %v1973 = vadd.f32 %v1971, %v1017
        %v1974 = vadd.f32 %v1972, %v1017
        %v1975 = vmax.f32 %v1973, 0.0
        %v1976 = vmax.f32 %v1974, 0.0
        %1977 = vst [vmem:[#allocation3 + $0x1] sm:$0xff] %v1975
        %1978 = vst [vmem:[#allocation3 + $0x9] sm:$0x7f] %v1976
        %v1979 = vld [vmem:[#allocation3] sm:$0xff]
        %v1980 = vld [vmem:[#allocation3 + $0x8] sm:$0xf]
        %v1981 = vld [vmem:[%s13] sm:$0xff]
        %v1982 = vld [vmem:[%s13 + $0x8] sm:$0xff]
        %v1983 = vld [vmem:[%s13 + $0x10] sm:$0xff]
        %v1984 = vld [vmem:[%s13 + $0x18] sm:$0xff]
        %v1985 = vld [vmem:[%s13 + $0x20] sm:$0xff]
        %v1986 = vld [vmem:[%s13 + $0x28] sm:$0xff]
        %v1987 = vld [vmem:[%s13 + $0x30] sm:$0xff]
        %v1988 = vld [vmem:[%s13 + $0x38] sm:$0xff]
        %v1989 = vld [vmem:[%s13 + $0x40] sm:$0xff]
        %v1990 = vld [vmem:[%s13 + $0x48] sm:$0xff]
        %v1991 = vld [vmem:[%s13 + $0x50] sm:$0xff]
        %v1992 = vld [vmem:[%s13 + $0x58] sm:$0xff]
        %v1993 = vld [vmem:[%s13 + $0x60] sm:$0xff]
        %v1994 = vld [vmem:[%s13 + $0x68] sm:$0xff]
        %v1995 = vld [vmem:[%s13 + $0x70] sm:$0xff]
        %v1996 = vld [vmem:[%s13 + $0x78] sm:$0xff]
        %v1997 = vld [vmem:[%s13 + $0x80] sm:$0xff]
        %v1998 = vld [vmem:[%s13 + $0x88] sm:$0xff]
        %v1999 = vld [vmem:[%s13 + $0x90] sm:$0xff]
        %v2000 = vld [vmem:[%s13 + $0x98] sm:$0xff]
        %v2001 = vld [vmem:[%s13 + $0xa0] sm:$0xff]
        %v2002 = vld [vmem:[%s13 + $0xa8] sm:$0xff]
        %v2003 = vld [vmem:[%s13 + $0xb0] sm:$0xff]
        %v2004 = vld [vmem:[%s13 + $0xb8] sm:$0xff]
        %v2005 = vld [vmem:[%s13 + $0xc0] sm:$0xff]
        %v2006 = vld [vmem:[%s13 + $0xc8] sm:$0xff]
        %v2007 = vld [vmem:[%s13 + $0xd0] sm:$0xff]
        %v2008 = vld [vmem:[%s13 + $0xd8] sm:$0xff]
        %v2009 = vld [vmem:[%s13 + $0xe0] sm:$0xff]
        %v2010 = vld [vmem:[%s13 + $0xe8] sm:$0xff]
        %v2011 = vld [vmem:[%s13 + $0xf0] sm:$0xff]
        %v2012 = vld [vmem:[%s13 + $0xf8] sm:$0xff]
        %v2013 = vld [vmem:[#allocation3 + $0x1] sm:$0xff]
        %v2014 = vld [vmem:[#allocation3 + $0x9] sm:$0xf]
        %v2015 = vld [vmem:[%s1061] sm:$0xff]
        %v2016 = vld [vmem:[%s1061 + $0x8] sm:$0xff]
        %v2017 = vld [vmem:[%s1061 + $0x10] sm:$0xff]
        %v2018 = vld [vmem:[%s1061 + $0x18] sm:$0xff]
        %v2019 = vld [vmem:[%s1061 + $0x20] sm:$0xff]
        %v2020 = vld [vmem:[%s1061 + $0x28] sm:$0xff]
        %v2021 = vld [vmem:[%s1061 + $0x30] sm:$0xff]
        %v2022 = vld [vmem:[%s1061 + $0x38] sm:$0xff]
        %v2023 = vld [vmem:[%s1061 + $0x40] sm:$0xff]
        %v2024 = vld [vmem:[%s1061 + $0x48] sm:$0xff]
        %v2025 = vld [vmem:[%s1061 + $0x50] sm:$0xff]
        %v2026 = vld [vmem:[%s1061 + $0x58] sm:$0xff]
        %v2027 = vld [vmem:[%s1061 + $0x60] sm:$0xff]
        %v2028 = vld [vmem:[%s1061 + $0x68] sm:$0xff]
        %v2029 = vld [vmem:[%s1061 + $0x70] sm:$0xff]
        %v2030 = vld [vmem:[%s1061 + $0x78] sm:$0xff]
        %v2031 = vld [vmem:[%s1061 + $0x80] sm:$0xff]
        %v2032 = vld [vmem:[%s1061 + $0x88] sm:$0xff]
        %v2033 = vld [vmem:[%s1061 + $0x90] sm:$0xff]
        %v2034 = vld [vmem:[%s1061 + $0x98] sm:$0xff]
        %v2035 = vld [vmem:[%s1061 + $0xa0] sm:$0xff]
        %v2036 = vld [vmem:[%s1061 + $0xa8] sm:$0xff]
        %v2037 = vld [vmem:[%s1061 + $0xb0] sm:$0xff]
        %v2038 = vld [vmem:[%s1061 + $0xb8] sm:$0xff]
        %v2039 = vld [vmem:[%s1061 + $0xc0] sm:$0xff]
        %v2040 = vld [vmem:[%s1061 + $0xc8] sm:$0xff]
        %v2041 = vld [vmem:[%s1061 + $0xd0] sm:$0xff]
        %v2042 = vld [vmem:[%s1061 + $0xd8] sm:$0xff]
        %v2043 = vld [vmem:[%s1061 + $0xe0] sm:$0xff]
        %v2044 = vld [vmem:[%s1061 + $0xe8] sm:$0xff]
        %v2045 = vld [vmem:[%s1061 + $0xf0] sm:$0xff]
        %v2046 = vld [vmem:[%s1061 + $0xf8] sm:$0xff]
        %2047 = vmatpush.msra.mxu0 %v2045
        %2048 = vmatpush.msra.mxu0 %v2043
        %2049 = vmatpush.msra.mxu0 %v2041
        %2050 = vmatpush.msra.mxu0 %v2039
        %2051 = vmatpush.msra.mxu0 %v2037
        %2052 = vmatpush.msra.mxu0 %v2035
        %2053 = vmatpush.msra.mxu0 %v2033
        %2054 = vmatpush.msra.mxu0 %v2031
        %2055 = vmatpush.msra.mxu0 %v2029
        %2056 = vmatpush.msra.mxu0 %v2027
        %2057 = vmatpush.msra.mxu0 %v2025
        %2058 = vmatpush.msra.mxu0 %v2023
        %2059 = vmatpush.msra.mxu0 %v2021
        %2060 = vmatpush.msra.mxu0 %v2019
        %2061 = vmatpush.msra.mxu0 %v2017
        %2062 = vmatpush.msra.mxu0 %v2015
        %2063 = vmatmul.f32.gmra.mxu0 %v2013
        %v2064 = vpop.f32.mrf.mxu0
        %v2065 = vadd.f32 0.0, %v2064
        %2066 = vmatmul.f32.gmra.mxu0 %v2014
        %v2067 = vpop.f32.mrf.mxu0
        %v2068 = vadd.f32 0.0, %v2067
        %2069 = vdwg.mxu0
        %2070 = vmatpush.msra.mxu0 %v2046
        %2071 = vmatpush.msra.mxu0 %v2044
        %2072 = vmatpush.msra.mxu0 %v2042
        %2073 = vmatpush.msra.mxu0 %v2040
        %2074 = vmatpush.msra.mxu0 %v2038
        %2075 = vmatpush.msra.mxu0 %v2036
        %2076 = vmatpush.msra.mxu0 %v2034
        %2077 = vmatpush.msra.mxu0 %v2032
        %2078 = vmatpush.msra.mxu0 %v2030
        %2079 = vmatpush.msra.mxu0 %v2028
        %2080 = vmatpush.msra.mxu0 %v2026
        %2081 = vmatpush.msra.mxu0 %v2024
        %2082 = vmatpush.msra.mxu0 %v2022
        %2083 = vmatpush.msra.mxu0 %v2020
        %2084 = vmatpush.msra.mxu0 %v2018
        %2085 = vmatpush.msra.mxu0 %v2016
        %2086 = vmatmul.f32.gmra.mxu0 %v2013
        %v2087 = vpop.f32.mrf.mxu0
        %v2088 = vadd.f32 0.0, %v2087
        %2089 = vmatmul.f32.gmra.mxu0 %v2014
        %v2090 = vpop.f32.mrf.mxu0
        %v2091 = vadd.f32 0.0, %v2090
        %2092 = vdwg.mxu0
        %2093 = vmatpush.msra.mxu0 %v2011
        %2094 = vmatpush.msra.mxu0 %v2009
        %2095 = vmatpush.msra.mxu0 %v2007
        %2096 = vmatpush.msra.mxu0 %v2005
        %2097 = vmatpush.msra.mxu0 %v2003
        %2098 = vmatpush.msra.mxu0 %v2001
        %2099 = vmatpush.msra.mxu0 %v1999
        %2100 = vmatpush.msra.mxu0 %v1997
        %2101 = vmatpush.msra.mxu0 %v1995
        %2102 = vmatpush.msra.mxu0 %v1993
        %2103 = vmatpush.msra.mxu0 %v1991
        %2104 = vmatpush.msra.mxu0 %v1989
        %2105 = vmatpush.msra.mxu0 %v1987
        %2106 = vmatpush.msra.mxu0 %v1985
        %2107 = vmatpush.msra.mxu0 %v1983
        %2108 = vmatpush.msra.mxu0 %v1981
        %2109 = vmatmul.f32.gmra.mxu0 %v1979
        %v2110 = vpop.f32.mrf.mxu0
        %v2111 = vadd.f32 %v2065, %v2110
        %2112 = vmatmul.f32.gmra.mxu0 %v1980
        %v2113 = vpop.f32.mrf.mxu0
        %v2114 = vadd.f32 %v2068, %v2113
        %2115 = vdwg.mxu0
        %2116 = vmatpush.msra.mxu0 %v2012
        %2117 = vmatpush.msra.mxu0 %v2010
        %2118 = vmatpush.msra.mxu0 %v2008
        %2119 = vmatpush.msra.mxu0 %v2006
        %2120 = vmatpush.msra.mxu0 %v2004
        %2121 = vmatpush.msra.mxu0 %v2002
        %2122 = vmatpush.msra.mxu0 %v2000
        %2123 = vmatpush.msra.mxu0 %v1998
        %2124 = vmatpush.msra.mxu0 %v1996
        %2125 = vmatpush.msra.mxu0 %v1994
        %2126 = vmatpush.msra.mxu0 %v1992
        %2127 = vmatpush.msra.mxu0 %v1990
        %2128 = vmatpush.msra.mxu0 %v1988
        %2129 = vmatpush.msra.mxu0 %v1986
        %2130 = vmatpush.msra.mxu0 %v1984
        %2131 = vmatpush.msra.mxu0 %v1982
        %2132 = vmatmul.f32.gmra.mxu0 %v1979
        %v2133 = vpop.f32.mrf.mxu0
        %v2134 = vadd.f32 %v2088, %v2133
        %2135 = vmatmul.f32.gmra.mxu0 %v1980
        %v2136 = vpop.f32.mrf.mxu0
        %v2137 = vadd.f32 %v2091, %v2136
        %2138 = vdwg.mxu0
        %v2139 = vld [vmem:[#allocation3 + $0x2] sm:$0xff]
        %v2140 = vld [vmem:[#allocation3 + $0xa] sm:$0xf]
        %v2141 = vld [vmem:[%s1188] sm:$0xff]
        %v2142 = vld [vmem:[%s1188 + $0x8] sm:$0xff]
        %v2143 = vld [vmem:[%s1188 + $0x10] sm:$0xff]
        %v2144 = vld [vmem:[%s1188 + $0x18] sm:$0xff]
        %v2145 = vld [vmem:[%s1188 + $0x20] sm:$0xff]
        %v2146 = vld [vmem:[%s1188 + $0x28] sm:$0xff]
        %v2147 = vld [vmem:[%s1188 + $0x30] sm:$0xff]
        %v2148 = vld [vmem:[%s1188 + $0x38] sm:$0xff]
        %v2149 = vld [vmem:[%s1188 + $0x40] sm:$0xff]
        %v2150 = vld [vmem:[%s1188 + $0x48] sm:$0xff]
        %v2151 = vld [vmem:[%s1188 + $0x50] sm:$0xff]
        %v2152 = vld [vmem:[%s1188 + $0x58] sm:$0xff]
        %v2153 = vld [vmem:[%s1188 + $0x60] sm:$0xff]
        %v2154 = vld [vmem:[%s1188 + $0x68] sm:$0xff]
        %v2155 = vld [vmem:[%s1188 + $0x70] sm:$0xff]
        %v2156 = vld [vmem:[%s1188 + $0x78] sm:$0xff]
        %v2157 = vld [vmem:[%s1188 + $0x80] sm:$0xff]
        %v2158 = vld [vmem:[%s1188 + $0x88] sm:$0xff]
        %v2159 = vld [vmem:[%s1188 + $0x90] sm:$0xff]
        %v2160 = vld [vmem:[%s1188 + $0x98] sm:$0xff]
        %v2161 = vld [vmem:[%s1188 + $0xa0] sm:$0xff]
        %v2162 = vld [vmem:[%s1188 + $0xa8] sm:$0xff]
        %v2163 = vld [vmem:[%s1188 + $0xb0] sm:$0xff]
        %v2164 = vld [vmem:[%s1188 + $0xb8] sm:$0xff]
        %v2165 = vld [vmem:[%s1188 + $0xc0] sm:$0xff]
        %v2166 = vld [vmem:[%s1188 + $0xc8] sm:$0xff]
        %v2167 = vld [vmem:[%s1188 + $0xd0] sm:$0xff]
        %v2168 = vld [vmem:[%s1188 + $0xd8] sm:$0xff]
        %v2169 = vld [vmem:[%s1188 + $0xe0] sm:$0xff]
        %v2170 = vld [vmem:[%s1188 + $0xe8] sm:$0xff]
        %v2171 = vld [vmem:[%s1188 + $0xf0] sm:$0xff]
        %v2172 = vld [vmem:[%s1188 + $0xf8] sm:$0xff]
        %2173 = vmatpush.msra.mxu0 %v2171
        %2174 = vmatpush.msra.mxu0 %v2169
        %2175 = vmatpush.msra.mxu0 %v2167
        %2176 = vmatpush.msra.mxu0 %v2165
        %2177 = vmatpush.msra.mxu0 %v2163
        %2178 = vmatpush.msra.mxu0 %v2161
        %2179 = vmatpush.msra.mxu0 %v2159
        %2180 = vmatpush.msra.mxu0 %v2157
        %2181 = vmatpush.msra.mxu0 %v2155
        %2182 = vmatpush.msra.mxu0 %v2153
        %2183 = vmatpush.msra.mxu0 %v2151
        %2184 = vmatpush.msra.mxu0 %v2149
        %2185 = vmatpush.msra.mxu0 %v2147
        %2186 = vmatpush.msra.mxu0 %v2145
        %2187 = vmatpush.msra.mxu0 %v2143
        %2188 = vmatpush.msra.mxu0 %v2141
        %2189 = vmatmul.f32.gmra.mxu0 %v2139
        %v2190 = vpop.f32.mrf.mxu0
        %v2191 = vadd.f32 0.0, %v2190
        %2192 = vmatmul.f32.gmra.mxu0 %v2140
        %v2193 = vpop.f32.mrf.mxu0
        %v2194 = vadd.f32 0.0, %v2193
        %2195 = vdwg.mxu0
        %2196 = vmatpush.msra.mxu0 %v2172
        %2197 = vmatpush.msra.mxu0 %v2170
        %2198 = vmatpush.msra.mxu0 %v2168
        %2199 = vmatpush.msra.mxu0 %v2166
        %2200 = vmatpush.msra.mxu0 %v2164
        %2201 = vmatpush.msra.mxu0 %v2162
        %2202 = vmatpush.msra.mxu0 %v2160
        %2203 = vmatpush.msra.mxu0 %v2158
        %2204 = vmatpush.msra.mxu0 %v2156
        %2205 = vmatpush.msra.mxu0 %v2154
        %2206 = vmatpush.msra.mxu0 %v2152
        %2207 = vmatpush.msra.mxu0 %v2150
        %2208 = vmatpush.msra.mxu0 %v2148
        %2209 = vmatpush.msra.mxu0 %v2146
        %2210 = vmatpush.msra.mxu0 %v2144
        %2211 = vmatpush.msra.mxu0 %v2142
        %2212 = vmatmul.f32.gmra.mxu0 %v2139
        %v2213 = vpop.f32.mrf.mxu0
        %v2214 = vadd.f32 0.0, %v2213
        %2215 = vmatmul.f32.gmra.mxu0 %v2140
        %v2216 = vpop.f32.mrf.mxu0
        %v2217 = vadd.f32 0.0, %v2216
        %2218 = vdwg.mxu0
        %v2219 = vadd.f32 %v2111, %v2191
        %v2220 = vadd.f32 %v2134, %v2214
        %v2221 = vadd.f32 %v2114, %v2194
        %v2222 = vadd.f32 %v2137, %v2217
        %v2223 = vld [vmem:[#allocation3 + $0x3] sm:$0xff]
        %v2224 = vld [vmem:[#allocation3 + $0xb] sm:$0xf]
        %v2225 = vld [vmem:[%s1273] sm:$0xff]
        %v2226 = vld [vmem:[%s1273 + $0x8] sm:$0xff]
        %v2227 = vld [vmem:[%s1273 + $0x10] sm:$0xff]
        %v2228 = vld [vmem:[%s1273 + $0x18] sm:$0xff]
        %v2229 = vld [vmem:[%s1273 + $0x20] sm:$0xff]
        %v2230 = vld [vmem:[%s1273 + $0x28] sm:$0xff]
        %v2231 = vld [vmem:[%s1273 + $0x30] sm:$0xff]
        %v2232 = vld [vmem:[%s1273 + $0x38] sm:$0xff]
        %v2233 = vld [vmem:[%s1273 + $0x40] sm:$0xff]
        %v2234 = vld [vmem:[%s1273 + $0x48] sm:$0xff]
        %v2235 = vld [vmem:[%s1273 + $0x50] sm:$0xff]
        %v2236 = vld [vmem:[%s1273 + $0x58] sm:$0xff]
        %v2237 = vld [vmem:[%s1273 + $0x60] sm:$0xff]
        %v2238 = vld [vmem:[%s1273 + $0x68] sm:$0xff]
        %v2239 = vld [vmem:[%s1273 + $0x70] sm:$0xff]
        %v2240 = vld [vmem:[%s1273 + $0x78] sm:$0xff]
        %v2241 = vld [vmem:[%s1273 + $0x80] sm:$0xff]
        %v2242 = vld [vmem:[%s1273 + $0x88] sm:$0xff]
        %v2243 = vld [vmem:[%s1273 + $0x90] sm:$0xff]
        %v2244 = vld [vmem:[%s1273 + $0x98] sm:$0xff]
        %v2245 = vld [vmem:[%s1273 + $0xa0] sm:$0xff]
        %v2246 = vld [vmem:[%s1273 + $0xa8] sm:$0xff]
        %v2247 = vld [vmem:[%s1273 + $0xb0] sm:$0xff]
        %v2248 = vld [vmem:[%s1273 + $0xb8] sm:$0xff]
        %v2249 = vld [vmem:[%s1273 + $0xc0] sm:$0xff]
        %v2250 = vld [vmem:[%s1273 + $0xc8] sm:$0xff]
        %v2251 = vld [vmem:[%s1273 + $0xd0] sm:$0xff]
        %v2252 = vld [vmem:[%s1273 + $0xd8] sm:$0xff]
        %v2253 = vld [vmem:[%s1273 + $0xe0] sm:$0xff]
        %v2254 = vld [vmem:[%s1273 + $0xe8] sm:$0xff]
        %v2255 = vld [vmem:[%s1273 + $0xf0] sm:$0xff]
        %v2256 = vld [vmem:[%s1273 + $0xf8] sm:$0xff]
        %2257 = vmatpush.msra.mxu0 %v2255
        %2258 = vmatpush.msra.mxu0 %v2253
        %2259 = vmatpush.msra.mxu0 %v2251
        %2260 = vmatpush.msra.mxu0 %v2249
        %2261 = vmatpush.msra.mxu0 %v2247
        %2262 = vmatpush.msra.mxu0 %v2245
        %2263 = vmatpush.msra.mxu0 %v2243
        %2264 = vmatpush.msra.mxu0 %v2241
        %2265 = vmatpush.msra.mxu0 %v2239
        %2266 = vmatpush.msra.mxu0 %v2237
        %2267 = vmatpush.msra.mxu0 %v2235
        %2268 = vmatpush.msra.mxu0 %v2233
        %2269 = vmatpush.msra.mxu0 %v2231
        %2270 = vmatpush.msra.mxu0 %v2229
        %2271 = vmatpush.msra.mxu0 %v2227
        %2272 = vmatpush.msra.mxu0 %v2225
        %2273 = vmatmul.f32.gmra.mxu0 %v2223
        %v2274 = vpop.f32.mrf.mxu0
        %v2275 = vadd.f32 0.0, %v2274
        %2276 = vmatmul.f32.gmra.mxu0 %v2224
        %v2277 = vpop.f32.mrf.mxu0
        %v2278 = vadd.f32 0.0, %v2277
        %2279 = vdwg.mxu0
        %2280 = vmatpush.msra.mxu0 %v2256
        %2281 = vmatpush.msra.mxu0 %v2254
        %2282 = vmatpush.msra.mxu0 %v2252
        %2283 = vmatpush.msra.mxu0 %v2250
        %2284 = vmatpush.msra.mxu0 %v2248
        %2285 = vmatpush.msra.mxu0 %v2246
        %2286 = vmatpush.msra.mxu0 %v2244
        %2287 = vmatpush.msra.mxu0 %v2242
        %2288 = vmatpush.msra.mxu0 %v2240
        %2289 = vmatpush.msra.mxu0 %v2238
        %2290 = vmatpush.msra.mxu0 %v2236
        %2291 = vmatpush.msra.mxu0 %v2234
        %2292 = vmatpush.msra.mxu0 %v2232
        %2293 = vmatpush.msra.mxu0 %v2230
        %2294 = vmatpush.msra.mxu0 %v2228
        %2295 = vmatpush.msra.mxu0 %v2226
        %2296 = vmatmul.f32.gmra.mxu0 %v2223
        %v2297 = vpop.f32.mrf.mxu0
        %v2298 = vadd.f32 0.0, %v2297
        %2299 = vmatmul.f32.gmra.mxu0 %v2224
        %v2300 = vpop.f32.mrf.mxu0
        %v2301 = vadd.f32 0.0, %v2300
        %2302 = vdwg.mxu0
        %v2303 = vadd.f32 %v2219, %v2275
        %v2304 = vadd.f32 %v2220, %v2298
        %v2305 = vadd.f32 %v2221, %v2278
        %v2306 = vadd.f32 %v2222, %v2301
        %v2307 = vld [vmem:[#allocation3 + $0x4] sm:$0xff]
        %v2308 = vld [vmem:[#allocation3 + $0xc] sm:$0xf]
        %v2309 = vld [vmem:[%s1358] sm:$0xff]
        %v2310 = vld [vmem:[%s1358 + $0x8] sm:$0xff]
        %v2311 = vld [vmem:[%s1358 + $0x10] sm:$0xff]
        %v2312 = vld [vmem:[%s1358 + $0x18] sm:$0xff]
        %v2313 = vld [vmem:[%s1358 + $0x20] sm:$0xff]
        %v2314 = vld [vmem:[%s1358 + $0x28] sm:$0xff]
        %v2315 = vld [vmem:[%s1358 + $0x30] sm:$0xff]
        %v2316 = vld [vmem:[%s1358 + $0x38] sm:$0xff]
        %v2317 = vld [vmem:[%s1358 + $0x40] sm:$0xff]
        %v2318 = vld [vmem:[%s1358 + $0x48] sm:$0xff]
        %v2319 = vld [vmem:[%s1358 + $0x50] sm:$0xff]
        %v2320 = vld [vmem:[%s1358 + $0x58] sm:$0xff]
        %v2321 = vld [vmem:[%s1358 + $0x60] sm:$0xff]
        %v2322 = vld [vmem:[%s1358 + $0x68] sm:$0xff]
        %v2323 = vld [vmem:[%s1358 + $0x70] sm:$0xff]
        %v2324 = vld [vmem:[%s1358 + $0x78] sm:$0xff]
        %v2325 = vld [vmem:[%s1358 + $0x80] sm:$0xff]
        %v2326 = vld [vmem:[%s1358 + $0x88] sm:$0xff]
        %v2327 = vld [vmem:[%s1358 + $0x90] sm:$0xff]
        %v2328 = vld [vmem:[%s1358 + $0x98] sm:$0xff]
        %v2329 = vld [vmem:[%s1358 + $0xa0] sm:$0xff]
        %v2330 = vld [vmem:[%s1358 + $0xa8] sm:$0xff]
        %v2331 = vld [vmem:[%s1358 + $0xb0] sm:$0xff]
        %v2332 = vld [vmem:[%s1358 + $0xb8] sm:$0xff]
        %v2333 = vld [vmem:[%s1358 + $0xc0] sm:$0xff]
        %v2334 = vld [vmem:[%s1358 + $0xc8] sm:$0xff]
        %v2335 = vld [vmem:[%s1358 + $0xd0] sm:$0xff]
        %v2336 = vld [vmem:[%s1358 + $0xd8] sm:$0xff]
        %v2337 = vld [vmem:[%s1358 + $0xe0] sm:$0xff]
        %v2338 = vld [vmem:[%s1358 + $0xe8] sm:$0xff]
        %v2339 = vld [vmem:[%s1358 + $0xf0] sm:$0xff]
        %v2340 = vld [vmem:[%s1358 + $0xf8] sm:$0xff]
        %2341 = vmatpush.msra.mxu0 %v2339
        %2342 = vmatpush.msra.mxu0 %v2337
        %2343 = vmatpush.msra.mxu0 %v2335
        %2344 = vmatpush.msra.mxu0 %v2333
        %2345 = vmatpush.msra.mxu0 %v2331
        %2346 = vmatpush.msra.mxu0 %v2329
        %2347 = vmatpush.msra.mxu0 %v2327
        %2348 = vmatpush.msra.mxu0 %v2325
        %2349 = vmatpush.msra.mxu0 %v2323
        %2350 = vmatpush.msra.mxu0 %v2321
        %2351 = vmatpush.msra.mxu0 %v2319
        %2352 = vmatpush.msra.mxu0 %v2317
        %2353 = vmatpush.msra.mxu0 %v2315
        %2354 = vmatpush.msra.mxu0 %v2313
        %2355 = vmatpush.msra.mxu0 %v2311
        %2356 = vmatpush.msra.mxu0 %v2309
        %2357 = vmatmul.f32.gmra.mxu0 %v2307
        %v2358 = vpop.f32.mrf.mxu0
        %v2359 = vadd.f32 0.0, %v2358
        %2360 = vmatmul.f32.gmra.mxu0 %v2308
        %v2361 = vpop.f32.mrf.mxu0
        %v2362 = vadd.f32 0.0, %v2361
        %2363 = vdwg.mxu0
        %2364 = vmatpush.msra.mxu0 %v2340
        %2365 = vmatpush.msra.mxu0 %v2338
        %2366 = vmatpush.msra.mxu0 %v2336
        %2367 = vmatpush.msra.mxu0 %v2334
        %2368 = vmatpush.msra.mxu0 %v2332
        %2369 = vmatpush.msra.mxu0 %v2330
        %2370 = vmatpush.msra.mxu0 %v2328
        %2371 = vmatpush.msra.mxu0 %v2326
        %2372 = vmatpush.msra.mxu0 %v2324
        %2373 = vmatpush.msra.mxu0 %v2322
        %2374 = vmatpush.msra.mxu0 %v2320
        %2375 = vmatpush.msra.mxu0 %v2318
        %2376 = vmatpush.msra.mxu0 %v2316
        %2377 = vmatpush.msra.mxu0 %v2314
        %2378 = vmatpush.msra.mxu0 %v2312
        %2379 = vmatpush.msra.mxu0 %v2310
        %2380 = vmatmul.f32.gmra.mxu0 %v2307
        %v2381 = vpop.f32.mrf.mxu0
        %v2382 = vadd.f32 0.0, %v2381
        %2383 = vmatmul.f32.gmra.mxu0 %v2308
        %v2384 = vpop.f32.mrf.mxu0
        %v2385 = vadd.f32 0.0, %v2384
        %2386 = vdwg.mxu0
        %v2387 = vadd.f32 %v2303, %v2359
        %v2388 = vadd.f32 %v2304, %v2382
        %v2389 = vadd.f32 %v2305, %v2362
        %v2390 = vadd.f32 %v2306, %v2385
        %v2391 = vld [vmem:[#allocation3 + $0x5] sm:$0xff]
        %v2392 = vld [vmem:[#allocation3 + $0xd] sm:$0xf]
        %v2393 = vld [vmem:[%s1443] sm:$0xff]
        %v2394 = vld [vmem:[%s1443 + $0x8] sm:$0xff]
        %v2395 = vld [vmem:[%s1443 + $0x10] sm:$0xff]
        %v2396 = vld [vmem:[%s1443 + $0x18] sm:$0xff]
        %v2397 = vld [vmem:[%s1443 + $0x20] sm:$0xff]
        %v2398 = vld [vmem:[%s1443 + $0x28] sm:$0xff]
        %v2399 = vld [vmem:[%s1443 + $0x30] sm:$0xff]
        %v2400 = vld [vmem:[%s1443 + $0x38] sm:$0xff]
        %v2401 = vld [vmem:[%s1443 + $0x40] sm:$0xff]
        %v2402 = vld [vmem:[%s1443 + $0x48] sm:$0xff]
        %v2403 = vld [vmem:[%s1443 + $0x50] sm:$0xff]
        %v2404 = vld [vmem:[%s1443 + $0x58] sm:$0xff]
        %v2405 = vld [vmem:[%s1443 + $0x60] sm:$0xff]
        %v2406 = vld [vmem:[%s1443 + $0x68] sm:$0xff]
        %v2407 = vld [vmem:[%s1443 + $0x70] sm:$0xff]
        %v2408 = vld [vmem:[%s1443 + $0x78] sm:$0xff]
        %v2409 = vld [vmem:[%s1443 + $0x80] sm:$0xff]
        %v2410 = vld [vmem:[%s1443 + $0x88] sm:$0xff]
        %v2411 = vld [vmem:[%s1443 + $0x90] sm:$0xff]
        %v2412 = vld [vmem:[%s1443 + $0x98] sm:$0xff]
        %v2413 = vld [vmem:[%s1443 + $0xa0] sm:$0xff]
        %v2414 = vld [vmem:[%s1443 + $0xa8] sm:$0xff]
        %v2415 = vld [vmem:[%s1443 + $0xb0] sm:$0xff]
        %v2416 = vld [vmem:[%s1443 + $0xb8] sm:$0xff]
        %v2417 = vld [vmem:[%s1443 + $0xc0] sm:$0xff]
        %v2418 = vld [vmem:[%s1443 + $0xc8] sm:$0xff]
        %v2419 = vld [vmem:[%s1443 + $0xd0] sm:$0xff]
        %v2420 = vld [vmem:[%s1443 + $0xd8] sm:$0xff]
        %v2421 = vld [vmem:[%s1443 + $0xe0] sm:$0xff]
        %v2422 = vld [vmem:[%s1443 + $0xe8] sm:$0xff]
        %v2423 = vld [vmem:[%s1443 + $0xf0] sm:$0xff]
        %v2424 = vld [vmem:[%s1443 + $0xf8] sm:$0xff]
        %2425 = vmatpush.msra.mxu0 %v2423
        %2426 = vmatpush.msra.mxu0 %v2421
        %2427 = vmatpush.msra.mxu0 %v2419
        %2428 = vmatpush.msra.mxu0 %v2417
        %2429 = vmatpush.msra.mxu0 %v2415
        %2430 = vmatpush.msra.mxu0 %v2413
        %2431 = vmatpush.msra.mxu0 %v2411
        %2432 = vmatpush.msra.mxu0 %v2409
        %2433 = vmatpush.msra.mxu0 %v2407
        %2434 = vmatpush.msra.mxu0 %v2405
        %2435 = vmatpush.msra.mxu0 %v2403
        %2436 = vmatpush.msra.mxu0 %v2401
        %2437 = vmatpush.msra.mxu0 %v2399
        %2438 = vmatpush.msra.mxu0 %v2397
        %2439 = vmatpush.msra.mxu0 %v2395
        %2440 = vmatpush.msra.mxu0 %v2393
        %2441 = vmatmul.f32.gmra.mxu0 %v2391
        %v2442 = vpop.f32.mrf.mxu0
        %v2443 = vadd.f32 0.0, %v2442
        %2444 = vmatmul.f32.gmra.mxu0 %v2392
        %v2445 = vpop.f32.mrf.mxu0
        %v2446 = vadd.f32 0.0, %v2445
        %2447 = vdwg.mxu0
        %2448 = vmatpush.msra.mxu0 %v2424
        %2449 = vmatpush.msra.mxu0 %v2422
        %2450 = vmatpush.msra.mxu0 %v2420
        %2451 = vmatpush.msra.mxu0 %v2418
        %2452 = vmatpush.msra.mxu0 %v2416
        %2453 = vmatpush.msra.mxu0 %v2414
        %2454 = vmatpush.msra.mxu0 %v2412
        %2455 = vmatpush.msra.mxu0 %v2410
        %2456 = vmatpush.msra.mxu0 %v2408
        %2457 = vmatpush.msra.mxu0 %v2406
        %2458 = vmatpush.msra.mxu0 %v2404
        %2459 = vmatpush.msra.mxu0 %v2402
        %2460 = vmatpush.msra.mxu0 %v2400
        %2461 = vmatpush.msra.mxu0 %v2398
        %2462 = vmatpush.msra.mxu0 %v2396
        %2463 = vmatpush.msra.mxu0 %v2394
        %2464 = vmatmul.f32.gmra.mxu0 %v2391
        %v2465 = vpop.f32.mrf.mxu0
        %v2466 = vadd.f32 0.0, %v2465
        %2467 = vmatmul.f32.gmra.mxu0 %v2392
        %v2468 = vpop.f32.mrf.mxu0
        %v2469 = vadd.f32 0.0, %v2468
        %2470 = vdwg.mxu0
        %v2471 = vadd.f32 %v2387, %v2443
        %v2472 = vadd.f32 %v2388, %v2466
        %v2473 = vadd.f32 %v2389, %v2446
        %v2474 = vadd.f32 %v2390, %v2469
        %v2475 = vadd.f32 %v2471, %v1527
        %v2476 = vadd.f32 %v2472, %v1528
        %v2477 = vadd.f32 %v2473, %v1527
        %v2478 = vadd.f32 %v2474, %v1528
        %v2479 = vmax.f32 %v2475, 0.0
        %v2480 = vmax.f32 %v2476, 0.0
        %v2481 = vmax.f32 %v2477, 0.0
        %v2482 = vmax.f32 %v2478, 0.0
        %v2483 = vmul.f32 %v2479, %v1542
        %v2484 = vmul.f32 %v2480, %v1542
        %v2485 = vmul.f32 %v2481, %v1547
        %v2486 = vmul.f32 %v2482, %v1547
        %v2487 = vsel %vm1553, %v2485, 0.0
        %v2488 = vadd.f32 %v2483, %v2487
        %v2489 = vrot.slane %v2488, 4
        %v2490 = vadd.f32 %v2488, %v2489
        %v2491 = vrot.slane %v2490, 2
        %v2492 = vadd.f32 %v2490, %v2491
        %v2493 = vrot.slane %v2492, 1
        %v2494 = vadd.f32 %v2492, %v2493
        %v2495 = vsel %vm1553, %v2486, 0.0
        %v2496 = vadd.f32 %v2484, %v2495
        %v2497 = vrot.slane %v2496, 4
        %v2498 = vadd.f32 %v2496, %v2497
        %v2499 = vrot.slane %v2498, 2
        %v2500 = vadd.f32 %v2498, %v2499
        %v2501 = vrot.slane %v2500, 1
        %v2502 = vadd.f32 %v2500, %v2501
        %s2503 = scalar_lea.vmem %s16, 256
        %v2504 = vld [vmem:[%s2503] sm:$0xff]
        %v2505 = vld [vmem:[%s2503 + $0x8] sm:$0xff]
        %v2506 = vld [vmem:[%s2503 + $0x10] sm:$0xff]
        %v2507 = vld [vmem:[%s2503 + $0x18] sm:$0xff]
        %v2508 = vld [vmem:[%s2503 + $0x20] sm:$0xff]
        %v2509 = vld [vmem:[%s2503 + $0x28] sm:$0xff]
        %v2510 = vld [vmem:[%s2503 + $0x30] sm:$0xff]
        %v2511 = vld [vmem:[%s2503 + $0x38] sm:$0xff]
        %v2512 = vld [vmem:[%s2503 + $0x40] sm:$0xff]
        %v2513 = vld [vmem:[%s2503 + $0x48] sm:$0xff]
        %v2514 = vld [vmem:[%s2503 + $0x50] sm:$0xff]
        %v2515 = vld [vmem:[%s2503 + $0x58] sm:$0xff]
        %v2516 = vld [vmem:[%s2503 + $0x60] sm:$0xff]
        %v2517 = vld [vmem:[%s2503 + $0x68] sm:$0xff]
        %v2518 = vld [vmem:[%s2503 + $0x70] sm:$0xff]
        %v2519 = vld [vmem:[%s2503 + $0x78] sm:$0xff]
        %v2520 = vld [vmem:[%s2503 + $0x80] sm:$0xff]
        %v2521 = vld [vmem:[%s2503 + $0x88] sm:$0xff]
        %v2522 = vld [vmem:[%s2503 + $0x90] sm:$0xff]
        %v2523 = vld [vmem:[%s2503 + $0x98] sm:$0xff]
        %v2524 = vld [vmem:[%s2503 + $0xa0] sm:$0xff]
        %v2525 = vld [vmem:[%s2503 + $0xa8] sm:$0xff]
        %v2526 = vld [vmem:[%s2503 + $0xb0] sm:$0xff]
        %v2527 = vld [vmem:[%s2503 + $0xb8] sm:$0xff]
        %v2528 = vld [vmem:[%s2503 + $0xc0] sm:$0xff]
        %v2529 = vld [vmem:[%s2503 + $0xc8] sm:$0xff]
        %v2530 = vld [vmem:[%s2503 + $0xd0] sm:$0xff]
        %v2531 = vld [vmem:[%s2503 + $0xd8] sm:$0xff]
        %v2532 = vld [vmem:[%s2503 + $0xe0] sm:$0xff]
        %v2533 = vld [vmem:[%s2503 + $0xe8] sm:$0xff]
        %v2534 = vld [vmem:[%s2503 + $0xf0] sm:$0xff]
        %v2535 = vld [vmem:[%s2503 + $0xf8] sm:$0xff]
        %2536 = vmatpush.msra.mxu0 %v2519
        %2537 = vmatpush.msra.mxu0 %v2518
        %2538 = vmatpush.msra.mxu0 %v2517
        %2539 = vmatpush.msra.mxu0 %v2516
        %2540 = vmatpush.msra.mxu0 %v2515
        %2541 = vmatpush.msra.mxu0 %v2514
        %2542 = vmatpush.msra.mxu0 %v2513
        %2543 = vmatpush.msra.mxu0 %v2512
        %2544 = vmatpush.msra.mxu0 %v2511
        %2545 = vmatpush.msra.mxu0 %v2510
        %2546 = vmatpush.msra.mxu0 %v2509
        %2547 = vmatpush.msra.mxu0 %v2508
        %2548 = vmatpush.msra.mxu0 %v2507
        %2549 = vmatpush.msra.mxu0 %v2506
        %2550 = vmatpush.msra.mxu0 %v2505
        %2551 = vmatpush.msra.mxu0 %v2504
        %2552 = vmatmul.f32.gmra.mxu0 %v2494
        %v2553 = vpop.f32.mrf.mxu0
        %v2554 = vadd.f32 0.0, %v2553
        %2555 = vdwg.mxu0
        %2556 = vmatpush.msra.mxu0 %v2535
        %2557 = vmatpush.msra.mxu0 %v2534
        %2558 = vmatpush.msra.mxu0 %v2533
        %2559 = vmatpush.msra.mxu0 %v2532
        %2560 = vmatpush.msra.mxu0 %v2531
        %2561 = vmatpush.msra.mxu0 %v2530
        %2562 = vmatpush.msra.mxu0 %v2529
        %2563 = vmatpush.msra.mxu0 %v2528
        %2564 = vmatpush.msra.mxu0 %v2527
        %2565 = vmatpush.msra.mxu0 %v2526
        %2566 = vmatpush.msra.mxu0 %v2525
        %2567 = vmatpush.msra.mxu0 %v2524
        %2568 = vmatpush.msra.mxu0 %v2523
        %2569 = vmatpush.msra.mxu0 %v2522
        %2570 = vmatpush.msra.mxu0 %v2521
        %2571 = vmatpush.msra.mxu0 %v2520
        %2572 = vmatmul.f32.gmra.mxu0 %v2502
        %v2573 = vpop.f32.mrf.mxu0
        %v2574 = vadd.f32 %v2554, %v2573
        %2575 = vdwg.mxu0
        %2576 = vmatpush.msra.mxu0 %v1585
        %2577 = vmatpush.msra.mxu0 %v1584
        %2578 = vmatpush.msra.mxu0 %v1583
        %2579 = vmatpush.msra.mxu0 %v1582
        %2580 = vmatpush.msra.mxu0 %v1581
        %2581 = vmatpush.msra.mxu0 %v1580
        %2582 = vmatpush.msra.mxu0 %v1579
        %2583 = vmatpush.msra.mxu0 %v1578
        %2584 = vmatpush.msra.mxu0 %v1577
        %2585 = vmatpush.msra.mxu0 %v1576
        %2586 = vmatpush.msra.mxu0 %v1575
        %2587 = vmatpush.msra.mxu0 %v1574
        %2588 = vmatpush.msra.mxu0 %v1573
        %2589 = vmatpush.msra.mxu0 %v1572
        %2590 = vmatpush.msra.mxu0 %v1571
        %2591 = vmatpush.msra.mxu0 %v1570
        %2592 = vmatmul.f32.gmra.mxu0 %v1561
        %v2593 = vpop.f32.mrf.mxu0
        %v2594 = vadd.f32 %v2574, %v2593
        %2595 = vdwg.mxu0
        %2596 = vmatpush.msra.mxu0 %v1601
        %2597 = vmatpush.msra.mxu0 %v1600
        %2598 = vmatpush.msra.mxu0 %v1599
        %2599 = vmatpush.msra.mxu0 %v1598
        %2600 = vmatpush.msra.mxu0 %v1597
        %2601 = vmatpush.msra.mxu0 %v1596
        %2602 = vmatpush.msra.mxu0 %v1595
        %2603 = vmatpush.msra.mxu0 %v1594
        %2604 = vmatpush.msra.mxu0 %v1593
        %2605 = vmatpush.msra.mxu0 %v1592
        %2606 = vmatpush.msra.mxu0 %v1591
        %2607 = vmatpush.msra.mxu0 %v1590
        %2608 = vmatpush.msra.mxu0 %v1589
        %2609 = vmatpush.msra.mxu0 %v1588
        %2610 = vmatpush.msra.mxu0 %v1587
        %2611 = vmatpush.msra.mxu0 %v1586
        %2612 = vmatmul.f32.gmra.mxu0 %v1569
        %v2613 = vpop.f32.mrf.mxu0
        %v2614 = vadd.f32 %v2594, %v2613
        %2615 = vdwg.mxu0
        %s2616 = scalar_lea.vmem %s572, 32
        %v2617 = vld [vmem:[%s2616] sm:$0xff]
        %v2618 = vld [vmem:[%s2616 + $0x8] sm:$0x7f]
        %v2620 = vsel %vm631, %v2617, 0
        %v2623 = vsel %vm631, %v2618, 0
        %2625 = vmatpush.msra.mxu0 0.0
        %2626 = vmatpush.msra.mxu0 0.0
        %2627 = vmatpush.msra.mxu0 0.0
        %2628 = vmatpush.msra.mxu0 0.0
        %2629 = vmatpush.msra.mxu0 0.0
        %2630 = vmatpush.msra.mxu0 0.0
        %2631 = vmatpush.msra.mxu0 0.0
        %2632 = vmatpush.msra.mxu0 0.0
        %2633 = vmatpush.msra.mxu0 0.0
        %2634 = vmatpush.msra.mxu0 0.0
        %2635 = vmatpush.msra.mxu0 0.0
        %2636 = vmatpush.msra.mxu0 0.0
        %2637 = vmatpush.msra.mxu0 0.0
        %2638 = vmatpush.msra.mxu0 0.0
        %2639 = vmatpush.msra.mxu0 0.0
        %2640 = vmatpush.msra.mxu0 %v573
        %2641 = vmatmul.f32.gmra.mxu0 %v2620
        %v2642 = vpop.f32.mrf.mxu0
        %v2643 = vadd.f32 %v629, %v2642
        %2644 = vmatmul.f32.gmra.mxu0 %v2623
        %v2645 = vpop.f32.mrf.mxu0
        %v2646 = vadd.f32 %v629, %v2645
        %2647 = vdwg.mxu0
        %v2648 = vmax.f32 %v2643, 0.0
        %v2649 = vmax.f32 %v2646, 0.0
        %v2651 = vsel %vm666, %v2648, 0
        %v2654 = vsel %vm666, %v2649, 0
        %2656 = vmatpush.msra.mxu0 0.0
        %2657 = vmatpush.msra.mxu0 0.0
        %2658 = vmatpush.msra.mxu0 0.0
        %2659 = vmatpush.msra.mxu0 0.0
        %2660 = vmatpush.msra.mxu0 0.0
        %2661 = vmatpush.msra.mxu0 0.0
        %2662 = vmatpush.msra.mxu0 0.0
        %2663 = vmatpush.msra.mxu0 0.0
        %2664 = vmatpush.msra.mxu0 %v582
        %2665 = vmatpush.msra.mxu0 %v581
        %2666 = vmatpush.msra.mxu0 %v580
        %2667 = vmatpush.msra.mxu0 %v579
        %2668 = vmatpush.msra.mxu0 %v578
        %2669 = vmatpush.msra.mxu0 %v577
        %2670 = vmatpush.msra.mxu0 %v576
        %2671 = vmatpush.msra.mxu0 %v575
        %2672 = vmatmul.f32.gmra.mxu0 %v2651
        %v2673 = vpop.f32.mrf.mxu0
        %v2674 = vadd.f32 %v664, %v2673
        %2675 = vmatmul.f32.gmra.mxu0 %v2654
        %v2676 = vpop.f32.mrf.mxu0
        %v2677 = vadd.f32 %v664, %v2676
        %2678 = vdwg.mxu0
        %v2679 = vmax.f32 %v2674, 0.0
        %v2680 = vmax.f32 %v2677, 0.0
        %2681 = vst [vmem:[#allocation2 + $0xf] sm:$0xff] %v2679
        %2682 = vst [vmem:[#allocation2 + $0x17] sm:$0x7f] %v2680
        %v2683 = vld [vmem:[#allocation2] sm:$0xff]
        %v2684 = vld [vmem:[#allocation2 + $0x8] sm:$0x7f]
        %v2685 = vld [vmem:[%s5] sm:$0x1]
        %v2686 = vperm.slane %v2685, 0
        %v2687 = vmul.f32 %v2683, %v2686
        %v2688 = vmul.f32 %v2684, %v2686
        %v2689 = vadd.f32 %v2687, 0.0
        %v2690 = vadd.f32 %v2688, 0.0
        %v2691 = vld [vmem:[#allocation2 + $0x1] sm:$0xff]
        %v2692 = vld [vmem:[#allocation2 + $0x9] sm:$0x7f]
        %v2693 = vld [vmem:[%s5 + $0x1] sm:$0x1]
        %v2694 = vperm.slane %v2693, 0
        %v2695 = vmul.f32 %v2691, %v2694
        %v2696 = vmul.f32 %v2692, %v2694
        %v2697 = vadd.f32 %v2689, %v2695
        %v2698 = vadd.f32 %v2690, %v2696
        %v2699 = vld [vmem:[#allocation2 + $0x2] sm:$0xff]
        %v2700 = vld [vmem:[#allocation2 + $0xa] sm:$0x7f]
        %v2701 = vld [vmem:[%s5 + $0x2] sm:$0x1]
        %v2702 = vperm.slane %v2701, 0
        %v2703 = vmul.f32 %v2699, %v2702
        %v2704 = vmul.f32 %v2700, %v2702
        %v2705 = vadd.f32 %v2697, %v2703
        %v2706 = vadd.f32 %v2698, %v2704
        %v2707 = vld [vmem:[#allocation2 + $0x3] sm:$0xff]
        %v2708 = vld [vmem:[#allocation2 + $0xb] sm:$0x7f]
        %v2709 = vld [vmem:[%s5 + $0x3] sm:$0x1]
        %v2710 = vperm.slane %v2709, 0
        %v2711 = vmul.f32 %v2707, %v2710
        %v2712 = vmul.f32 %v2708, %v2710
        %v2713 = vadd.f32 %v2705, %v2711
        %v2714 = vadd.f32 %v2706, %v2712
        %v2715 = vld [vmem:[#allocation2 + $0x4] sm:$0xff]
        %v2716 = vld [vmem:[#allocation2 + $0xc] sm:$0x7f]
        %v2717 = vld [vmem:[%s5 + $0x4] sm:$0x1]
        %v2718 = vperm.slane %v2717, 0
        %v2719 = vmul.f32 %v2715, %v2718
        %v2720 = vmul.f32 %v2716, %v2718
        %v2721 = vadd.f32 %v2713, %v2719
        %v2722 = vadd.f32 %v2714, %v2720
        %v2723 = vld [vmem:[#allocation2 + $0x5] sm:$0xff]
        %v2724 = vld [vmem:[#allocation2 + $0xd] sm:$0x7f]
        %v2725 = vld [vmem:[%s5 + $0x5] sm:$0x1]
        %v2726 = vperm.slane %v2725, 0
        %v2727 = vmul.f32 %v2723, %v2726
        %v2728 = vmul.f32 %v2724, %v2726
        %v2729 = vadd.f32 %v2721, %v2727
        %v2730 = vadd.f32 %v2722, %v2728
        %v2731 = vld [vmem:[#allocation2 + $0x6] sm:$0xff]
        %v2732 = vld [vmem:[#allocation2 + $0xe] sm:$0x7f]
        %v2733 = vld [vmem:[%s5 + $0x6] sm:$0x1]
        %v2734 = vperm.slane %v2733, 0
        %v2735 = vmul.f32 %v2731, %v2734
        %v2736 = vmul.f32 %v2732, %v2734
        %v2737 = vadd.f32 %v2729, %v2735
        %v2738 = vadd.f32 %v2730, %v2736
        %v2739 = vld [vmem:[#allocation2 + $0x7] sm:$0xff]
        %v2740 = vld [vmem:[#allocation2 + $0xf] sm:$0x7f]
        %v2741 = vld [vmem:[%s5 + $0x7] sm:$0x1]
        %v2742 = vperm.slane %v2741, 0
        %v2743 = vmul.f32 %v2739, %v2742
        %v2744 = vmul.f32 %v2740, %v2742
        %v2745 = vadd.f32 %v2737, %v2743
        %v2746 = vadd.f32 %v2738, %v2744
        %v2747 = vld [vmem:[#allocation2 + $0x8] sm:$0xff]
        %v2748 = vld [vmem:[#allocation2 + $0x10] sm:$0x7f]
        %v2749 = vld [vmem:[%s5 + $0x8] sm:$0x1]
        %v2750 = vperm.slane %v2749, 0
        %v2751 = vmul.f32 %v2747, %v2750
        %v2752 = vmul.f32 %v2748, %v2750
        %v2753 = vadd.f32 %v2745, %v2751
        %v2754 = vadd.f32 %v2746, %v2752
        %v2755 = vld [vmem:[#allocation2 + $0x9] sm:$0xff]
        %v2756 = vld [vmem:[#allocation2 + $0x11] sm:$0x7f]
        %v2757 = vld [vmem:[%s5 + $0x9] sm:$0x1]
        %v2758 = vperm.slane %v2757, 0
        %v2759 = vmul.f32 %v2755, %v2758
        %v2760 = vmul.f32 %v2756, %v2758
        %v2761 = vadd.f32 %v2753, %v2759
        %v2762 = vadd.f32 %v2754, %v2760
        %v2763 = vld [vmem:[#allocation2 + $0xa] sm:$0xff]
        %v2764 = vld [vmem:[#allocation2 + $0x12] sm:$0x7f]
        %v2765 = vld [vmem:[%s5 + $0xa] sm:$0x1]
        %v2766 = vperm.slane %v2765, 0
        %v2767 = vmul.f32 %v2763, %v2766
        %v2768 = vmul.f32 %v2764, %v2766
        %v2769 = vadd.f32 %v2761, %v2767
        %v2770 = vadd.f32 %v2762, %v2768
        %v2771 = vld [vmem:[#allocation2 + $0xb] sm:$0xff]
        %v2772 = vld [vmem:[#allocation2 + $0x13] sm:$0x7f]
        %v2773 = vld [vmem:[%s5 + $0xb] sm:$0x1]
        %v2774 = vperm.slane %v2773, 0
        %v2775 = vmul.f32 %v2771, %v2774
        %v2776 = vmul.f32 %v2772, %v2774
        %v2777 = vadd.f32 %v2769, %v2775
        %v2778 = vadd.f32 %v2770, %v2776
        %v2779 = vld [vmem:[#allocation2 + $0xc] sm:$0xff]
        %v2780 = vld [vmem:[#allocation2 + $0x14] sm:$0x7f]
        %v2781 = vld [vmem:[%s5 + $0xc] sm:$0x1]
        %v2782 = vperm.slane %v2781, 0
        %v2783 = vmul.f32 %v2779, %v2782
        %v2784 = vmul.f32 %v2780, %v2782
        %v2785 = vadd.f32 %v2777, %v2783
        %v2786 = vadd.f32 %v2778, %v2784
        %v2787 = vld [vmem:[#allocation2 + $0xd] sm:$0xff]
        %v2788 = vld [vmem:[#allocation2 + $0x15] sm:$0x7f]
        %v2789 = vld [vmem:[%s5 + $0xd] sm:$0x1]
        %v2790 = vperm.slane %v2789, 0
        %v2791 = vmul.f32 %v2787, %v2790
        %v2792 = vmul.f32 %v2788, %v2790
        %v2793 = vadd.f32 %v2785, %v2791
        %v2794 = vadd.f32 %v2786, %v2792
        %v2795 = vld [vmem:[#allocation2 + $0xe] sm:$0xff]
        %v2796 = vld [vmem:[#allocation2 + $0x16] sm:$0x7f]
        %v2797 = vld [vmem:[%s5 + $0xe] sm:$0x1]
        %v2798 = vperm.slane %v2797, 0
        %v2799 = vmul.f32 %v2795, %v2798
        %v2800 = vmul.f32 %v2796, %v2798
        %v2801 = vadd.f32 %v2793, %v2799
        %v2802 = vadd.f32 %v2794, %v2800
        %v2803 = vld [vmem:[#allocation2 + $0xf] sm:$0xff]
        %v2804 = vld [vmem:[#allocation2 + $0x17] sm:$0x7f]
        %v2805 = vld [vmem:[%s5 + $0xf] sm:$0x1]
        %v2806 = vperm.slane %v2805, 0
        %v2807 = vmul.f32 %v2803, %v2806
        %v2808 = vmul.f32 %v2804, %v2806
        %v2809 = vadd.f32 %v2801, %v2807
        %v2810 = vadd.f32 %v2802, %v2808
        %v2811 = vld [vmem:[#allocation2 + $0x10] sm:$0xff]
        %v2812 = vld [vmem:[#allocation2 + $0x18] sm:$0x7f]
        %v2813 = vld [vmem:[%s5 + $0x10] sm:$0x1]
        %v2814 = vperm.slane %v2813, 0
        %v2815 = vmul.f32 %v2811, %v2814
        %v2816 = vmul.f32 %v2812, %v2814
        %v2817 = vadd.f32 %v2809, %v2815
        %v2818 = vadd.f32 %v2810, %v2816
        %v2819 = vld [vmem:[#allocation2 + $0x11] sm:$0xff]
        %v2820 = vld [vmem:[#allocation2 + $0x19] sm:$0x7f]
        %v2821 = vld [vmem:[%s5 + $0x11] sm:$0x1]
        %v2822 = vperm.slane %v2821, 0
        %v2823 = vmul.f32 %v2819, %v2822
        %v2824 = vmul.f32 %v2820, %v2822
        %v2825 = vadd.f32 %v2817, %v2823
        %v2826 = vadd.f32 %v2818, %v2824
        %v2827 = vld [vmem:[#allocation2 + $0x12] sm:$0xff]
        %v2828 = vld [vmem:[#allocation2 + $0x1a] sm:$0x7f]
        %v2829 = vld [vmem:[%s5 + $0x12] sm:$0x1]
        %v2830 = vperm.slane %v2829, 0
        %v2831 = vmul.f32 %v2827, %v2830
        %v2832 = vmul.f32 %v2828, %v2830
        %v2833 = vadd.f32 %v2825, %v2831
        %v2834 = vadd.f32 %v2826, %v2832
        %v2835 = vld [vmem:[#allocation2 + $0x13] sm:$0xff]
        %v2836 = vld [vmem:[#allocation2 + $0x1b] sm:$0x7f]
        %v2837 = vld [vmem:[%s5 + $0x13] sm:$0x1]
        %v2838 = vperm.slane %v2837, 0
        %v2839 = vmul.f32 %v2835, %v2838
        %v2840 = vmul.f32 %v2836, %v2838
        %v2841 = vadd.f32 %v2833, %v2839
        %v2842 = vadd.f32 %v2834, %v2840
        %v2843 = vld [vmem:[#allocation2 + $0x14] sm:$0xff]
        %v2844 = vld [vmem:[#allocation2 + $0x1c] sm:$0x7f]
        %v2845 = vld [vmem:[%s5 + $0x14] sm:$0x1]
        %v2846 = vperm.slane %v2845, 0
        %v2847 = vmul.f32 %v2843, %v2846
        %v2848 = vmul.f32 %v2844, %v2846
        %v2849 = vadd.f32 %v2841, %v2847
        %v2850 = vadd.f32 %v2842, %v2848
        %v2851 = vld [vmem:[#allocation2 + $0x15] sm:$0xff]
        %v2852 = vld [vmem:[#allocation2 + $0x1d] sm:$0x7f]
        %v2853 = vld [vmem:[%s5 + $0x15] sm:$0x1]
        %v2854 = vperm.slane %v2853, 0
        %v2855 = vmul.f32 %v2851, %v2854
        %v2856 = vmul.f32 %v2852, %v2854
        %v2857 = vadd.f32 %v2849, %v2855
        %v2858 = vadd.f32 %v2850, %v2856
        %v2859 = vld [vmem:[#allocation2 + $0x16] sm:$0xff]
        %v2860 = vld [vmem:[#allocation2 + $0x1e] sm:$0x7f]
        %v2861 = vld [vmem:[%s5 + $0x16] sm:$0x1]
        %v2862 = vperm.slane %v2861, 0
        %v2863 = vmul.f32 %v2859, %v2862
        %v2864 = vmul.f32 %v2860, %v2862
        %v2865 = vadd.f32 %v2857, %v2863
        %v2866 = vadd.f32 %v2858, %v2864
        %v2867 = vld [vmem:[#allocation2 + $0x17] sm:$0xff]
        %v2868 = vld [vmem:[#allocation2 + $0x1f] sm:$0x7f]
        %v2869 = vld [vmem:[%s5 + $0x17] sm:$0x1]
        %v2870 = vperm.slane %v2869, 0
        %v2871 = vmul.f32 %v2867, %v2870
        %v2872 = vmul.f32 %v2868, %v2870
        %v2873 = vadd.f32 %v2865, %v2871
        %v2874 = vadd.f32 %v2866, %v2872
        %v2875 = vld [vmem:[#allocation2 + $0x18] sm:$0xff]
        %v2876 = vld [vmem:[#allocation2 + $0x20] sm:$0x7f]
        %v2877 = vld [vmem:[%s5 + $0x18] sm:$0x1]
        %v2878 = vperm.slane %v2877, 0
        %v2879 = vmul.f32 %v2875, %v2878
        %v2880 = vmul.f32 %v2876, %v2878
        %v2881 = vadd.f32 %v2873, %v2879
        %v2882 = vadd.f32 %v2874, %v2880
        %v2883 = vld [vmem:[#allocation2 + $0x19] sm:$0xff]
        %v2884 = vld [vmem:[#allocation2 + $0x21] sm:$0x7f]
        %v2885 = vld [vmem:[%s5 + $0x19] sm:$0x1]
        %v2886 = vperm.slane %v2885, 0
        %v2887 = vmul.f32 %v2883, %v2886
        %v2888 = vmul.f32 %v2884, %v2886
        %v2889 = vadd.f32 %v2881, %v2887
        %v2890 = vadd.f32 %v2882, %v2888
        %v2891 = vld [vmem:[#allocation2 + $0x1a] sm:$0xff]
        %v2892 = vld [vmem:[#allocation2 + $0x22] sm:$0x7f]
        %v2893 = vld [vmem:[%s5 + $0x1a] sm:$0x1]
        %v2894 = vperm.slane %v2893, 0
        %v2895 = vmul.f32 %v2891, %v2894
        %v2896 = vmul.f32 %v2892, %v2894
        %v2897 = vadd.f32 %v2889, %v2895
        %v2898 = vadd.f32 %v2890, %v2896
        %v2899 = vld [vmem:[#allocation2 + $0x1b] sm:$0xff]
        %v2900 = vld [vmem:[#allocation2 + $0x23] sm:$0x7f]
        %v2901 = vld [vmem:[%s5 + $0x1b] sm:$0x1]
        %v2902 = vperm.slane %v2901, 0
        %v2903 = vmul.f32 %v2899, %v2902
        %v2904 = vmul.f32 %v2900, %v2902
        %v2905 = vadd.f32 %v2897, %v2903
        %v2906 = vadd.f32 %v2898, %v2904
        %v2907 = vld [vmem:[#allocation2 + $0x1c] sm:$0xff]
        %v2908 = vld [vmem:[#allocation2 + $0x24] sm:$0x7f]
        %v2909 = vld [vmem:[%s5 + $0x1c] sm:$0x1]
        %v2910 = vperm.slane %v2909, 0
        %v2911 = vmul.f32 %v2907, %v2910
        %v2912 = vmul.f32 %v2908, %v2910
        %v2913 = vadd.f32 %v2905, %v2911
        %v2914 = vadd.f32 %v2906, %v2912
        %v2915 = vld [vmem:[#allocation2 + $0x1d] sm:$0xff]
        %v2916 = vld [vmem:[#allocation2 + $0x25] sm:$0x7f]
        %v2917 = vld [vmem:[%s5 + $0x1d] sm:$0x1]
        %v2918 = vperm.slane %v2917, 0
        %v2919 = vmul.f32 %v2915, %v2918
        %v2920 = vmul.f32 %v2916, %v2918
        %v2921 = vadd.f32 %v2913, %v2919
        %v2922 = vadd.f32 %v2914, %v2920
        %v2923 = vld [vmem:[#allocation2 + $0x1e] sm:$0xff]
        %v2924 = vld [vmem:[#allocation2 + $0x26] sm:$0x7f]
        %v2925 = vld [vmem:[%s5 + $0x1e] sm:$0x1]
        %v2926 = vperm.slane %v2925, 0
        %v2927 = vmul.f32 %v2923, %v2926
        %v2928 = vmul.f32 %v2924, %v2926
        %v2929 = vadd.f32 %v2921, %v2927
        %v2930 = vadd.f32 %v2922, %v2928
        %v2931 = vadd.f32 %v2929, %v949
        %v2932 = vadd.f32 %v2930, %v949
        %v2933 = vmax.f32 %v2931, 0.0
        %v2934 = vmax.f32 %v2932, 0.0
        %2935 = vmatpush.msra.mxu0 %v600
        %2936 = vmatpush.msra.mxu0 %v599
        %2937 = vmatpush.msra.mxu0 %v598
        %2938 = vmatpush.msra.mxu0 %v597
        %2939 = vmatpush.msra.mxu0 %v596
        %2940 = vmatpush.msra.mxu0 %v595
        %2941 = vmatpush.msra.mxu0 %v594
        %2942 = vmatpush.msra.mxu0 %v593
        %2943 = vmatpush.msra.mxu0 %v592
        %2944 = vmatpush.msra.mxu0 %v591
        %2945 = vmatpush.msra.mxu0 %v590
        %2946 = vmatpush.msra.mxu0 %v589
        %2947 = vmatpush.msra.mxu0 %v588
        %2948 = vmatpush.msra.mxu0 %v587
        %2949 = vmatpush.msra.mxu0 %v586
        %2950 = vmatpush.msra.mxu0 %v585
        %2951 = vmatmul.f32.gmra.mxu0 %v2933
        %v2952 = vpop.f32.mrf.mxu0
        %v2953 = vadd.f32 %v956, %v2952
        %2954 = vmatmul.f32.gmra.mxu0 %v2934
        %v2955 = vpop.f32.mrf.mxu0
        %v2956 = vadd.f32 %v956, %v2955
        %2957 = vdwg.mxu0
        %2958 = vmatpush.msra.mxu0 0.0
        %2959 = vmatpush.msra.mxu0 0.0
        %2960 = vmatpush.msra.mxu0 0.0
        %2961 = vmatpush.msra.mxu0 0.0
        %2962 = vmatpush.msra.mxu0 0.0
        %2963 = vmatpush.msra.mxu0 0.0
        %2964 = vmatpush.msra.mxu0 0.0
        %2965 = vmatpush.msra.mxu0 0.0
        %2966 = vmatpush.msra.mxu0 %v609
        %2967 = vmatpush.msra.mxu0 %v608
        %2968 = vmatpush.msra.mxu0 %v607
        %2969 = vmatpush.msra.mxu0 %v606
        %2970 = vmatpush.msra.mxu0 %v605
        %2971 = vmatpush.msra.mxu0 %v604
        %2972 = vmatpush.msra.mxu0 %v603
        %2973 = vmatpush.msra.mxu0 %v602
        %2974 = vmatmul.f32.gmra.mxu0 %v2651
        %v2975 = vpop.f32.mrf.mxu0
        %v2976 = vadd.f32 %v982, %v2975
        %2977 = vmatmul.f32.gmra.mxu0 %v2654
        %v2978 = vpop.f32.mrf.mxu0
        %v2979 = vadd.f32 %v982, %v2978
        %2980 = vdwg.mxu0
        %v2981 = vmax.f32 %v2976, 0.0
        %v2982 = vmax.f32 %v2979, 0.0
        %v2983 = vadd.f32 %v2981, %v2953
        %v2984 = vadd.f32 %v2982, %v2956
        %v2985 = vmul.f32 %v2983, %v1012
        %v2986 = vmul.f32 %v2984, %v1012
        %v2987 = vadd.f32 %v2985, %v1017
        %v2988 = vadd.f32 %v2986, %v1017
        %v2989 = vmax.f32 %v2987, 0.0
        %v2990 = vmax.f32 %v2988, 0.0
        %2991 = vst [vmem:[#allocation3 + $0x1] sm:$0xff] %v2989
        %2992 = vst [vmem:[#allocation3 + $0x9] sm:$0x7f] %v2990
        %v2993 = vld [vmem:[#allocation3] sm:$0xff]
        %v2994 = vld [vmem:[#allocation3 + $0x8] sm:$0xf]
        %v2995 = vld [vmem:[%s13] sm:$0xff]
        %v2996 = vld [vmem:[%s13 + $0x8] sm:$0xff]
        %v2997 = vld [vmem:[%s13 + $0x10] sm:$0xff]
        %v2998 = vld [vmem:[%s13 + $0x18] sm:$0xff]
        %v2999 = vld [vmem:[%s13 + $0x20] sm:$0xff]
        %v3000 = vld [vmem:[%s13 + $0x28] sm:$0xff]
        %v3001 = vld [vmem:[%s13 + $0x30] sm:$0xff]
        %v3002 = vld [vmem:[%s13 + $0x38] sm:$0xff]
        %v3003 = vld [vmem:[%s13 + $0x40] sm:$0xff]
        %v3004 = vld [vmem:[%s13 + $0x48] sm:$0xff]
        %v3005 = vld [vmem:[%s13 + $0x50] sm:$0xff]
        %v3006 = vld [vmem:[%s13 + $0x58] sm:$0xff]
        %v3007 = vld [vmem:[%s13 + $0x60] sm:$0xff]
        %v3008 = vld [vmem:[%s13 + $0x68] sm:$0xff]
        %v3009 = vld [vmem:[%s13 + $0x70] sm:$0xff]
        %v3010 = vld [vmem:[%s13 + $0x78] sm:$0xff]
        %v3011 = vld [vmem:[%s13 + $0x80] sm:$0xff]
        %v3012 = vld [vmem:[%s13 + $0x88] sm:$0xff]
        %v3013 = vld [vmem:[%s13 + $0x90] sm:$0xff]
        %v3014 = vld [vmem:[%s13 + $0x98] sm:$0xff]
        %v3015 = vld [vmem:[%s13 + $0xa0] sm:$0xff]
        %v3016 = vld [vmem:[%s13 + $0xa8] sm:$0xff]
        %v3017 = vld [vmem:[%s13 + $0xb0] sm:$0xff]
        %v3018 = vld [vmem:[%s13 + $0xb8] sm:$0xff]
        %v3019 = vld [vmem:[%s13 + $0xc0] sm:$0xff]
        %v3020 = vld [vmem:[%s13 + $0xc8] sm:$0xff]
        %v3021 = vld [vmem:[%s13 + $0xd0] sm:$0xff]
        %v3022 = vld [vmem:[%s13 + $0xd8] sm:$0xff]
        %v3023 = vld [vmem:[%s13 + $0xe0] sm:$0xff]
        %v3024 = vld [vmem:[%s13 + $0xe8] sm:$0xff]
        %v3025 = vld [vmem:[%s13 + $0xf0] sm:$0xff]
        %v3026 = vld [vmem:[%s13 + $0xf8] sm:$0xff]
        %v3027 = vld [vmem:[#allocation3 + $0x1] sm:$0xff]
        %v3028 = vld [vmem:[#allocation3 + $0x9] sm:$0xf]
        %v3029 = vld [vmem:[%s1061] sm:$0xff]
        %v3030 = vld [vmem:[%s1061 + $0x8] sm:$0xff]
        %v3031 = vld [vmem:[%s1061 + $0x10] sm:$0xff]
        %v3032 = vld [vmem:[%s1061 + $0x18] sm:$0xff]
        %v3033 = vld [vmem:[%s1061 + $0x20] sm:$0xff]
        %v3034 = vld [vmem:[%s1061 + $0x28] sm:$0xff]
        %v3035 = vld [vmem:[%s1061 + $0x30] sm:$0xff]
        %v3036 = vld [vmem:[%s1061 + $0x38] sm:$0xff]
        %v3037 = vld [vmem:[%s1061 + $0x40] sm:$0xff]
        %v3038 = vld [vmem:[%s1061 + $0x48] sm:$0xff]
        %v3039 = vld [vmem:[%s1061 + $0x50] sm:$0xff]
        %v3040 = vld [vmem:[%s1061 + $0x58] sm:$0xff]
        %v3041 = vld [vmem:[%s1061 + $0x60] sm:$0xff]
        %v3042 = vld [vmem:[%s1061 + $0x68] sm:$0xff]
        %v3043 = vld [vmem:[%s1061 + $0x70] sm:$0xff]
        %v3044 = vld [vmem:[%s1061 + $0x78] sm:$0xff]
        %v3045 = vld [vmem:[%s1061 + $0x80] sm:$0xff]
        %v3046 = vld [vmem:[%s1061 + $0x88] sm:$0xff]
        %v3047 = vld [vmem:[%s1061 + $0x90] sm:$0xff]
        %v3048 = vld [vmem:[%s1061 + $0x98] sm:$0xff]
        %v3049 = vld [vmem:[%s1061 + $0xa0] sm:$0xff]
        %v3050 = vld [vmem:[%s1061 + $0xa8] sm:$0xff]
        %v3051 = vld [vmem:[%s1061 + $0xb0] sm:$0xff]
        %v3052 = vld [vmem:[%s1061 + $0xb8] sm:$0xff]
        %v3053 = vld [vmem:[%s1061 + $0xc0] sm:$0xff]
        %v3054 = vld [vmem:[%s1061 + $0xc8] sm:$0xff]
        %v3055 = vld [vmem:[%s1061 + $0xd0] sm:$0xff]
        %v3056 = vld [vmem:[%s1061 + $0xd8] sm:$0xff]
        %v3057 = vld [vmem:[%s1061 + $0xe0] sm:$0xff]
        %v3058 = vld [vmem:[%s1061 + $0xe8] sm:$0xff]
        %v3059 = vld [vmem:[%s1061 + $0xf0] sm:$0xff]
        %v3060 = vld [vmem:[%s1061 + $0xf8] sm:$0xff]
        %3061 = vmatpush.msra.mxu0 %v3059
        %3062 = vmatpush.msra.mxu0 %v3057
        %3063 = vmatpush.msra.mxu0 %v3055
        %3064 = vmatpush.msra.mxu0 %v3053
        %3065 = vmatpush.msra.mxu0 %v3051
        %3066 = vmatpush.msra.mxu0 %v3049
        %3067 = vmatpush.msra.mxu0 %v3047
        %3068 = vmatpush.msra.mxu0 %v3045
        %3069 = vmatpush.msra.mxu0 %v3043
        %3070 = vmatpush.msra.mxu0 %v3041
        %3071 = vmatpush.msra.mxu0 %v3039
        %3072 = vmatpush.msra.mxu0 %v3037
        %3073 = vmatpush.msra.mxu0 %v3035
        %3074 = vmatpush.msra.mxu0 %v3033
        %3075 = vmatpush.msra.mxu0 %v3031
        %3076 = vmatpush.msra.mxu0 %v3029
        %3077 = vmatmul.f32.gmra.mxu0 %v3027
        %v3078 = vpop.f32.mrf.mxu0
        %v3079 = vadd.f32 0.0, %v3078
        %3080 = vmatmul.f32.gmra.mxu0 %v3028
        %v3081 = vpop.f32.mrf.mxu0
        %v3082 = vadd.f32 0.0, %v3081
        %3083 = vdwg.mxu0
        %3084 = vmatpush.msra.mxu0 %v3060
        %3085 = vmatpush.msra.mxu0 %v3058
        %3086 = vmatpush.msra.mxu0 %v3056
        %3087 = vmatpush.msra.mxu0 %v3054
        %3088 = vmatpush.msra.mxu0 %v3052
        %3089 = vmatpush.msra.mxu0 %v3050
        %3090 = vmatpush.msra.mxu0 %v3048
        %3091 = vmatpush.msra.mxu0 %v3046
        %3092 = vmatpush.msra.mxu0 %v3044
        %3093 = vmatpush.msra.mxu0 %v3042
        %3094 = vmatpush.msra.mxu0 %v3040
        %3095 = vmatpush.msra.mxu0 %v3038
        %3096 = vmatpush.msra.mxu0 %v3036
        %3097 = vmatpush.msra.mxu0 %v3034
        %3098 = vmatpush.msra.mxu0 %v3032
        %3099 = vmatpush.msra.mxu0 %v3030
        %3100 = vmatmul.f32.gmra.mxu0 %v3027
        %v3101 = vpop.f32.mrf.mxu0
        %v3102 = vadd.f32 0.0, %v3101
        %3103 = vmatmul.f32.gmra.mxu0 %v3028
        %v3104 = vpop.f32.mrf.mxu0
        %v3105 = vadd.f32 0.0, %v3104
        %3106 = vdwg.mxu0
        %3107 = vmatpush.msra.mxu0 %v3025
        %3108 = vmatpush.msra.mxu0 %v3023
        %3109 = vmatpush.msra.mxu0 %v3021
        %3110 = vmatpush.msra.mxu0 %v3019
        %3111 = vmatpush.msra.mxu0 %v3017
        %3112 = vmatpush.msra.mxu0 %v3015
        %3113 = vmatpush.msra.mxu0 %v3013
        %3114 = vmatpush.msra.mxu0 %v3011
        %3115 = vmatpush.msra.mxu0 %v3009
        %3116 = vmatpush.msra.mxu0 %v3007
        %3117 = vmatpush.msra.mxu0 %v3005
        %3118 = vmatpush.msra.mxu0 %v3003
        %3119 = vmatpush.msra.mxu0 %v3001
        %3120 = vmatpush.msra.mxu0 %v2999
        %3121 = vmatpush.msra.mxu0 %v2997
        %3122 = vmatpush.msra.mxu0 %v2995
        %3123 = vmatmul.f32.gmra.mxu0 %v2993
        %v3124 = vpop.f32.mrf.mxu0
        %v3125 = vadd.f32 %v3079, %v3124
        %3126 = vmatmul.f32.gmra.mxu0 %v2994
        %v3127 = vpop.f32.mrf.mxu0
        %v3128 = vadd.f32 %v3082, %v3127
        %3129 = vdwg.mxu0
        %3130 = vmatpush.msra.mxu0 %v3026
        %3131 = vmatpush.msra.mxu0 %v3024
        %3132 = vmatpush.msra.mxu0 %v3022
        %3133 = vmatpush.msra.mxu0 %v3020
        %3134 = vmatpush.msra.mxu0 %v3018
        %3135 = vmatpush.msra.mxu0 %v3016
        %3136 = vmatpush.msra.mxu0 %v3014
        %3137 = vmatpush.msra.mxu0 %v3012
        %3138 = vmatpush.msra.mxu0 %v3010
        %3139 = vmatpush.msra.mxu0 %v3008
        %3140 = vmatpush.msra.mxu0 %v3006
        %3141 = vmatpush.msra.mxu0 %v3004
        %3142 = vmatpush.msra.mxu0 %v3002
        %3143 = vmatpush.msra.mxu0 %v3000
        %3144 = vmatpush.msra.mxu0 %v2998
        %3145 = vmatpush.msra.mxu0 %v2996
        %3146 = vmatmul.f32.gmra.mxu0 %v2993
        %v3147 = vpop.f32.mrf.mxu0
        %v3148 = vadd.f32 %v3102, %v3147
        %3149 = vmatmul.f32.gmra.mxu0 %v2994
        %v3150 = vpop.f32.mrf.mxu0
        %v3151 = vadd.f32 %v3105, %v3150
        %3152 = vdwg.mxu0
        %v3153 = vld [vmem:[#allocation3 + $0x2] sm:$0xff]
        %v3154 = vld [vmem:[#allocation3 + $0xa] sm:$0xf]
        %v3155 = vld [vmem:[%s1188] sm:$0xff]
        %v3156 = vld [vmem:[%s1188 + $0x8] sm:$0xff]
        %v3157 = vld [vmem:[%s1188 + $0x10] sm:$0xff]
        %v3158 = vld [vmem:[%s1188 + $0x18] sm:$0xff]
        %v3159 = vld [vmem:[%s1188 + $0x20] sm:$0xff]
        %v3160 = vld [vmem:[%s1188 + $0x28] sm:$0xff]
        %v3161 = vld [vmem:[%s1188 + $0x30] sm:$0xff]
        %v3162 = vld [vmem:[%s1188 + $0x38] sm:$0xff]
        %v3163 = vld [vmem:[%s1188 + $0x40] sm:$0xff]
        %v3164 = vld [vmem:[%s1188 + $0x48] sm:$0xff]
        %v3165 = vld [vmem:[%s1188 + $0x50] sm:$0xff]
        %v3166 = vld [vmem:[%s1188 + $0x58] sm:$0xff]
        %v3167 = vld [vmem:[%s1188 + $0x60] sm:$0xff]
        %v3168 = vld [vmem:[%s1188 + $0x68] sm:$0xff]
        %v3169 = vld [vmem:[%s1188 + $0x70] sm:$0xff]
        %v3170 = vld [vmem:[%s1188 + $0x78] sm:$0xff]
        %v3171 = vld [vmem:[%s1188 + $0x80] sm:$0xff]
        %v3172 = vld [vmem:[%s1188 + $0x88] sm:$0xff]
        %v3173 = vld [vmem:[%s1188 + $0x90] sm:$0xff]
        %v3174 = vld [vmem:[%s1188 + $0x98] sm:$0xff]
        %v3175 = vld [vmem:[%s1188 + $0xa0] sm:$0xff]
        %v3176 = vld [vmem:[%s1188 + $0xa8] sm:$0xff]
        %v3177 = vld [vmem:[%s1188 + $0xb0] sm:$0xff]
        %v3178 = vld [vmem:[%s1188 + $0xb8] sm:$0xff]
        %v3179 = vld [vmem:[%s1188 + $0xc0] sm:$0xff]
        %v3180 = vld [vmem:[%s1188 + $0xc8] sm:$0xff]
        %v3181 = vld [vmem:[%s1188 + $0xd0] sm:$0xff]
        %v3182 = vld [vmem:[%s1188 + $0xd8] sm:$0xff]
        %v3183 = vld [vmem:[%s1188 + $0xe0] sm:$0xff]
        %v3184 = vld [vmem:[%s1188 + $0xe8] sm:$0xff]
        %v3185 = vld [vmem:[%s1188 + $0xf0] sm:$0xff]
        %v3186 = vld [vmem:[%s1188 + $0xf8] sm:$0xff]
        %3187 = vmatpush.msra.mxu0 %v3185
        %3188 = vmatpush.msra.mxu0 %v3183
        %3189 = vmatpush.msra.mxu0 %v3181
        %3190 = vmatpush.msra.mxu0 %v3179
        %3191 = vmatpush.msra.mxu0 %v3177
        %3192 = vmatpush.msra.mxu0 %v3175
        %3193 = vmatpush.msra.mxu0 %v3173
        %3194 = vmatpush.msra.mxu0 %v3171
        %3195 = vmatpush.msra.mxu0 %v3169
        %3196 = vmatpush.msra.mxu0 %v3167
        %3197 = vmatpush.msra.mxu0 %v3165
        %3198 = vmatpush.msra.mxu0 %v3163
        %3199 = vmatpush.msra.mxu0 %v3161
        %3200 = vmatpush.msra.mxu0 %v3159
        %3201 = vmatpush.msra.mxu0 %v3157
        %3202 = vmatpush.msra.mxu0 %v3155
        %3203 = vmatmul.f32.gmra.mxu0 %v3153
        %v3204 = vpop.f32.mrf.mxu0
        %v3205 = vadd.f32 0.0, %v3204
        %3206 = vmatmul.f32.gmra.mxu0 %v3154
        %v3207 = vpop.f32.mrf.mxu0
        %v3208 = vadd.f32 0.0, %v3207
        %3209 = vdwg.mxu0
        %3210 = vmatpush.msra.mxu0 %v3186
        %3211 = vmatpush.msra.mxu0 %v3184
        %3212 = vmatpush.msra.mxu0 %v3182
        %3213 = vmatpush.msra.mxu0 %v3180
        %3214 = vmatpush.msra.mxu0 %v3178
        %3215 = vmatpush.msra.mxu0 %v3176
        %3216 = vmatpush.msra.mxu0 %v3174
        %3217 = vmatpush.msra.mxu0 %v3172
        %3218 = vmatpush.msra.mxu0 %v3170
        %3219 = vmatpush.msra.mxu0 %v3168
        %3220 = vmatpush.msra.mxu0 %v3166
        %3221 = vmatpush.msra.mxu0 %v3164
        %3222 = vmatpush.msra.mxu0 %v3162
        %3223 = vmatpush.msra.mxu0 %v3160
        %3224 = vmatpush.msra.mxu0 %v3158
        %3225 = vmatpush.msra.mxu0 %v3156
        %3226 = vmatmul.f32.gmra.mxu0 %v3153
        %v3227 = vpop.f32.mrf.mxu0
        %v3228 = vadd.f32 0.0, %v3227
        %3229 = vmatmul.f32.gmra.mxu0 %v3154
        %v3230 = vpop.f32.mrf.mxu0
        %v3231 = vadd.f32 0.0, %v3230
        %3232 = vdwg.mxu0
        %v3233 = vadd.f32 %v3125, %v3205
        %v3234 = vadd.f32 %v3148, %v3228
        %v3235 = vadd.f32 %v3128, %v3208
        %v3236 = vadd.f32 %v3151, %v3231
        %v3237 = vld [vmem:[#allocation3 + $0x3] sm:$0xff]
        %v3238 = vld [vmem:[#allocation3 + $0xb] sm:$0xf]
        %v3239 = vld [vmem:[%s1273] sm:$0xff]
        %v3240 = vld [vmem:[%s1273 + $0x8] sm:$0xff]
        %v3241 = vld [vmem:[%s1273 + $0x10] sm:$0xff]
        %v3242 = vld [vmem:[%s1273 + $0x18] sm:$0xff]
        %v3243 = vld [vmem:[%s1273 + $0x20] sm:$0xff]
        %v3244 = vld [vmem:[%s1273 + $0x28] sm:$0xff]
        %v3245 = vld [vmem:[%s1273 + $0x30] sm:$0xff]
        %v3246 = vld [vmem:[%s1273 + $0x38] sm:$0xff]
        %v3247 = vld [vmem:[%s1273 + $0x40] sm:$0xff]
        %v3248 = vld [vmem:[%s1273 + $0x48] sm:$0xff]
        %v3249 = vld [vmem:[%s1273 + $0x50] sm:$0xff]
        %v3250 = vld [vmem:[%s1273 + $0x58] sm:$0xff]
        %v3251 = vld [vmem:[%s1273 + $0x60] sm:$0xff]
        %v3252 = vld [vmem:[%s1273 + $0x68] sm:$0xff]
        %v3253 = vld [vmem:[%s1273 + $0x70] sm:$0xff]
        %v3254 = vld [vmem:[%s1273 + $0x78] sm:$0xff]
        %v3255 = vld [vmem:[%s1273 + $0x80] sm:$0xff]
        %v3256 = vld [vmem:[%s1273 + $0x88] sm:$0xff]
        %v3257 = vld [vmem:[%s1273 + $0x90] sm:$0xff]
        %v3258 = vld [vmem:[%s1273 + $0x98] sm:$0xff]
        %v3259 = vld [vmem:[%s1273 + $0xa0] sm:$0xff]
        %v3260 = vld [vmem:[%s1273 + $0xa8] sm:$0xff]
        %v3261 = vld [vmem:[%s1273 + $0xb0] sm:$0xff]
        %v3262 = vld [vmem:[%s1273 + $0xb8] sm:$0xff]
        %v3263 = vld [vmem:[%s1273 + $0xc0] sm:$0xff]
        %v3264 = vld [vmem:[%s1273 + $0xc8] sm:$0xff]
        %v3265 = vld [vmem:[%s1273 + $0xd0] sm:$0xff]
        %v3266 = vld [vmem:[%s1273 + $0xd8] sm:$0xff]
        %v3267 = vld [vmem:[%s1273 + $0xe0] sm:$0xff]
        %v3268 = vld [vmem:[%s1273 + $0xe8] sm:$0xff]
        %v3269 = vld [vmem:[%s1273 + $0xf0] sm:$0xff]
        %v3270 = vld [vmem:[%s1273 + $0xf8] sm:$0xff]
        %3271 = vmatpush.msra.mxu0 %v3269
        %3272 = vmatpush.msra.mxu0 %v3267
        %3273 = vmatpush.msra.mxu0 %v3265
        %3274 = vmatpush.msra.mxu0 %v3263
        %3275 = vmatpush.msra.mxu0 %v3261
        %3276 = vmatpush.msra.mxu0 %v3259
        %3277 = vmatpush.msra.mxu0 %v3257
        %3278 = vmatpush.msra.mxu0 %v3255
        %3279 = vmatpush.msra.mxu0 %v3253
        %3280 = vmatpush.msra.mxu0 %v3251
        %3281 = vmatpush.msra.mxu0 %v3249
        %3282 = vmatpush.msra.mxu0 %v3247
        %3283 = vmatpush.msra.mxu0 %v3245
        %3284 = vmatpush.msra.mxu0 %v3243
        %3285 = vmatpush.msra.mxu0 %v3241
        %3286 = vmatpush.msra.mxu0 %v3239
        %3287 = vmatmul.f32.gmra.mxu0 %v3237
        %v3288 = vpop.f32.mrf.mxu0
        %v3289 = vadd.f32 0.0, %v3288
        %3290 = vmatmul.f32.gmra.mxu0 %v3238
        %v3291 = vpop.f32.mrf.mxu0
        %v3292 = vadd.f32 0.0, %v3291
        %3293 = vdwg.mxu0
        %3294 = vmatpush.msra.mxu0 %v3270
        %3295 = vmatpush.msra.mxu0 %v3268
        %3296 = vmatpush.msra.mxu0 %v3266
        %3297 = vmatpush.msra.mxu0 %v3264
        %3298 = vmatpush.msra.mxu0 %v3262
        %3299 = vmatpush.msra.mxu0 %v3260
        %3300 = vmatpush.msra.mxu0 %v3258
        %3301 = vmatpush.msra.mxu0 %v3256
        %3302 = vmatpush.msra.mxu0 %v3254
        %3303 = vmatpush.msra.mxu0 %v3252
        %3304 = vmatpush.msra.mxu0 %v3250
        %3305 = vmatpush.msra.mxu0 %v3248
        %3306 = vmatpush.msra.mxu0 %v3246
        %3307 = vmatpush.msra.mxu0 %v3244
        %3308 = vmatpush.msra.mxu0 %v3242
        %3309 = vmatpush.msra.mxu0 %v3240
        %3310 = vmatmul.f32.gmra.mxu0 %v3237
        %v3311 = vpop.f32.mrf.mxu0
        %v3312 = vadd.f32 0.0, %v3311
        %3313 = vmatmul.f32.gmra.mxu0 %v3238
        %v3314 = vpop.f32.mrf.mxu0
        %v3315 = vadd.f32 0.0, %v3314
        %3316 = vdwg.mxu0
        %v3317 = vadd.f32 %v3233, %v3289
        %v3318 = vadd.f32 %v3234, %v3312
        %v3319 = vadd.f32 %v3235, %v3292
        %v3320 = vadd.f32 %v3236, %v3315
        %v3321 = vld [vmem:[#allocation3 + $0x4] sm:$0xff]
        %v3322 = vld [vmem:[#allocation3 + $0xc] sm:$0xf]
        %v3323 = vld [vmem:[%s1358] sm:$0xff]
        %v3324 = vld [vmem:[%s1358 + $0x8] sm:$0xff]
        %v3325 = vld [vmem:[%s1358 + $0x10] sm:$0xff]
        %v3326 = vld [vmem:[%s1358 + $0x18] sm:$0xff]
        %v3327 = vld [vmem:[%s1358 + $0x20] sm:$0xff]
        %v3328 = vld [vmem:[%s1358 + $0x28] sm:$0xff]
        %v3329 = vld [vmem:[%s1358 + $0x30] sm:$0xff]
        %v3330 = vld [vmem:[%s1358 + $0x38] sm:$0xff]
        %v3331 = vld [vmem:[%s1358 + $0x40] sm:$0xff]
        %v3332 = vld [vmem:[%s1358 + $0x48] sm:$0xff]
        %v3333 = vld [vmem:[%s1358 + $0x50] sm:$0xff]
        %v3334 = vld [vmem:[%s1358 + $0x58] sm:$0xff]
        %v3335 = vld [vmem:[%s1358 + $0x60] sm:$0xff]
        %v3336 = vld [vmem:[%s1358 + $0x68] sm:$0xff]
        %v3337 = vld [vmem:[%s1358 + $0x70] sm:$0xff]
        %v3338 = vld [vmem:[%s1358 + $0x78] sm:$0xff]
        %v3339 = vld [vmem:[%s1358 + $0x80] sm:$0xff]
        %v3340 = vld [vmem:[%s1358 + $0x88] sm:$0xff]
        %v3341 = vld [vmem:[%s1358 + $0x90] sm:$0xff]
        %v3342 = vld [vmem:[%s1358 + $0x98] sm:$0xff]
        %v3343 = vld [vmem:[%s1358 + $0xa0] sm:$0xff]
        %v3344 = vld [vmem:[%s1358 + $0xa8] sm:$0xff]
        %v3345 = vld [vmem:[%s1358 + $0xb0] sm:$0xff]
        %v3346 = vld [vmem:[%s1358 + $0xb8] sm:$0xff]
        %v3347 = vld [vmem:[%s1358 + $0xc0] sm:$0xff]
        %v3348 = vld [vmem:[%s1358 + $0xc8] sm:$0xff]
        %v3349 = vld [vmem:[%s1358 + $0xd0] sm:$0xff]
        %v3350 = vld [vmem:[%s1358 + $0xd8] sm:$0xff]
        %v3351 = vld [vmem:[%s1358 + $0xe0] sm:$0xff]
        %v3352 = vld [vmem:[%s1358 + $0xe8] sm:$0xff]
        %v3353 = vld [vmem:[%s1358 + $0xf0] sm:$0xff]
        %v3354 = vld [vmem:[%s1358 + $0xf8] sm:$0xff]
        %3355 = vmatpush.msra.mxu0 %v3353
        %3356 = vmatpush.msra.mxu0 %v3351
        %3357 = vmatpush.msra.mxu0 %v3349
        %3358 = vmatpush.msra.mxu0 %v3347
        %3359 = vmatpush.msra.mxu0 %v3345
        %3360 = vmatpush.msra.mxu0 %v3343
        %3361 = vmatpush.msra.mxu0 %v3341
        %3362 = vmatpush.msra.mxu0 %v3339
        %3363 = vmatpush.msra.mxu0 %v3337
        %3364 = vmatpush.msra.mxu0 %v3335
        %3365 = vmatpush.msra.mxu0 %v3333
        %3366 = vmatpush.msra.mxu0 %v3331
        %3367 = vmatpush.msra.mxu0 %v3329
        %3368 = vmatpush.msra.mxu0 %v3327
        %3369 = vmatpush.msra.mxu0 %v3325
        %3370 = vmatpush.msra.mxu0 %v3323
        %3371 = vmatmul.f32.gmra.mxu0 %v3321
        %v3372 = vpop.f32.mrf.mxu0
        %v3373 = vadd.f32 0.0, %v3372
        %3374 = vmatmul.f32.gmra.mxu0 %v3322
        %v3375 = vpop.f32.mrf.mxu0
        %v3376 = vadd.f32 0.0, %v3375
        %3377 = vdwg.mxu0
        %3378 = vmatpush.msra.mxu0 %v3354
        %3379 = vmatpush.msra.mxu0 %v3352
        %3380 = vmatpush.msra.mxu0 %v3350
        %3381 = vmatpush.msra.mxu0 %v3348
        %3382 = vmatpush.msra.mxu0 %v3346
        %3383 = vmatpush.msra.mxu0 %v3344
        %3384 = vmatpush.msra.mxu0 %v3342
        %3385 = vmatpush.msra.mxu0 %v3340
        %3386 = vmatpush.msra.mxu0 %v3338
        %3387 = vmatpush.msra.mxu0 %v3336
        %3388 = vmatpush.msra.mxu0 %v3334
        %3389 = vmatpush.msra.mxu0 %v3332
        %3390 = vmatpush.msra.mxu0 %v3330
        %3391 = vmatpush.msra.mxu0 %v3328
        %3392 = vmatpush.msra.mxu0 %v3326
        %3393 = vmatpush.msra.mxu0 %v3324
        %3394 = vmatmul.f32.gmra.mxu0 %v3321
        %v3395 = vpop.f32.mrf.mxu0
        %v3396 = vadd.f32 0.0, %v3395
        %3397 = vmatmul.f32.gmra.mxu0 %v3322
        %v3398 = vpop.f32.mrf.mxu0
        %v3399 = vadd.f32 0.0, %v3398
        %3400 = vdwg.mxu0
        %v3401 = vadd.f32 %v3317, %v3373
        %v3402 = vadd.f32 %v3318, %v3396
        %v3403 = vadd.f32 %v3319, %v3376
        %v3404 = vadd.f32 %v3320, %v3399
        %v3405 = vld [vmem:[#allocation3 + $0x5] sm:$0xff]
        %v3406 = vld [vmem:[#allocation3 + $0xd] sm:$0xf]
        %v3407 = vld [vmem:[%s1443] sm:$0xff]
        %v3408 = vld [vmem:[%s1443 + $0x8] sm:$0xff]
        %v3409 = vld [vmem:[%s1443 + $0x10] sm:$0xff]
        %v3410 = vld [vmem:[%s1443 + $0x18] sm:$0xff]
        %v3411 = vld [vmem:[%s1443 + $0x20] sm:$0xff]
        %v3412 = vld [vmem:[%s1443 + $0x28] sm:$0xff]
        %v3413 = vld [vmem:[%s1443 + $0x30] sm:$0xff]
        %v3414 = vld [vmem:[%s1443 + $0x38] sm:$0xff]
        %v3415 = vld [vmem:[%s1443 + $0x40] sm:$0xff]
        %v3416 = vld [vmem:[%s1443 + $0x48] sm:$0xff]
        %v3417 = vld [vmem:[%s1443 + $0x50] sm:$0xff]
        %v3418 = vld [vmem:[%s1443 + $0x58] sm:$0xff]
        %v3419 = vld [vmem:[%s1443 + $0x60] sm:$0xff]
        %v3420 = vld [vmem:[%s1443 + $0x68] sm:$0xff]
        %v3421 = vld [vmem:[%s1443 + $0x70] sm:$0xff]
        %v3422 = vld [vmem:[%s1443 + $0x78] sm:$0xff]
        %v3423 = vld [vmem:[%s1443 + $0x80] sm:$0xff]
        %v3424 = vld [vmem:[%s1443 + $0x88] sm:$0xff]
        %v3425 = vld [vmem:[%s1443 + $0x90] sm:$0xff]
        %v3426 = vld [vmem:[%s1443 + $0x98] sm:$0xff]
        %v3427 = vld [vmem:[%s1443 + $0xa0] sm:$0xff]
        %v3428 = vld [vmem:[%s1443 + $0xa8] sm:$0xff]
        %v3429 = vld [vmem:[%s1443 + $0xb0] sm:$0xff]
        %v3430 = vld [vmem:[%s1443 + $0xb8] sm:$0xff]
        %v3431 = vld [vmem:[%s1443 + $0xc0] sm:$0xff]
        %v3432 = vld [vmem:[%s1443 + $0xc8] sm:$0xff]
        %v3433 = vld [vmem:[%s1443 + $0xd0] sm:$0xff]
        %v3434 = vld [vmem:[%s1443 + $0xd8] sm:$0xff]
        %v3435 = vld [vmem:[%s1443 + $0xe0] sm:$0xff]
        %v3436 = vld [vmem:[%s1443 + $0xe8] sm:$0xff]
        %v3437 = vld [vmem:[%s1443 + $0xf0] sm:$0xff]
        %v3438 = vld [vmem:[%s1443 + $0xf8] sm:$0xff]
        %3439 = vmatpush.msra.mxu0 %v3437
        %3440 = vmatpush.msra.mxu0 %v3435
        %3441 = vmatpush.msra.mxu0 %v3433
        %3442 = vmatpush.msra.mxu0 %v3431
        %3443 = vmatpush.msra.mxu0 %v3429
        %3444 = vmatpush.msra.mxu0 %v3427
        %3445 = vmatpush.msra.mxu0 %v3425
        %3446 = vmatpush.msra.mxu0 %v3423
        %3447 = vmatpush.msra.mxu0 %v3421
        %3448 = vmatpush.msra.mxu0 %v3419
        %3449 = vmatpush.msra.mxu0 %v3417
        %3450 = vmatpush.msra.mxu0 %v3415
        %3451 = vmatpush.msra.mxu0 %v3413
        %3452 = vmatpush.msra.mxu0 %v3411
        %3453 = vmatpush.msra.mxu0 %v3409
        %3454 = vmatpush.msra.mxu0 %v3407
        %3455 = vmatmul.f32.gmra.mxu0 %v3405
        %v3456 = vpop.f32.mrf.mxu0
        %v3457 = vadd.f32 0.0, %v3456
        %3458 = vmatmul.f32.gmra.mxu0 %v3406
        %v3459 = vpop.f32.mrf.mxu0
        %v3460 = vadd.f32 0.0, %v3459
        %3461 = vdwg.mxu0
        %3462 = vmatpush.msra.mxu0 %v3438
        %3463 = vmatpush.msra.mxu0 %v3436
        %3464 = vmatpush.msra.mxu0 %v3434
        %3465 = vmatpush.msra.mxu0 %v3432
        %3466 = vmatpush.msra.mxu0 %v3430
        %3467 = vmatpush.msra.mxu0 %v3428
        %3468 = vmatpush.msra.mxu0 %v3426
        %3469 = vmatpush.msra.mxu0 %v3424
        %3470 = vmatpush.msra.mxu0 %v3422
        %3471 = vmatpush.msra.mxu0 %v3420
        %3472 = vmatpush.msra.mxu0 %v3418
        %3473 = vmatpush.msra.mxu0 %v3416
        %3474 = vmatpush.msra.mxu0 %v3414
        %3475 = vmatpush.msra.mxu0 %v3412
        %3476 = vmatpush.msra.mxu0 %v3410
        %3477 = vmatpush.msra.mxu0 %v3408
        %3478 = vmatmul.f32.gmra.mxu0 %v3405
        %v3479 = vpop.f32.mrf.mxu0
        %v3480 = vadd.f32 0.0, %v3479
        %3481 = vmatmul.f32.gmra.mxu0 %v3406
        %v3482 = vpop.f32.mrf.mxu0
        %v3483 = vadd.f32 0.0, %v3482
        %3484 = vdwg.mxu0
        %v3485 = vadd.f32 %v3401, %v3457
        %v3486 = vadd.f32 %v3402, %v3480
        %v3487 = vadd.f32 %v3403, %v3460
        %v3488 = vadd.f32 %v3404, %v3483
        %v3489 = vadd.f32 %v3485, %v1527
        %v3490 = vadd.f32 %v3486, %v1528
        %v3491 = vadd.f32 %v3487, %v1527
        %v3492 = vadd.f32 %v3488, %v1528
        %v3493 = vmax.f32 %v3489, 0.0
        %v3494 = vmax.f32 %v3490, 0.0
        %v3495 = vmax.f32 %v3491, 0.0
        %v3496 = vmax.f32 %v3492, 0.0
        %v3497 = vmul.f32 %v3493, %v1542
        %v3498 = vmul.f32 %v3494, %v1542
        %v3499 = vmul.f32 %v3495, %v1547
        %v3500 = vmul.f32 %v3496, %v1547
        %v3501 = vsel %vm1553, %v3499, 0.0
        %v3502 = vadd.f32 %v3497, %v3501
        %v3503 = vrot.slane %v3502, 4
        %v3504 = vadd.f32 %v3502, %v3503
        %v3505 = vrot.slane %v3504, 2
        %v3506 = vadd.f32 %v3504, %v3505
        %v3507 = vrot.slane %v3506, 1
        %v3508 = vadd.f32 %v3506, %v3507
        %v3509 = vsel %vm1553, %v3500, 0.0
        %v3510 = vadd.f32 %v3498, %v3509
        %v3511 = vrot.slane %v3510, 4
        %v3512 = vadd.f32 %v3510, %v3511
        %v3513 = vrot.slane %v3512, 2
        %v3514 = vadd.f32 %v3512, %v3513
        %v3515 = vrot.slane %v3514, 1
        %v3516 = vadd.f32 %v3514, %v3515
        %s3517 = scalar_lea.vmem %s16, 512
        %v3518 = vld [vmem:[%s3517] sm:$0xff]
        %v3519 = vld [vmem:[%s3517 + $0x8] sm:$0xff]
        %v3520 = vld [vmem:[%s3517 + $0x10] sm:$0xff]
        %v3521 = vld [vmem:[%s3517 + $0x18] sm:$0xff]
        %v3522 = vld [vmem:[%s3517 + $0x20] sm:$0xff]
        %v3523 = vld [vmem:[%s3517 + $0x28] sm:$0xff]
        %v3524 = vld [vmem:[%s3517 + $0x30] sm:$0xff]
        %v3525 = vld [vmem:[%s3517 + $0x38] sm:$0xff]
        %v3526 = vld [vmem:[%s3517 + $0x40] sm:$0xff]
        %v3527 = vld [vmem:[%s3517 + $0x48] sm:$0xff]
        %v3528 = vld [vmem:[%s3517 + $0x50] sm:$0xff]
        %v3529 = vld [vmem:[%s3517 + $0x58] sm:$0xff]
        %v3530 = vld [vmem:[%s3517 + $0x60] sm:$0xff]
        %v3531 = vld [vmem:[%s3517 + $0x68] sm:$0xff]
        %v3532 = vld [vmem:[%s3517 + $0x70] sm:$0xff]
        %v3533 = vld [vmem:[%s3517 + $0x78] sm:$0xff]
        %v3534 = vld [vmem:[%s3517 + $0x80] sm:$0xff]
        %v3535 = vld [vmem:[%s3517 + $0x88] sm:$0xff]
        %v3536 = vld [vmem:[%s3517 + $0x90] sm:$0xff]
        %v3537 = vld [vmem:[%s3517 + $0x98] sm:$0xff]
        %v3538 = vld [vmem:[%s3517 + $0xa0] sm:$0xff]
        %v3539 = vld [vmem:[%s3517 + $0xa8] sm:$0xff]
        %v3540 = vld [vmem:[%s3517 + $0xb0] sm:$0xff]
        %v3541 = vld [vmem:[%s3517 + $0xb8] sm:$0xff]
        %v3542 = vld [vmem:[%s3517 + $0xc0] sm:$0xff]
        %v3543 = vld [vmem:[%s3517 + $0xc8] sm:$0xff]
        %v3544 = vld [vmem:[%s3517 + $0xd0] sm:$0xff]
        %v3545 = vld [vmem:[%s3517 + $0xd8] sm:$0xff]
        %v3546 = vld [vmem:[%s3517 + $0xe0] sm:$0xff]
        %v3547 = vld [vmem:[%s3517 + $0xe8] sm:$0xff]
        %v3548 = vld [vmem:[%s3517 + $0xf0] sm:$0xff]
        %v3549 = vld [vmem:[%s3517 + $0xf8] sm:$0xff]
        %3550 = vmatpush.msra.mxu0 %v3533
        %3551 = vmatpush.msra.mxu0 %v3532
        %3552 = vmatpush.msra.mxu0 %v3531
        %3553 = vmatpush.msra.mxu0 %v3530
        %3554 = vmatpush.msra.mxu0 %v3529
        %3555 = vmatpush.msra.mxu0 %v3528
        %3556 = vmatpush.msra.mxu0 %v3527
        %3557 = vmatpush.msra.mxu0 %v3526
        %3558 = vmatpush.msra.mxu0 %v3525
        %3559 = vmatpush.msra.mxu0 %v3524
        %3560 = vmatpush.msra.mxu0 %v3523
        %3561 = vmatpush.msra.mxu0 %v3522
        %3562 = vmatpush.msra.mxu0 %v3521
        %3563 = vmatpush.msra.mxu0 %v3520
        %3564 = vmatpush.msra.mxu0 %v3519
        %3565 = vmatpush.msra.mxu0 %v3518
        %3566 = vmatmul.f32.gmra.mxu0 %v3508
        %v3567 = vpop.f32.mrf.mxu0
        %v3568 = vadd.f32 0.0, %v3567
        %3569 = vdwg.mxu0
        %3570 = vmatpush.msra.mxu0 %v3549
        %3571 = vmatpush.msra.mxu0 %v3548
        %3572 = vmatpush.msra.mxu0 %v3547
        %3573 = vmatpush.msra.mxu0 %v3546
        %3574 = vmatpush.msra.mxu0 %v3545
        %3575 = vmatpush.msra.mxu0 %v3544
        %3576 = vmatpush.msra.mxu0 %v3543
        %3577 = vmatpush.msra.mxu0 %v3542
        %3578 = vmatpush.msra.mxu0 %v3541
        %3579 = vmatpush.msra.mxu0 %v3540
        %3580 = vmatpush.msra.mxu0 %v3539
        %3581 = vmatpush.msra.mxu0 %v3538
        %3582 = vmatpush.msra.mxu0 %v3537
        %3583 = vmatpush.msra.mxu0 %v3536
        %3584 = vmatpush.msra.mxu0 %v3535
        %3585 = vmatpush.msra.mxu0 %v3534
        %3586 = vmatmul.f32.gmra.mxu0 %v3516
        %v3587 = vpop.f32.mrf.mxu0
        %v3588 = vadd.f32 %v3568, %v3587
        %3589 = vdwg.mxu0
        %v3590 = vadd.f32 %v2614, %v3588
        %v3591 = vadd.f32 %v3590, %v616
        %vm3592 = vcmask 40960
        %3593 = vst.msk [vmem:[%s567] sm:$0x1] %vm3592, %v3591
        %s3594 = sand.u32 %s423, 1
        %s3595 = scalar_lea.sflag [#allocation5], %s3594
        %s3596 = sand.u32 %s423, 1
        %s3597 = scalar_lea.vmem [#allocation4], %s3596
        // Predicated region
        $region93: #{elk_cnn_forward.1} parent=91 // pred_check
          %p3598 = pneg %p433
        $region94: #{elk_cnn_forward.1} parent=91 // pred_check_branch
          %3600 = sbr.rel (%p3598) target = $region96
        $region95: #{elk_cnn_forward.1} parent=91 // pred_region
          %3602 = vsyncadd %s3595, 0
          %s3603 = scalar_lea.hbm %s18, %s32
          %s3605 = sshll.u32 %s3597, 4
          %s3606 = int_to_ptr.vmem [resolvable:$true] %s3605
          %s3607 = sshll.u32 %s3603, 4
          %s3608 = int_to_ptr.hbm [resolvable:$true] %s3607
          %3610 = dma.vmem_to_hbm [thread:$0]  %s3606, 16, %s3608, %s3595
        $region96: #{elk_cnn_forward.1} parent=91 // pred_fallthru
          _
      $region92: #{elk_cnn_forward.1} parent=5 // pred_fallthru
        _
      %p3611 = scmp.le.s32.totalorder 2, %s27
      // Predicated region
      $region97: #{elk_cnn_forward.1} parent=5 // pred_check
        %p3612 = pneg %p3611
      $region98: #{elk_cnn_forward.1} parent=5 // pred_check_branch
        %3614 = sbr.rel (%p3612) target = $region100
      $region99: #{elk_cnn_forward.1} parent=5 // pred_region
        %s3615 = ssub.s32 %s27, 2
        // Predicated region
        $region101: #{elk_cnn_forward.1} parent=99 // pred_check
          %p3616 = pneg %p439
        $region102: #{elk_cnn_forward.1} parent=99 // pred_check_branch
          %3618 = sbr.rel (%p3616) target = $region104
        $region103: #{elk_cnn_forward.1} parent=99 // pred_region
          %s3619 = sand.u32 %s424, 1
          %s3620 = scalar_lea.sflag [#allocation5], %s3619
          %s3621 = sand.u32 %s424, 1
          %s3622 = scalar_lea.vmem [#allocation4], %s3621
          %3624 = dma.done %s3620, 16
        $region104: #{elk_cnn_forward.1} parent=99 // pred_fallthru
          _
      $region100: #{elk_cnn_forward.1} parent=5 // pred_fallthru
        _
    $region6: #{elk_cnn_forward.1} parent=1 // loop_footer
      %s31 = sadd.s32 1, %s27
    $region7: #{elk_cnn_forward.1} parent=1 // loop_footer_branch
      %26 = sbr.rel target = $region3
    $region8: #{elk_cnn_forward.1} parent=1 // loop_exit
      _
    %3625 = vsyncpa [#allocation5], 1
    %s3626 = scalar_lea.sflag [#allocation5], 1
    %3627 = vsyncpa %s3626, 1

</llo_original>
